<compile_context>
chip_gen: v7x
topology: tpu7x:2x2x1
jax: 0.10.0
libtpu: 0.0.40
codegen_flags: <defaults>
</compile_context>

<pallas_src>
import functools
import math

import jax
import jax.numpy as jnp
from jax.experimental import pallas as pl
from jax.experimental.pallas import tpu as pltpu


def _round_up(n, m):
    return ((n + m - 1) // m) * m


def _elu(x):
    # ELU(alpha=1); written with exp so it lowers cleanly in Mosaic.
    return jnp.where(x > 0, x, jnp.exp(jnp.minimum(x, 0.0)) - 1.0)


# ----------------------------- kernel helpers ------------------------------ #

def _gat_attention_heads(hext, adj, v1bd, *, n_heads, per_head, temp):
    """Multi-head GAT attention given the v0-extended linear output.

    hext columns = [h_head0 | h_head1 | ... | f1_head0, f1_head1, ...]
    (v0 is folded into the weight matrix, so f1 falls out of the main matmul).
    Returns a list of per-head outputs, each (Np, per_head)."""
    h1 = n_heads * per_head
    h_all = hext[:, :h1]                        # (Np, h1)
    f1_all = hext[:, h1:h1 + n_heads]           # (Np, n_heads)
    # All heads' f2 rows in one MXU pass via block-diagonal v1: (n_heads, Np).
    f2_all = jax.lax.dot_general(
        v1bd, h_all, dimension_numbers=(((1,), (1,)), ((), ())),
        preferred_element_type=jnp.float32)
    scale = 0.5 / temp
    outs = []
    for hd in range(n_heads):
        f1 = f1_all[:, hd:hd + 1]               # (Np, 1)
        f2t = f2_all[hd:hd + 1, :]              # (1, Np)
        logits = adj * (f1 + f2t)               # (Np, Np)
        # torch: (sigmoid(logits)-0.5).to_sparse() keeps entries with
        # logits != 0; sparse.softmax normalises only over those, 0 elsewhere.
        mask = logits != 0.0
        u = scale * jnp.tanh(0.5 * logits)      # == (sigmoid(logits)-0.5)/temp
        e = jnp.where(mask, jnp.exp(u), 0.0)
        denom = jnp.sum(e, axis=1, keepdims=True)
        probs = jnp.where(mask, e * pl.reciprocal(denom, approx=True), 0.0)
        h_hd = h_all[:, hd * per_head:(hd + 1) * per_head]
        outs.append(jnp.dot(probs, h_hd, preferred_element_type=jnp.float32))
    return outs


def _gat_elu_dense(hext, adj, v1bd, w2, b2, *, n_heads, per_head, temp):
    """ELU(concat(head outputs)) @ W2 + b2, with the concat decomposed into
    per-head matmuls against row-blocks of W2 (no in-kernel concatenation)."""
    heads = _gat_attention_heads(hext, adj, v1bd,
                                 n_heads=n_heads, per_head=per_head, temp=temp)
    acc = None
    for hd, o in enumerate(heads):
        part = jnp.dot(_elu(o), w2[hd * per_head:(hd + 1) * per_head, :],
                       preferred_element_type=jnp.float32)
        acc = part if acc is None else acc + part
    return acc + b2


# ------------------------------- fused kernel ------------------------------ #

def _integration_kernel(
        x_ref, adj_ref, emb_ref,
        we1_ref, be1_ref, v1bd1_ref, wenc2_ref, benc2_ref,
        wbeta_ref, bbeta_ref, walpha_ref, balpha_ref,
        we2_ref, be2_ref, v1bd2_ref, wdec2_ref, bdec2_ref,
        z_ref, beta_ref, alpha_ref, xrec_ref,
        *, n_heads, per_head, temp):
    x = x_ref[...]          # (Np, h0)
    adj = adj_ref[...]      # (Np, Np)
    emb = emb_ref[...]      # (Np, emb_dim)

    # ------------------------------ encoder --------------------------------
    hext1 = (jnp.dot(x, we1_ref[...], preferred_element_type=jnp.float32)
             + be1_ref[...])
    Z = _gat_elu_dense(hext1, adj, v1bd1_ref[...], wenc2_ref[...], benc2_ref[...],
                       n_heads=n_heads, per_head=per_head, temp=temp)
    z_ref[...] = Z

    # -------------------------- deconvolutioner ----------------------------
    elu_Z = _elu(Z)
    bl = (jnp.dot(elu_Z, wbeta_ref[...], preferred_element_type=jnp.float32)
          + bbeta_ref[...])
    bl = bl - jnp.max(bl, axis=1, keepdims=True)
    eb = jnp.exp(bl)
    beta_ref[...] = eb * pl.reciprocal(jnp.sum(eb, axis=1, keepdims=True),
                                       approx=True)

    h2 = Z.shape[1]
    elu_emb = _elu(emb)
    wa = walpha_ref[...]
    alpha = (jnp.dot(elu_Z, wa[:h2, :], preferred_element_type=jnp.float32)
             + jnp.dot(elu_emb, wa[h2:, :], preferred_element_type=jnp.float32)
             + balpha_ref[...])
    alpha_ref[...] = jnp.clip(alpha, -0.1, 0.1)

    # ------------------------------ decoder --------------------------------
    # decoder_layer1 input is concat([Z, emb], 1); the concat is folded into
    # two matmuls against row-blocks of the (v0-extended) decoder weight.
    we2 = we2_ref[...]
    hext2 = (jnp.dot(Z, we2[:h2, :], preferred_element_type=jnp.float32)
             + jnp.dot(emb, we2[h2:, :], preferred_element_type=jnp.float32)
             + be2_ref[...])
    xrec_ref[...] = _gat_elu_dense(hext2, adj, v1bd2_ref[...], wdec2_ref[...],
                                   bdec2_ref[...], n_heads=n_heads,
                                   per_head=per_head, temp=temp)


def fused_forward(x_all, adj_all, emb_all, params, temp=1.0):
    S, Np, c_in = x_all.shape
    we1, be1, v1bd1 = params["enc1"]
    wenc2, benc2 = params["enc2"]
    we2, be2, v1bd2 = params["dec1"]
    wdec2, bdec2 = params["dec2"]
    wbeta, bbeta = params["beta"]
    walpha, balpha = params["alpha"]

    n_heads = v1bd1.shape[0]
    per_head = v1bd1.shape[1] // n_heads
    h2 = wenc2.shape[1]
    nf = wbeta.shape[1]
    h0 = wdec2.shape[1]
    emb_dim = emb_all.shape[2]

    kernel = functools.partial(_integration_kernel, n_heads=n_heads,
                               per_head=per_head, temp=temp)

    def sliced(tail):
        # One slice per grid step; leading slice dim is squeezed out.
        return pl.BlockSpec((None,) + tuple(tail), lambda s: (s, 0, 0))

    def shared(a):
        # Whole (small) parameter array, same block every grid step.
        return pl.BlockSpec(a.shape, lambda s: (0, 0))

    out_shapes = (
        jax.ShapeDtypeStruct((S, Np, h2), jnp.float32),   # Z
        jax.ShapeDtypeStruct((S, Np, nf), jnp.float32),   # beta
        jax.ShapeDtypeStruct((S, Np, 1), jnp.float32),    # alpha
        jax.ShapeDtypeStruct((S, Np, h0), jnp.float32),   # X_recon
    )

    return pl.pallas_call(
        kernel,
        out_shape=out_shapes,
        grid=(S,),
        in_specs=[
            sliced((Np, c_in)),
            sliced((Np, Np)),
            sliced((Np, emb_dim)),
            shared(we1), shared(be1), shared(v1bd1), shared(wenc2), shared(benc2),
            shared(wbeta), shared(bbeta), shared(walpha), shared(balpha),
            shared(we2), shared(be2), shared(v1bd2), shared(wdec2), shared(bdec2),
        ],
        out_specs=(sliced((Np, h2)), sliced((Np, nf)),
                   sliced((Np, 1)), sliced((Np, h0))),
        compiler_params=pltpu.CompilerParams(
            dimension_semantics=("parallel",),
            vmem_limit_bytes=48 * 1024 * 1024),
    )(x_all, adj_all, emb_all,
      we1, be1, v1bd1, wenc2, benc2,
      wbeta, bbeta, walpha, balpha,
      we2, be2, v1bd2, wdec2, bdec2)


# --------------------------- parameter construction ------------------------ #

def _glorot_uniform(key, shape, fan_in, fan_out):
    lim = math.sqrt(6.0 / (fan_in + fan_out))
    return jax.random.uniform(key, shape, jnp.float32, -lim, lim)


def _make_dense(key, c_in, c_out, zero_init=False):
    if zero_init:
        w = jnp.zeros((c_in, c_out), jnp.float32)
    else:
        w = _glorot_uniform(key, (c_in, c_out), c_in, c_out)
    b = jnp.zeros((1, c_out), jnp.float32)           # (1, c_out) for broadcasting
    return (w, b)


def _make_gat_head(key, c_in, c_out):
    k1, k2, k3 = jax.random.split(key, 3)
    w = _glorot_uniform(k1, (c_in, c_out), c_in, c_out)
    b = jnp.zeros((c_out,), jnp.float32)
    lim = math.sqrt(6.0 / (c_out + 1))
    v0 = jax.random.uniform(k2, (c_out,), jnp.float32, -lim, lim)
    v1 = jax.random.uniform(k3, (c_out,), jnp.float32, -lim, lim)
    return (w, b, v0, v1)


def _pack_heads(heads):
    """Pack GAT heads: fold v0 into the weight, block-diagonalise v1."""
    n_heads = len(heads)
    per = heads[0][0].shape[1]
    w_all = jnp.concatenate([h[0] for h in heads], axis=1)           # (c_in, h1)
    b_all = jnp.concatenate([h[1] for h in heads], axis=0)           # (h1,)
    w_v0 = jnp.stack([h[0] @ h[2] for h in heads], axis=1)           # (c_in, n_heads)
    b_v0 = jnp.stack([jnp.dot(h[1], h[2]) for h in heads], axis=0)   # (n_heads,)
    w_ext = jnp.concatenate([w_all, w_v0], axis=1)                   # (c_in, h1+n_heads)
    b_ext = jnp.concatenate([b_all, b_v0], axis=0).reshape(1, -1)
    v1bd = jnp.zeros((n_heads, n_heads * per), jnp.float32)
    for i, h in enumerate(heads):
        v1bd = v1bd.at[i, i * per:(i + 1) * per].set(h[3])
    return (w_ext, b_ext, v1bd)


def init_params(key, hidden_dims, n_heads, n_factors, n_slices, slice_emb_dim):
    h0, h1, h2 = hidden_dims
    assert h1 % n_heads == 0
    per = h1 // n_heads
    keys = jax.random.split(key, 16)
    enc1_heads = [_make_gat_head(keys[i], h0, per) for i in range(n_heads)]
    dec1_heads = [_make_gat_head(keys[5 + i], h2 + slice_emb_dim, per)
                  for i in range(n_heads)]
    params = {
        "enc1": _pack_heads(enc1_heads),
        "enc2": _make_dense(keys[4], h1, h2),
        "dec1": _pack_heads(dec1_heads),
        "dec2": _make_dense(keys[9], h1, h0),
        "beta": _make_dense(keys[10], h2, n_factors),
        "alpha": _make_dense(keys[11], h2 + slice_emb_dim, 1, zero_init=True),
        "factors": _glorot_uniform(keys[12], (n_factors, h0), n_factors, h0),
        "gamma": jnp.zeros((n_slices, h0), jnp.float32),
        "slice_emb": jax.random.normal(keys[13], (n_slices, slice_emb_dim),
                                       jnp.float32),
    }
    return params


# -------------------------------- forward ---------------------------------- #

def forward(params, adj_dict, feats_dict, label_dict, n_slices, temp=1.0):
    basis = jax.nn.softmax(params["factors"], axis=1)

    Ns = [int(feats_dict[i].shape[0]) for i in range(n_slices)]
    Np = _round_up(max(max(Ns), 128), 128)    # full 128-lane vregs for (N,N) block

    def pad_rows(a):
        pad = [(0, Np - a.shape[0])] + [(0, 0)] * (a.ndim - 1)
        return jnp.pad(a, pad)

    x_all = jnp.stack([pad_rows(feats_dict[i]) for i in range(n_slices)])
    adj_all = jnp.stack([
        jnp.pad(adj_dict[i], ((0, Np - adj_dict[i].shape[0]),
                              (0, Np - adj_dict[i].shape[1])))
        for i in range(n_slices)])
    lab_all = jnp.stack([pad_rows(label_dict[i]) for i in range(n_slices)])
    emb_all = params["slice_emb"][lab_all]    # (S, Np, emb_dim) — trivial XLA gather

    z_all, beta_all, alpha_all, xrec_all = fused_forward(
        x_all, adj_all, emb_all, params, temp=temp)

    Z_d, beta_d, alpha_d, recon_d = {}, {}, {}, {}
    for i in range(n_slices):
        n = Ns[i]
        Z_d[i] = z_all[i, :n]
        beta_d[i] = beta_all[i, :n]
        alpha_d[i] = alpha_all[i, :n]
        recon_d[i] = xrec_all[i, :n]
    return Z_d, beta_d, alpha_d, recon_d, basis, params["gamma"]


# ---------------------------------- main ------------------------------------ #

if __name__ == "__main__":
    hidden_dims = [32, 16, 8]
    n_heads = 2
    n_factors = 4
    n_slices = 2
    slice_emb_dim = 4
    N = 64  # nodes per slice

    key = jax.random.PRNGKey(0)
    kp, kd = jax.random.split(key)
    params = init_params(kp, hidden_dims, n_heads, n_factors, n_slices,
                         slice_emb_dim)

    adj_dict, feats_dict, label_dict = {}, {}, {}
    for i in range(n_slices):
        ka, kx = jax.random.split(jax.random.fold_in(kd, i))
        a = (jax.random.uniform(ka, (N, N)) < 0.2).astype(jnp.float32)
        a = jnp.maximum(a, a.T)                            # symmetric
        a = a.at[jnp.arange(N), jnp.arange(N)].set(1.0)    # self loops
        adj_dict[i] = a
        feats_dict[i] = jax.random.normal(kx, (N, hidden_dims[0]), jnp.float32)
        label_dict[i] = jnp.full((N,), i, jnp.int32)

    out = forward(params, adj_dict, feats_dict, label_dict, n_slices)
    jax.block_until_ready(jax.tree_util.tree_leaves(out))

    Z_d, beta_d, alpha_d, recon_d, basis, gamma = out
    assert Z_d[0].shape == (N, hidden_dims[2])
    assert beta_d[0].shape == (N, n_factors)
    assert alpha_d[0].shape == (N, 1)
    assert recon_d[0].shape == (N, hidden_dims[0])
    assert basis.shape == (n_factors, hidden_dims[0])
    assert gamma.shape == (n_slices, hidden_dims[0])
    # beta rows come from an in-kernel softmax; they must sum to ~1
    assert bool(jnp.all(jnp.abs(jnp.sum(beta_d[0], axis=1) - 1.0) < 5e-2))

    print("KERNEL_OK")
</pallas_src>

<mosaic_0001>
module attributes {stable_mosaic.version = 11 : i64} {
  func.func @_integration_kernel(%arg0: i32, %arg1: memref<1x128x32xf32, #tpu.memory_space<vmem>>, %arg2: memref<1x128x128xf32, #tpu.memory_space<vmem>>, %arg3: memref<1x128x4xf32, #tpu.memory_space<vmem>>, %arg4: memref<32x18xf32, #tpu.memory_space<vmem>>, %arg5: memref<1x18xf32, #tpu.memory_space<vmem>>, %arg6: memref<2x16xf32, #tpu.memory_space<vmem>>, %arg7: memref<16x8xf32, #tpu.memory_space<vmem>>, %arg8: memref<1x8xf32, #tpu.memory_space<vmem>>, %arg9: memref<8x4xf32, #tpu.memory_space<vmem>>, %arg10: memref<1x4xf32, #tpu.memory_space<vmem>>, %arg11: memref<12x1xf32, #tpu.memory_space<vmem>>, %arg12: memref<1x1xf32, #tpu.memory_space<vmem>>, %arg13: memref<12x18xf32, #tpu.memory_space<vmem>>, %arg14: memref<1x18xf32, #tpu.memory_space<vmem>>, %arg15: memref<2x16xf32, #tpu.memory_space<vmem>>, %arg16: memref<16x32xf32, #tpu.memory_space<vmem>>, %arg17: memref<1x32xf32, #tpu.memory_space<vmem>>, %arg18: memref<1x128x8xf32, #tpu.memory_space<vmem>>, %arg19: memref<1x128x4xf32, #tpu.memory_space<vmem>>, %arg20: memref<1x128x1xf32, #tpu.memory_space<vmem>>, %arg21: memref<1x128x32xf32, #tpu.memory_space<vmem>>) attributes {dimension_semantics = [#tpu.dimension_semantics<parallel>], iteration_bounds = array<i64: 2>, scalar_prefetch = 0 : i64, scratch_operands = 0 : i64, tpu.core_type = #tpu.core_type<tc>, window_params = [{transform_indices = @transform_0, window_bounds = array<i64: 1, 128, 32>}, {transform_indices = @transform_1, window_bounds = array<i64: 1, 128, 128>}, {transform_indices = @transform_2, window_bounds = array<i64: 1, 128, 4>}, {pipeline_mode = #tpu.pipeline_mode<synchronous>, transform_indices = @transform_3, window_bounds = array<i64: 32, 18>}, {pipeline_mode = #tpu.pipeline_mode<synchronous>, transform_indices = @transform_4, window_bounds = array<i64: 1, 18>}, {pipeline_mode = #tpu.pipeline_mode<synchronous>, transform_indices = @transform_5, window_bounds = array<i64: 2, 16>}, {pipeline_mode = #tpu.pipeline_mode<synchronous>, transform_indices = @transform_6, window_bounds = array<i64: 16, 8>}, {pipeline_mode = #tpu.pipeline_mode<synchronous>, transform_indices = @transform_7, window_bounds = array<i64: 1, 8>}, {pipeline_mode = #tpu.pipeline_mode<synchronous>, transform_indices = @transform_8, window_bounds = array<i64: 8, 4>}, {pipeline_mode = #tpu.pipeline_mode<synchronous>, transform_indices = @transform_9, window_bounds = array<i64: 1, 4>}, {pipeline_mode = #tpu.pipeline_mode<synchronous>, transform_indices = @transform_10, window_bounds = array<i64: 12, 1>}, {pipeline_mode = #tpu.pipeline_mode<synchronous>, transform_indices = @transform_11, window_bounds = array<i64: 1, 1>}, {pipeline_mode = #tpu.pipeline_mode<synchronous>, transform_indices = @transform_12, window_bounds = array<i64: 12, 18>}, {pipeline_mode = #tpu.pipeline_mode<synchronous>, transform_indices = @transform_13, window_bounds = array<i64: 1, 18>}, {pipeline_mode = #tpu.pipeline_mode<synchronous>, transform_indices = @transform_14, window_bounds = array<i64: 2, 16>}, {pipeline_mode = #tpu.pipeline_mode<synchronous>, transform_indices = @transform_15, window_bounds = array<i64: 16, 32>}, {pipeline_mode = #tpu.pipeline_mode<synchronous>, transform_indices = @transform_16, window_bounds = array<i64: 1, 32>}, {transform_indices = @transform_17, window_bounds = array<i64: 1, 128, 8>}, {transform_indices = @transform_18, window_bounds = array<i64: 1, 128, 4>}, {transform_indices = @transform_19, window_bounds = array<i64: 1, 128, 1>}, {transform_indices = @transform_20, window_bounds = array<i64: 1, 128, 32>}]} {
    %c0 = arith.constant 0 : index
    %c0_0 = arith.constant 0 : index
    %c0_1 = arith.constant 0 : index
    %0 = vector.load %arg1[%c0, %c0_0, %c0_1] : memref<1x128x32xf32, #tpu.memory_space<vmem>>, vector<1x128x32xf32>
    %1 = vector.shape_cast %0 : vector<1x128x32xf32> to vector<128x32xf32>
    %c0_2 = arith.constant 0 : index
    %c0_3 = arith.constant 0 : index
    %c0_4 = arith.constant 0 : index
    %2 = vector.load %arg2[%c0_2, %c0_3, %c0_4] : memref<1x128x128xf32, #tpu.memory_space<vmem>>, vector<1x128x128xf32>
    %3 = vector.shape_cast %2 : vector<1x128x128xf32> to vector<128x128xf32>
    %c0_5 = arith.constant 0 : index
    %c0_6 = arith.constant 0 : index
    %c0_7 = arith.constant 0 : index
    %4 = vector.load %arg3[%c0_5, %c0_6, %c0_7] : memref<1x128x4xf32, #tpu.memory_space<vmem>>, vector<1x128x4xf32>
    %5 = vector.shape_cast %4 : vector<1x128x4xf32> to vector<128x4xf32>
    %c0_8 = arith.constant 0 : index
    %c0_9 = arith.constant 0 : index
    %6 = vector.load %arg4[%c0_8, %c0_9] : memref<32x18xf32, #tpu.memory_space<vmem>>, vector<32x18xf32>
    %cst = arith.constant dense<0.000000e+00> : vector<128x18xf32>
    %7 = tpu.matmul %1, %6, %cst {dimension_numbers = #tpu.dot_dimension_numbers<[1], [0], [0], [1], [0, 0, 1, 1], [], []>} : vector<128x32xf32>, vector<32x18xf32>, vector<128x18xf32> -> vector<128x18xf32>
    %c0_10 = arith.constant 0 : index
    %c0_11 = arith.constant 0 : index
    %8 = vector.load %arg5[%c0_10, %c0_11] : memref<1x18xf32, #tpu.memory_space<vmem>>, vector<1x18xf32>
    %9 = vector.broadcast %8 : vector<1x18xf32> to vector<128x18xf32>
    %10 = arith.addf %7, %9 : vector<128x18xf32>
    %c0_12 = arith.constant 0 : index
    %c0_13 = arith.constant 0 : index
    %11 = vector.load %arg6[%c0_12, %c0_13] : memref<2x16xf32, #tpu.memory_space<vmem>>, vector<2x16xf32>
    %c0_14 = arith.constant 0 : index
    %c0_15 = arith.constant 0 : index
    %12 = vector.load %arg7[%c0_14, %c0_15] : memref<16x8xf32, #tpu.memory_space<vmem>>, vector<16x8xf32>
    %c0_16 = arith.constant 0 : index
    %c0_17 = arith.constant 0 : index
    %13 = vector.load %arg8[%c0_16, %c0_17] : memref<1x8xf32, #tpu.memory_space<vmem>>, vector<1x8xf32>
    %14 = vector.extract_strided_slice %10 {offsets = [0, 0], sizes = [128, 16], strides = [1, 1]} : vector<128x18xf32> to vector<128x16xf32>
    %15 = vector.extract_strided_slice %10 {offsets = [0, 16], sizes = [128, 2], strides = [1, 1]} : vector<128x18xf32> to vector<128x2xf32>
    %cst_18 = arith.constant dense<0.000000e+00> : vector<2x128xf32>
    %16 = tpu.matmul %11, %14, %cst_18 {dimension_numbers = #tpu.dot_dimension_numbers<[1], [1], [0], [0], [0, 0, 1, 0], [], []>} : vector<2x16xf32>, vector<128x16xf32>, vector<2x128xf32> -> vector<2x128xf32>
    %17 = vector.extract_strided_slice %15 {offsets = [0, 0], sizes = [128, 1], strides = [1, 1]} : vector<128x2xf32> to vector<128x1xf32>
    %18 = vector.extract_strided_slice %16 {offsets = [0, 0], sizes = [1, 128], strides = [1, 1]} : vector<2x128xf32> to vector<1x128xf32>
    %19 = vector.broadcast %17 : vector<128x1xf32> to vector<128x128xf32>
    %20 = vector.broadcast %18 : vector<1x128xf32> to vector<128x128xf32>
    %21 = arith.addf %19, %20 : vector<128x128xf32>
    %22 = arith.mulf %3, %21 : vector<128x128xf32>
    %cst_19 = arith.constant 0.000000e+00 : f32
    %23 = vector.broadcast %cst_19 : f32 to vector<128x128xf32>
    %24 = arith.cmpf one, %22, %23 : vector<128x128xf32>
    %cst_20 = arith.constant 5.000000e-01 : f32
    %25 = vector.broadcast %cst_20 : f32 to vector<128x128xf32>
    %26 = arith.mulf %25, %22 : vector<128x128xf32>
    %27 = math.tanh %26 : vector<128x128xf32>
    %cst_21 = arith.constant 5.000000e-01 : f32
    %28 = vector.broadcast %cst_21 : f32 to vector<128x128xf32>
    %29 = arith.mulf %28, %27 : vector<128x128xf32>
    %30 = math.exp %29 : vector<128x128xf32>
    %cst_22 = arith.constant 0.000000e+00 : f32
    %31 = vector.broadcast %cst_22 : f32 to vector<128x128xf32>
    %32 = arith.select %24, %30, %31 : vector<128x128xi1>, vector<128x128xf32>
    %cst_23 = arith.constant dense<0.000000e+00> : vector<128xf32>
    %33 = vector.multi_reduction <add>, %32, %cst_23 [1] : vector<128x128xf32> to vector<128xf32>
    %34 = vector.shape_cast %33 : vector<128xf32> to vector<128x1xf32>
    %35 = tpu.reciprocal %34 {approx = true} : vector<128x1xf32> -> vector<128x1xf32>
    %36 = vector.broadcast %35 : vector<128x1xf32> to vector<128x128xf32>
    %37 = arith.mulf %32, %36 : vector<128x128xf32>
    %cst_24 = arith.constant 0.000000e+00 : f32
    %38 = vector.broadcast %cst_24 : f32 to vector<128x128xf32>
    %39 = arith.select %24, %37, %38 : vector<128x128xi1>, vector<128x128xf32>
    %40 = vector.extract_strided_slice %14 {offsets = [0, 0], sizes = [128, 8], strides = [1, 1]} : vector<128x16xf32> to vector<128x8xf32>
    %cst_25 = arith.constant dense<0.000000e+00> : vector<128x8xf32>
    %41 = tpu.matmul %39, %40, %cst_25 {dimension_numbers = #tpu.dot_dimension_numbers<[1], [0], [0], [1], [0, 0, 1, 1], [], []>} : vector<128x128xf32>, vector<128x8xf32>, vector<128x8xf32> -> vector<128x8xf32>
    %42 = vector.extract_strided_slice %15 {offsets = [0, 1], sizes = [128, 1], strides = [1, 1]} : vector<128x2xf32> to vector<128x1xf32>
    %43 = vector.extract_strided_slice %16 {offsets = [1, 0], sizes = [1, 128], strides = [1, 1]} : vector<2x128xf32> to vector<1x128xf32>
    %44 = vector.broadcast %42 : vector<128x1xf32> to vector<128x128xf32>
    %45 = vector.broadcast %43 : vector<1x128xf32> to vector<128x128xf32>
    %46 = arith.addf %44, %45 : vector<128x128xf32>
    %47 = arith.mulf %3, %46 : vector<128x128xf32>
    %cst_26 = arith.constant 0.000000e+00 : f32
    %48 = vector.broadcast %cst_26 : f32 to vector<128x128xf32>
    %49 = arith.cmpf one, %47, %48 : vector<128x128xf32>
    %cst_27 = arith.constant 5.000000e-01 : f32
    %50 = vector.broadcast %cst_27 : f32 to vector<128x128xf32>
    %51 = arith.mulf %50, %47 : vector<128x128xf32>
    %52 = math.tanh %51 : vector<128x128xf32>
    %cst_28 = arith.constant 5.000000e-01 : f32
    %53 = vector.broadcast %cst_28 : f32 to vector<128x128xf32>
    %54 = arith.mulf %53, %52 : vector<128x128xf32>
    %55 = math.exp %54 : vector<128x128xf32>
    %cst_29 = arith.constant 0.000000e+00 : f32
    %56 = vector.broadcast %cst_29 : f32 to vector<128x128xf32>
    %57 = arith.select %49, %55, %56 : vector<128x128xi1>, vector<128x128xf32>
    %cst_30 = arith.constant dense<0.000000e+00> : vector<128xf32>
    %58 = vector.multi_reduction <add>, %57, %cst_30 [1] : vector<128x128xf32> to vector<128xf32>
    %59 = vector.shape_cast %58 : vector<128xf32> to vector<128x1xf32>
    %60 = tpu.reciprocal %59 {approx = true} : vector<128x1xf32> -> vector<128x1xf32>
    %61 = vector.broadcast %60 : vector<128x1xf32> to vector<128x128xf32>
    %62 = arith.mulf %57, %61 : vector<128x128xf32>
    %cst_31 = arith.constant 0.000000e+00 : f32
    %63 = vector.broadcast %cst_31 : f32 to vector<128x128xf32>
    %64 = arith.select %49, %62, %63 : vector<128x128xi1>, vector<128x128xf32>
    %65 = vector.extract_strided_slice %14 {offsets = [0, 8], sizes = [128, 8], strides = [1, 1]} : vector<128x16xf32> to vector<128x8xf32>
    %cst_32 = arith.constant dense<0.000000e+00> : vector<128x8xf32>
    %66 = tpu.matmul %64, %65, %cst_32 {dimension_numbers = #tpu.dot_dimension_numbers<[1], [0], [0], [1], [0, 0, 1, 1], [], []>} : vector<128x128xf32>, vector<128x8xf32>, vector<128x8xf32> -> vector<128x8xf32>
    %cst_33 = arith.constant 0.000000e+00 : f32
    %67 = vector.broadcast %cst_33 : f32 to vector<128x8xf32>
    %68 = arith.cmpf ogt, %41, %67 : vector<128x8xf32>
    %cst_34 = arith.constant 0.000000e+00 : f32
    %69 = vector.broadcast %cst_34 : f32 to vector<128x8xf32>
    %70 = arith.minimumf %41, %69 : vector<128x8xf32>
    %71 = math.exp %70 : vector<128x8xf32>
    %cst_35 = arith.constant 1.000000e+00 : f32
    %72 = vector.broadcast %cst_35 : f32 to vector<128x8xf32>
    %73 = arith.subf %71, %72 : vector<128x8xf32>
    %74 = arith.select %68, %41, %73 : vector<128x8xi1>, vector<128x8xf32>
    %75 = vector.extract_strided_slice %12 {offsets = [0, 0], sizes = [8, 8], strides = [1, 1]} : vector<16x8xf32> to vector<8x8xf32>
    %cst_36 = arith.constant dense<0.000000e+00> : vector<128x8xf32>
    %76 = tpu.matmul %74, %75, %cst_36 {dimension_numbers = #tpu.dot_dimension_numbers<[1], [0], [0], [1], [0, 0, 1, 1], [], []>} : vector<128x8xf32>, vector<8x8xf32>, vector<128x8xf32> -> vector<128x8xf32>
    %cst_37 = arith.constant 0.000000e+00 : f32
    %77 = vector.broadcast %cst_37 : f32 to vector<128x8xf32>
    %78 = arith.cmpf ogt, %66, %77 : vector<128x8xf32>
    %cst_38 = arith.constant 0.000000e+00 : f32
    %79 = vector.broadcast %cst_38 : f32 to vector<128x8xf32>
    %80 = arith.minimumf %66, %79 : vector<128x8xf32>
    %81 = math.exp %80 : vector<128x8xf32>
    %cst_39 = arith.constant 1.000000e+00 : f32
    %82 = vector.broadcast %cst_39 : f32 to vector<128x8xf32>
    %83 = arith.subf %81, %82 : vector<128x8xf32>
    %84 = arith.select %78, %66, %83 : vector<128x8xi1>, vector<128x8xf32>
    %85 = vector.extract_strided_slice %12 {offsets = [8, 0], sizes = [8, 8], strides = [1, 1]} : vector<16x8xf32> to vector<8x8xf32>
    %cst_40 = arith.constant dense<0.000000e+00> : vector<128x8xf32>
    %86 = tpu.matmul %84, %85, %cst_40 {dimension_numbers = #tpu.dot_dimension_numbers<[1], [0], [0], [1], [0, 0, 1, 1], [], []>} : vector<128x8xf32>, vector<8x8xf32>, vector<128x8xf32> -> vector<128x8xf32>
    %87 = arith.addf %76, %86 : vector<128x8xf32>
    %88 = vector.broadcast %13 : vector<1x8xf32> to vector<128x8xf32>
    %89 = arith.addf %87, %88 : vector<128x8xf32>
    %c0_41 = arith.constant 0 : index
    %c0_42 = arith.constant 0 : index
    %c0_43 = arith.constant 0 : index
    %90 = vector.load %arg18[%c0_41, %c0_42, %c0_43] : memref<1x128x8xf32, #tpu.memory_space<vmem>>, vector<1x128x8xf32>
    %91 = vector.shape_cast %90 : vector<1x128x8xf32> to vector<128x8xf32>
    %92 = vector.shape_cast %89 : vector<128x8xf32> to vector<1x128x8xf32>
    tpu.vector_store %arg18[%c0_41, %c0_42, %c0_43], %92 {strides = array<i32>} : memref<1x128x8xf32, #tpu.memory_space<vmem>>, vector<1x128x8xf32>,
    %cst_44 = arith.constant 0.000000e+00 : f32
    %93 = vector.broadcast %cst_44 : f32 to vector<128x8xf32>
    %94 = arith.cmpf ogt, %89, %93 : vector<128x8xf32>
    %cst_45 = arith.constant 0.000000e+00 : f32
    %95 = vector.broadcast %cst_45 : f32 to vector<128x8xf32>
    %96 = arith.minimumf %89, %95 : vector<128x8xf32>
    %97 = math.exp %96 : vector<128x8xf32>
    %cst_46 = arith.constant 1.000000e+00 : f32
    %98 = vector.broadcast %cst_46 : f32 to vector<128x8xf32>
    %99 = arith.subf %97, %98 : vector<128x8xf32>
    %100 = arith.select %94, %89, %99 : vector<128x8xi1>, vector<128x8xf32>
    %c0_47 = arith.constant 0 : index
    %c0_48 = arith.constant 0 : index
    %101 = vector.load %arg9[%c0_47, %c0_48] : memref<8x4xf32, #tpu.memory_space<vmem>>, vector<8x4xf32>
    %cst_49 = arith.constant dense<0.000000e+00> : vector<128x4xf32>
    %102 = tpu.matmul %100, %101, %cst_49 {dimension_numbers = #tpu.dot_dimension_numbers<[1], [0], [0], [1], [0, 0, 1, 1], [], []>} : vector<128x8xf32>, vector<8x4xf32>, vector<128x4xf32> -> vector<128x4xf32>
    %c0_50 = arith.constant 0 : index
    %c0_51 = arith.constant 0 : index
    %103 = vector.load %arg10[%c0_50, %c0_51] : memref<1x4xf32, #tpu.memory_space<vmem>>, vector<1x4xf32>
    %104 = vector.broadcast %103 : vector<1x4xf32> to vector<128x4xf32>
    %105 = arith.addf %102, %104 : vector<128x4xf32>
    %cst_52 = arith.constant dense<0xFF800000> : vector<128xf32>
    %106 = vector.multi_reduction <maximumf>, %105, %cst_52 [1] : vector<128x4xf32> to vector<128xf32>
    %107 = vector.shape_cast %106 : vector<128xf32> to vector<128x1xf32>
    %108 = vector.broadcast %107 : vector<128x1xf32> to vector<128x4xf32>
    %109 = arith.subf %105, %108 : vector<128x4xf32>
    %110 = math.exp %109 : vector<128x4xf32>
    %cst_53 = arith.constant dense<0.000000e+00> : vector<128xf32>
    %111 = vector.multi_reduction <add>, %110, %cst_53 [1] : vector<128x4xf32> to vector<128xf32>
    %112 = vector.shape_cast %111 : vector<128xf32> to vector<128x1xf32>
    %113 = tpu.reciprocal %112 {approx = true} : vector<128x1xf32> -> vector<128x1xf32>
    %114 = vector.broadcast %113 : vector<128x1xf32> to vector<128x4xf32>
    %115 = arith.mulf %110, %114 : vector<128x4xf32>
    %c0_54 = arith.constant 0 : index
    %c0_55 = arith.constant 0 : index
    %c0_56 = arith.constant 0 : index
    %116 = vector.load %arg19[%c0_54, %c0_55, %c0_56] : memref<1x128x4xf32, #tpu.memory_space<vmem>>, vector<1x128x4xf32>
    %117 = vector.shape_cast %116 : vector<1x128x4xf32> to vector<128x4xf32>
    %118 = vector.shape_cast %115 : vector<128x4xf32> to vector<1x128x4xf32>
    tpu.vector_store %arg19[%c0_54, %c0_55, %c0_56], %118 {strides = array<i32>} : memref<1x128x4xf32, #tpu.memory_space<vmem>>, vector<1x128x4xf32>,
    %cst_57 = arith.constant 0.000000e+00 : f32
    %119 = vector.broadcast %cst_57 : f32 to vector<128x4xf32>
    %120 = arith.cmpf ogt, %5, %119 : vector<128x4xf32>
    %cst_58 = arith.constant 0.000000e+00 : f32
    %121 = vector.broadcast %cst_58 : f32 to vector<128x4xf32>
    %122 = arith.minimumf %5, %121 : vector<128x4xf32>
    %123 = math.exp %122 : vector<128x4xf32>
    %cst_59 = arith.constant 1.000000e+00 : f32
    %124 = vector.broadcast %cst_59 : f32 to vector<128x4xf32>
    %125 = arith.subf %123, %124 : vector<128x4xf32>
    %126 = arith.select %120, %5, %125 : vector<128x4xi1>, vector<128x4xf32>
    %c0_60 = arith.constant 0 : index
    %c0_61 = arith.constant 0 : index
    %127 = vector.load %arg11[%c0_60, %c0_61] : memref<12x1xf32, #tpu.memory_space<vmem>>, vector<12x1xf32>
    %128 = vector.extract_strided_slice %127 {offsets = [0, 0], sizes = [8, 1], strides = [1, 1]} : vector<12x1xf32> to vector<8x1xf32>
    %cst_62 = arith.constant dense<0.000000e+00> : vector<128x1xf32>
    %129 = tpu.matmul %100, %128, %cst_62 {dimension_numbers = #tpu.dot_dimension_numbers<[1], [0], [0], [1], [0, 0, 1, 1], [], []>} : vector<128x8xf32>, vector<8x1xf32>, vector<128x1xf32> -> vector<128x1xf32>
    %130 = vector.extract_strided_slice %127 {offsets = [8, 0], sizes = [4, 1], strides = [1, 1]} : vector<12x1xf32> to vector<4x1xf32>
    %cst_63 = arith.constant dense<0.000000e+00> : vector<128x1xf32>
    %131 = tpu.matmul %126, %130, %cst_63 {dimension_numbers = #tpu.dot_dimension_numbers<[1], [0], [0], [1], [0, 0, 1, 1], [], []>} : vector<128x4xf32>, vector<4x1xf32>, vector<128x1xf32> -> vector<128x1xf32>
    %132 = arith.addf %129, %131 : vector<128x1xf32>
    %c0_64 = arith.constant 0 : index
    %c0_65 = arith.constant 0 : index
    %133 = vector.load %arg12[%c0_64, %c0_65] : memref<1x1xf32, #tpu.memory_space<vmem>>, vector<1x1xf32>
    %134 = vector.broadcast %133 : vector<1x1xf32> to vector<128x1xf32>
    %135 = arith.addf %132, %134 : vector<128x1xf32>
    %cst_66 = arith.constant -1.000000e-01 : f32
    %cst_67 = arith.constant 1.000000e-01 : f32
    %136 = vector.broadcast %cst_66 : f32 to vector<128x1xf32>
    %137 = arith.maximumf %136, %135 : vector<128x1xf32>
    %138 = vector.broadcast %cst_67 : f32 to vector<128x1xf32>
    %139 = arith.minimumf %138, %137 : vector<128x1xf32>
    %c0_68 = arith.constant 0 : index
    %c0_69 = arith.constant 0 : index
    %c0_70 = arith.constant 0 : index
    %140 = vector.load %arg20[%c0_68, %c0_69, %c0_70] : memref<1x128x1xf32, #tpu.memory_space<vmem>>, vector<1x128x1xf32>
    %141 = vector.shape_cast %140 : vector<1x128x1xf32> to vector<128x1xf32>
    %142 = vector.shape_cast %139 : vector<128x1xf32> to vector<1x128x1xf32>
    tpu.vector_store %arg20[%c0_68, %c0_69, %c0_70], %142 {strides = array<i32>} : memref<1x128x1xf32, #tpu.memory_space<vmem>>, vector<1x128x1xf32>,
    %c0_71 = arith.constant 0 : index
    %c0_72 = arith.constant 0 : index
    %143 = vector.load %arg13[%c0_71, %c0_72] : memref<12x18xf32, #tpu.memory_space<vmem>>, vector<12x18xf32>
    %144 = vector.extract_strided_slice %143 {offsets = [0, 0], sizes = [8, 18], strides = [1, 1]} : vector<12x18xf32> to vector<8x18xf32>
    %cst_73 = arith.constant dense<0.000000e+00> : vector<128x18xf32>
    %145 = tpu.matmul %89, %144, %cst_73 {dimension_numbers = #tpu.dot_dimension_numbers<[1], [0], [0], [1], [0, 0, 1, 1], [], []>} : vector<128x8xf32>, vector<8x18xf32>, vector<128x18xf32> -> vector<128x18xf32>
    %146 = vector.extract_strided_slice %143 {offsets = [8, 0], sizes = [4, 18], strides = [1, 1]} : vector<12x18xf32> to vector<4x18xf32>
    %cst_74 = arith.constant dense<0.000000e+00> : vector<128x18xf32>
    %147 = tpu.matmul %5, %146, %cst_74 {dimension_numbers = #tpu.dot_dimension_numbers<[1], [0], [0], [1], [0, 0, 1, 1], [], []>} : vector<128x4xf32>, vector<4x18xf32>, vector<128x18xf32> -> vector<128x18xf32>
    %148 = arith.addf %145, %147 : vector<128x18xf32>
    %c0_75 = arith.constant 0 : index
    %c0_76 = arith.constant 0 : index
    %149 = vector.load %arg14[%c0_75, %c0_76] : memref<1x18xf32, #tpu.memory_space<vmem>>, vector<1x18xf32>
    %150 = vector.broadcast %149 : vector<1x18xf32> to vector<128x18xf32>
    %151 = arith.addf %148, %150 : vector<128x18xf32>
    %c0_77 = arith.constant 0 : index
    %c0_78 = arith.constant 0 : index
    %152 = vector.load %arg15[%c0_77, %c0_78] : memref<2x16xf32, #tpu.memory_space<vmem>>, vector<2x16xf32>
    %c0_79 = arith.constant 0 : index
    %c0_80 = arith.constant 0 : index
    %153 = vector.load %arg16[%c0_79, %c0_80] : memref<16x32xf32, #tpu.memory_space<vmem>>, vector<16x32xf32>
    %c0_81 = arith.constant 0 : index
    %c0_82 = arith.constant 0 : index
    %154 = vector.load %arg17[%c0_81, %c0_82] : memref<1x32xf32, #tpu.memory_space<vmem>>, vector<1x32xf32>
    %155 = vector.extract_strided_slice %151 {offsets = [0, 0], sizes = [128, 16], strides = [1, 1]} : vector<128x18xf32> to vector<128x16xf32>
    %156 = vector.extract_strided_slice %151 {offsets = [0, 16], sizes = [128, 2], strides = [1, 1]} : vector<128x18xf32> to vector<128x2xf32>
    %cst_83 = arith.constant dense<0.000000e+00> : vector<2x128xf32>
    %157 = tpu.matmul %152, %155, %cst_83 {dimension_numbers = #tpu.dot_dimension_numbers<[1], [1], [0], [0], [0, 0, 1, 0], [], []>} : vector<2x16xf32>, vector<128x16xf32>, vector<2x128xf32> -> vector<2x128xf32>
    %158 = vector.extract_strided_slice %156 {offsets = [0, 0], sizes = [128, 1], strides = [1, 1]} : vector<128x2xf32> to vector<128x1xf32>
    %159 = vector.extract_strided_slice %157 {offsets = [0, 0], sizes = [1, 128], strides = [1, 1]} : vector<2x128xf32> to vector<1x128xf32>
    %160 = vector.broadcast %158 : vector<128x1xf32> to vector<128x128xf32>
    %161 = vector.broadcast %159 : vector<1x128xf32> to vector<128x128xf32>
    %162 = arith.addf %160, %161 : vector<128x128xf32>
    %163 = arith.mulf %3, %162 : vector<128x128xf32>
    %cst_84 = arith.constant 0.000000e+00 : f32
    %164 = vector.broadcast %cst_84 : f32 to vector<128x128xf32>
    %165 = arith.cmpf one, %163, %164 : vector<128x128xf32>
    %cst_85 = arith.constant 5.000000e-01 : f32
    %166 = vector.broadcast %cst_85 : f32 to vector<128x128xf32>
    %167 = arith.mulf %166, %163 : vector<128x128xf32>
    %168 = math.tanh %167 : vector<128x128xf32>
    %cst_86 = arith.constant 5.000000e-01 : f32
    %169 = vector.broadcast %cst_86 : f32 to vector<128x128xf32>
    %170 = arith.mulf %169, %168 : vector<128x128xf32>
    %171 = math.exp %170 : vector<128x128xf32>
    %cst_87 = arith.constant 0.000000e+00 : f32
    %172 = vector.broadcast %cst_87 : f32 to vector<128x128xf32>
    %173 = arith.select %165, %171, %172 : vector<128x128xi1>, vector<128x128xf32>
    %cst_88 = arith.constant dense<0.000000e+00> : vector<128xf32>
    %174 = vector.multi_reduction <add>, %173, %cst_88 [1] : vector<128x128xf32> to vector<128xf32>
    %175 = vector.shape_cast %174 : vector<128xf32> to vector<128x1xf32>
    %176 = tpu.reciprocal %175 {approx = true} : vector<128x1xf32> -> vector<128x1xf32>
    %177 = vector.broadcast %176 : vector<128x1xf32> to vector<128x128xf32>
    %178 = arith.mulf %173, %177 : vector<128x128xf32>
    %cst_89 = arith.constant 0.000000e+00 : f32
    %179 = vector.broadcast %cst_89 : f32 to vector<128x128xf32>
    %180 = arith.select %165, %178, %179 : vector<128x128xi1>, vector<128x128xf32>
    %181 = vector.extract_strided_slice %155 {offsets = [0, 0], sizes = [128, 8], strides = [1, 1]} : vector<128x16xf32> to vector<128x8xf32>
    %cst_90 = arith.constant dense<0.000000e+00> : vector<128x8xf32>
    %182 = tpu.matmul %180, %181, %cst_90 {dimension_numbers = #tpu.dot_dimension_numbers<[1], [0], [0], [1], [0, 0, 1, 1], [], []>} : vector<128x128xf32>, vector<128x8xf32>, vector<128x8xf32> -> vector<128x8xf32>
    %183 = vector.extract_strided_slice %156 {offsets = [0, 1], sizes = [128, 1], strides = [1, 1]} : vector<128x2xf32> to vector<128x1xf32>
    %184 = vector.extract_strided_slice %157 {offsets = [1, 0], sizes = [1, 128], strides = [1, 1]} : vector<2x128xf32> to vector<1x128xf32>
    %185 = vector.broadcast %183 : vector<128x1xf32> to vector<128x128xf32>
    %186 = vector.broadcast %184 : vector<1x128xf32> to vector<128x128xf32>
    %187 = arith.addf %185, %186 : vector<128x128xf32>
    %188 = arith.mulf %3, %187 : vector<128x128xf32>
    %cst_91 = arith.constant 0.000000e+00 : f32
    %189 = vector.broadcast %cst_91 : f32 to vector<128x128xf32>
    %190 = arith.cmpf one, %188, %189 : vector<128x128xf32>
    %cst_92 = arith.constant 5.000000e-01 : f32
    %191 = vector.broadcast %cst_92 : f32 to vector<128x128xf32>
    %192 = arith.mulf %191, %188 : vector<128x128xf32>
    %193 = math.tanh %192 : vector<128x128xf32>
    %cst_93 = arith.constant 5.000000e-01 : f32
    %194 = vector.broadcast %cst_93 : f32 to vector<128x128xf32>
    %195 = arith.mulf %194, %193 : vector<128x128xf32>
    %196 = math.exp %195 : vector<128x128xf32>
    %cst_94 = arith.constant 0.000000e+00 : f32
    %197 = vector.broadcast %cst_94 : f32 to vector<128x128xf32>
    %198 = arith.select %190, %196, %197 : vector<128x128xi1>, vector<128x128xf32>
    %cst_95 = arith.constant dense<0.000000e+00> : vector<128xf32>
    %199 = vector.multi_reduction <add>, %198, %cst_95 [1] : vector<128x128xf32> to vector<128xf32>
    %200 = vector.shape_cast %199 : vector<128xf32> to vector<128x1xf32>
    %201 = tpu.reciprocal %200 {approx = true} : vector<128x1xf32> -> vector<128x1xf32>
    %202 = vector.broadcast %201 : vector<128x1xf32> to vector<128x128xf32>
    %203 = arith.mulf %198, %202 : vector<128x128xf32>
    %cst_96 = arith.constant 0.000000e+00 : f32
    %204 = vector.broadcast %cst_96 : f32 to vector<128x128xf32>
    %205 = arith.select %190, %203, %204 : vector<128x128xi1>, vector<128x128xf32>
    %206 = vector.extract_strided_slice %155 {offsets = [0, 8], sizes = [128, 8], strides = [1, 1]} : vector<128x16xf32> to vector<128x8xf32>
    %cst_97 = arith.constant dense<0.000000e+00> : vector<128x8xf32>
    %207 = tpu.matmul %205, %206, %cst_97 {dimension_numbers = #tpu.dot_dimension_numbers<[1], [0], [0], [1], [0, 0, 1, 1], [], []>} : vector<128x128xf32>, vector<128x8xf32>, vector<128x8xf32> -> vector<128x8xf32>
    %cst_98 = arith.constant 0.000000e+00 : f32
    %208 = vector.broadcast %cst_98 : f32 to vector<128x8xf32>
    %209 = arith.cmpf ogt, %182, %208 : vector<128x8xf32>
    %cst_99 = arith.constant 0.000000e+00 : f32
    %210 = vector.broadcast %cst_99 : f32 to vector<128x8xf32>
    %211 = arith.minimumf %182, %210 : vector<128x8xf32>
    %212 = math.exp %211 : vector<128x8xf32>
    %cst_100 = arith.constant 1.000000e+00 : f32
    %213 = vector.broadcast %cst_100 : f32 to vector<128x8xf32>
    %214 = arith.subf %212, %213 : vector<128x8xf32>
    %215 = arith.select %209, %182, %214 : vector<128x8xi1>, vector<128x8xf32>
    %216 = vector.extract_strided_slice %153 {offsets = [0, 0], sizes = [8, 32], strides = [1, 1]} : vector<16x32xf32> to vector<8x32xf32>
    %cst_101 = arith.constant dense<0.000000e+00> : vector<128x32xf32>
    %217 = tpu.matmul %215, %216, %cst_101 {dimension_numbers = #tpu.dot_dimension_numbers<[1], [0], [0], [1], [0, 0, 1, 1], [], []>} : vector<128x8xf32>, vector<8x32xf32>, vector<128x32xf32> -> vector<128x32xf32>
    %cst_102 = arith.constant 0.000000e+00 : f32
    %218 = vector.broadcast %cst_102 : f32 to vector<128x8xf32>
    %219 = arith.cmpf ogt, %207, %218 : vector<128x8xf32>
    %cst_103 = arith.constant 0.000000e+00 : f32
    %220 = vector.broadcast %cst_103 : f32 to vector<128x8xf32>
    %221 = arith.minimumf %207, %220 : vector<128x8xf32>
    %222 = math.exp %221 : vector<128x8xf32>
    %cst_104 = arith.constant 1.000000e+00 : f32
    %223 = vector.broadcast %cst_104 : f32 to vector<128x8xf32>
    %224 = arith.subf %222, %223 : vector<128x8xf32>
    %225 = arith.select %219, %207, %224 : vector<128x8xi1>, vector<128x8xf32>
    %226 = vector.extract_strided_slice %153 {offsets = [8, 0], sizes = [8, 32], strides = [1, 1]} : vector<16x32xf32> to vector<8x32xf32>
    %cst_105 = arith.constant dense<0.000000e+00> : vector<128x32xf32>
    %227 = tpu.matmul %225, %226, %cst_105 {dimension_numbers = #tpu.dot_dimension_numbers<[1], [0], [0], [1], [0, 0, 1, 1], [], []>} : vector<128x8xf32>, vector<8x32xf32>, vector<128x32xf32> -> vector<128x32xf32>
    %228 = arith.addf %217, %227 : vector<128x32xf32>
    %229 = vector.broadcast %154 : vector<1x32xf32> to vector<128x32xf32>
    %230 = arith.addf %228, %229 : vector<128x32xf32>
    %c0_106 = arith.constant 0 : index
    %c0_107 = arith.constant 0 : index
    %c0_108 = arith.constant 0 : index
    %231 = vector.load %arg21[%c0_106, %c0_107, %c0_108] : memref<1x128x32xf32, #tpu.memory_space<vmem>>, vector<1x128x32xf32>
    %232 = vector.shape_cast %231 : vector<1x128x32xf32> to vector<128x32xf32>
    %233 = vector.shape_cast %230 : vector<128x32xf32> to vector<1x128x32xf32>
    tpu.vector_store %arg21[%c0_106, %c0_107, %c0_108], %233 {strides = array<i32>} : memref<1x128x32xf32, #tpu.memory_space<vmem>>, vector<1x128x32xf32>,
    return
  }
  func.func @transform_0(%arg0: i32) -> (i32, i32, i32) {
    %c0_i32 = arith.constant 0 : i32
    %c0_i32_0 = arith.constant 0 : i32
    %c0_i32_1 = arith.constant 0 : i32
    return %arg0, %c0_i32, %c0_i32_0 : i32, i32, i32
  }
  func.func @transform_1(%arg0: i32) -> (i32, i32, i32) {
    %c0_i32 = arith.constant 0 : i32
    %c0_i32_0 = arith.constant 0 : i32
    %c0_i32_1 = arith.constant 0 : i32
    return %arg0, %c0_i32, %c0_i32_0 : i32, i32, i32
  }
  func.func @transform_2(%arg0: i32) -> (i32, i32, i32) {
    %c0_i32 = arith.constant 0 : i32
    %c0_i32_0 = arith.constant 0 : i32
    %c0_i32_1 = arith.constant 0 : i32
    return %arg0, %c0_i32, %c0_i32_0 : i32, i32, i32
  }
  func.func @transform_3(%arg0: i32) -> (i32, i32) {
    %c0_i32 = arith.constant 0 : i32
    %c0_i32_0 = arith.constant 0 : i32
    %c0_i32_1 = arith.constant 0 : i32
    return %c0_i32, %c0_i32_0 : i32, i32
  }
  func.func @transform_4(%arg0: i32) -> (i32, i32) {
    %c0_i32 = arith.constant 0 : i32
    %c0_i32_0 = arith.constant 0 : i32
    %c0_i32_1 = arith.constant 0 : i32
    return %c0_i32, %c0_i32_0 : i32, i32
  }
  func.func @transform_5(%arg0: i32) -> (i32, i32) {
    %c0_i32 = arith.constant 0 : i32
    %c0_i32_0 = arith.constant 0 : i32
    %c0_i32_1 = arith.constant 0 : i32
    return %c0_i32, %c0_i32_0 : i32, i32
  }
  func.func @transform_6(%arg0: i32) -> (i32, i32) {
    %c0_i32 = arith.constant 0 : i32
    %c0_i32_0 = arith.constant 0 : i32
    %c0_i32_1 = arith.constant 0 : i32
    return %c0_i32, %c0_i32_0 : i32, i32
  }
  func.func @transform_7(%arg0: i32) -> (i32, i32) {
    %c0_i32 = arith.constant 0 : i32
    %c0_i32_0 = arith.constant 0 : i32
    %c0_i32_1 = arith.constant 0 : i32
    return %c0_i32, %c0_i32_0 : i32, i32
  }
  func.func @transform_8(%arg0: i32) -> (i32, i32) {
    %c0_i32 = arith.constant 0 : i32
    %c0_i32_0 = arith.constant 0 : i32
    %c0_i32_1 = arith.constant 0 : i32
    return %c0_i32, %c0_i32_0 : i32, i32
  }
  func.func @transform_9(%arg0: i32) -> (i32, i32) {
    %c0_i32 = arith.constant 0 : i32
    %c0_i32_0 = arith.constant 0 : i32
    %c0_i32_1 = arith.constant 0 : i32
    return %c0_i32, %c0_i32_0 : i32, i32
  }
  func.func @transform_10(%arg0: i32) -> (i32, i32) {
    %c0_i32 = arith.constant 0 : i32
    %c0_i32_0 = arith.constant 0 : i32
    %c0_i32_1 = arith.constant 0 : i32
    return %c0_i32, %c0_i32_0 : i32, i32
  }
  func.func @transform_11(%arg0: i32) -> (i32, i32) {
    %c0_i32 = arith.constant 0 : i32
    %c0_i32_0 = arith.constant 0 : i32
    %c0_i32_1 = arith.constant 0 : i32
    return %c0_i32, %c0_i32_0 : i32, i32
  }
  func.func @transform_12(%arg0: i32) -> (i32, i32) {
    %c0_i32 = arith.constant 0 : i32
    %c0_i32_0 = arith.constant 0 : i32
    %c0_i32_1 = arith.constant 0 : i32
    return %c0_i32, %c0_i32_0 : i32, i32
  }
  func.func @transform_13(%arg0: i32) -> (i32, i32) {
    %c0_i32 = arith.constant 0 : i32
    %c0_i32_0 = arith.constant 0 : i32
    %c0_i32_1 = arith.constant 0 : i32
    return %c0_i32, %c0_i32_0 : i32, i32
  }
  func.func @transform_14(%arg0: i32) -> (i32, i32) {
    %c0_i32 = arith.constant 0 : i32
    %c0_i32_0 = arith.constant 0 : i32
    %c0_i32_1 = arith.constant 0 : i32
    return %c0_i32, %c0_i32_0 : i32, i32
  }
  func.func @transform_15(%arg0: i32) -> (i32, i32) {
    %c0_i32 = arith.constant 0 : i32
    %c0_i32_0 = arith.constant 0 : i32
    %c0_i32_1 = arith.constant 0 : i32
    return %c0_i32, %c0_i32_0 : i32, i32
  }
  func.func @transform_16(%arg0: i32) -> (i32, i32) {
    %c0_i32 = arith.constant 0 : i32
    %c0_i32_0 = arith.constant 0 : i32
    %c0_i32_1 = arith.constant 0 : i32
    return %c0_i32, %c0_i32_0 : i32, i32
  }
  func.func @transform_17(%arg0: i32) -> (i32, i32, i32) {
    %c0_i32 = arith.constant 0 : i32
    %c0_i32_0 = arith.constant 0 : i32
    %c0_i32_1 = arith.constant 0 : i32
    return %arg0, %c0_i32, %c0_i32_0 : i32, i32, i32
  }
  func.func @transform_18(%arg0: i32) -> (i32, i32, i32) {
    %c0_i32 = arith.constant 0 : i32
    %c0_i32_0 = arith.constant 0 : i32
    %c0_i32_1 = arith.constant 0 : i32
    return %arg0, %c0_i32, %c0_i32_0 : i32, i32, i32
  }
  func.func @transform_19(%arg0: i32) -> (i32, i32, i32) {
    %c0_i32 = arith.constant 0 : i32
    %c0_i32_0 = arith.constant 0 : i32
    %c0_i32_1 = arith.constant 0 : i32
    return %arg0, %c0_i32, %c0_i32_0 : i32, i32, i32
  }
  func.func @transform_20(%arg0: i32) -> (i32, i32, i32) {
    %c0_i32 = arith.constant 0 : i32
    %c0_i32_0 = arith.constant 0 : i32
    %c0_i32_1 = arith.constant 0 : i32
    return %arg0, %c0_i32, %c0_i32_0 : i32, i32, i32
  }
}

</mosaic_0001>

<llo_original>
// kernel: tpu_custom_call.1
$region0: #{tpu_custom_call.1}
  #allocation0 [shape = 'u32[]', space=smem, size = 0x4, offset = 0x4, fixed_abs, tag = 'smem constant byte address 0x4 - core index']
  #allocation1 [shape = 'u32[144,128]{1,0:T(1,128)}', space=vmem, size = 0x12000, scoped, tag = 'internal scratch']
  #allocation2 [shape = 'f32[1,1]{1,0:T(1,128)S(1)}', space=vmem, size = 0x200, scoped, tag = 'scoped memory for tpu_custom_call.1']
  %s0 = inlined_call_operand.vmem [shape: f32[2,128,32], index: 0, kind: input, shape index: {}]
  %s1 = inlined_call_operand.vmem [shape: f32[2,128,128], index: 1, kind: input, shape index: {}]
  %s2 = inlined_call_operand.vmem [shape: f32[2,128,4], index: 2, kind: input, shape index: {}]
  %s3 = inlined_call_operand.vmem [shape: f32[32,18], index: 3, kind: input, shape index: {}]
  %s4 = inlined_call_operand.vmem [shape: f32[1,18], index: 4, kind: input, shape index: {}]
  %s5 = inlined_call_operand.vmem [shape: f32[2,16], index: 5, kind: input, shape index: {}]
  %s6 = inlined_call_operand.vmem [shape: f32[16,8], index: 6, kind: input, shape index: {}]
  %s7 = inlined_call_operand.vmem [shape: f32[1,8], index: 7, kind: input, shape index: {}]
  %s8 = inlined_call_operand.vmem [shape: f32[8,4], index: 8, kind: input, shape index: {}]
  %s9 = inlined_call_operand.vmem [shape: f32[1,4], index: 9, kind: input, shape index: {}]
  %s10 = inlined_call_operand.vmem [shape: f32[12,1], index: 10, kind: input, shape index: {}]
  %s11 = inlined_call_operand.<no memory space> [shape: f32[1,1], index: 11, kind: input, shape index: {}]
  %s12 = inlined_call_operand.vmem [shape: f32[12,18], index: 12, kind: input, shape index: {}]
  %s13 = inlined_call_operand.vmem [shape: f32[1,18], index: 13, kind: input, shape index: {}]
  %s14 = inlined_call_operand.vmem [shape: f32[2,16], index: 14, kind: input, shape index: {}]
  %s15 = inlined_call_operand.vmem [shape: f32[16,32], index: 15, kind: input, shape index: {}]
  %s16 = inlined_call_operand.vmem [shape: f32[1,32], index: 16, kind: input, shape index: {}]
  %s17 = inlined_call_operand.vmem [shape: f32[2,128,8], index: 17, kind: output, shape index: {0}]
  %s18 = inlined_call_operand.vmem [shape: f32[2,128,4], index: 18, kind: output, shape index: {1}]
  %s19 = inlined_call_operand.vmem [shape: f32[2,128,1], index: 19, kind: output, shape index: {2}]
  %s20 = inlined_call_operand.vmem [shape: f32[2,128,32], index: 20, kind: output, shape index: {3}]
  %21 = xla_tuple %s17, %s18, %s19, %s20
  %s22 = sld [smem:[#allocation0]]
  $region125: #{tpu_custom_call.1} parent=0
    _
  %s24 = ssub.s32 1, %s22
  %s25 = scalar_select 0, %s24, %s22
  %v26 = vstv %s11
  %27 = vst [vmem:[#allocation2] sm:$0x1] %v26
  loop: start=0, step=1, limit=4
  $region2: #{tpu_custom_call.1} parent=0 // loop_pre_header
    _
  $region3: #{tpu_custom_call.1} parent=0 // loop_header
    %s29 = sphi 0, %s33
    %p30 = scmp.ge.s32.totalorder %s29, 4
    %s39 = sphi 0, %s41
    %s42 = sphi 0, %s39
    %s43 = sphi 0, %s42
    %s59 = sphi 0, %s43
    %s65 = sphi 0, %s67
    %s68 = sphi 0, %s65
    %s69 = sphi 0, %s68
    %s85 = sphi 0, %s69
    %s91 = sphi 0, %s93
    %s94 = sphi 0, %s91
    %s95 = sphi 0, %s94
    %s111 = sphi 0, %s95
    %s115 = sphi 0, %s115
    %s117 = sphi 0, %s115
    %s118 = sphi 0, %s117
    %s132 = sphi 0, %s118
    %s136 = sphi 0, %s136
    %s138 = sphi 0, %s136
    %s139 = sphi 0, %s138
    %s153 = sphi 0, %s139
    %s157 = sphi 0, %s157
    %s159 = sphi 0, %s157
    %s160 = sphi 0, %s159
    %s174 = sphi 0, %s160
    %s178 = sphi 0, %s178
    %s180 = sphi 0, %s178
    %s181 = sphi 0, %s180
    %s195 = sphi 0, %s181
    %s199 = sphi 0, %s199
    %s201 = sphi 0, %s199
    %s202 = sphi 0, %s201
    %s216 = sphi 0, %s202
    %s220 = sphi 0, %s220
    %s222 = sphi 0, %s220
    %s223 = sphi 0, %s222
    %s237 = sphi 0, %s223
    %s241 = sphi 0, %s241
    %s243 = sphi 0, %s241
    %s244 = sphi 0, %s243
    %s258 = sphi 0, %s244
    %s262 = sphi 0, %s262
    %s264 = sphi 0, %s262
    %s265 = sphi 0, %s264
    %s279 = sphi 0, %s265
    %s283 = sphi 0, %s283
    %s285 = sphi 0, %s283
    %s286 = sphi 0, %s285
    %s300 = sphi 0, %s286
    %s304 = sphi 0, %s304
    %s306 = sphi 0, %s304
    %s307 = sphi 0, %s306
    %s321 = sphi 0, %s307
    %s325 = sphi 0, %s325
    %s327 = sphi 0, %s325
    %s328 = sphi 0, %s327
    %s342 = sphi 0, %s328
    %s346 = sphi 0, %s346
    %s348 = sphi 0, %s346
    %s349 = sphi 0, %s348
    %s363 = sphi 0, %s349
    %s367 = sphi 0, %s367
    %s369 = sphi 0, %s367
    %s370 = sphi 0, %s369
    %s384 = sphi 0, %s370
    %s388 = sphi 0, %s388
    %s390 = sphi 0, %s388
    %s391 = sphi 0, %s390
    %s405 = sphi 0, %s391
    %s411 = sphi 0, %s413
    %s414 = sphi 0, %s411
    %s415 = sphi 0, %s414
    %s431 = sphi 0, %s415
    %s437 = sphi 0, %s439
    %s440 = sphi 0, %s437
    %s441 = sphi 0, %s440
    %s457 = sphi 0, %s441
    %s463 = sphi 0, %s465
    %s466 = sphi 0, %s463
    %s467 = sphi 0, %s466
    %s483 = sphi 0, %s467
    %s489 = sphi 0, %s491
    %s492 = sphi 0, %s489
    %s493 = sphi 0, %s492
    %s509 = sphi 0, %s493
  $region4: #{tpu_custom_call.1} parent=0 // loop_header_branch
    %32 = sbr.rel (%p30) target = $region8
  $region5: #{tpu_custom_call.1} parent=0 // loop_body
    %s34 = ssub.s32 %s29, 1
    %s35 = ssub.s32 %s29, 2
    %s36 = sadd.s32 %s29, 1
    %s37 = ssub.s32 %s29, %s36
    %p38 = scmp.eq.s32.totalorder %s37, 0
    %s40 = sadd.s32 %s39, 1
    %s41 = scalar_select %p38, %s39, %s40
    %p44 = pneg %p38
    %p45 = scmp.eq.s32.totalorder %s29, 1
    %p46 = por %p44, %p45
    %p47 = scmp.ne.s32.totalorder %s39, %s42
    %p48 = scmp.eq.s32.totalorder %s29, 0
    %p49 = por %p47, %p48
    %p50 = scmp.ne.s32.totalorder %s39, %s42
    %p51 = scmp.eq.s32.totalorder %s34, 1
    %p52 = por %p50, %p51
    %p53 = scmp.ne.s32.totalorder %s42, %s43
    %p54 = scmp.eq.s32.totalorder %s34, 0
    %p55 = por %p53, %p54
    %p56 = scmp.ne.s32.totalorder %s42, %s43
    %p57 = scmp.eq.s32.totalorder %s35, 1
    %p58 = por %p56, %p57
    %p60 = scmp.ne.s32.totalorder %s43, %s59
    %p61 = scmp.eq.s32.totalorder %s35, 0
    %p62 = por %p60, %p61
    %s63 = ssub.s32 %s29, %s36
    %p64 = scmp.eq.s32.totalorder %s63, 0
    %s66 = sadd.s32 %s65, 1
    %s67 = scalar_select %p64, %s65, %s66
    %p70 = pneg %p64
    %p71 = scmp.eq.s32.totalorder %s29, 1
    %p72 = por %p70, %p71
    %p73 = scmp.ne.s32.totalorder %s65, %s68
    %p74 = scmp.eq.s32.totalorder %s29, 0
    %p75 = por %p73, %p74
    %p76 = scmp.ne.s32.totalorder %s65, %s68
    %p77 = scmp.eq.s32.totalorder %s34, 1
    %p78 = por %p76, %p77
    %p79 = scmp.ne.s32.totalorder %s68, %s69
    %p80 = scmp.eq.s32.totalorder %s34, 0
    %p81 = por %p79, %p80
    %p82 = scmp.ne.s32.totalorder %s68, %s69
    %p83 = scmp.eq.s32.totalorder %s35, 1
    %p84 = por %p82, %p83
    %p86 = scmp.ne.s32.totalorder %s69, %s85
    %p87 = scmp.eq.s32.totalorder %s35, 0
    %p88 = por %p86, %p87
    %s89 = ssub.s32 %s29, %s36
    %p90 = scmp.eq.s32.totalorder %s89, 0
    %s92 = sadd.s32 %s91, 1
    %s93 = scalar_select %p90, %s91, %s92
    %p96 = pneg %p90
    %p97 = scmp.eq.s32.totalorder %s29, 1
    %p98 = por %p96, %p97
    %p99 = scmp.ne.s32.totalorder %s91, %s94
    %p100 = scmp.eq.s32.totalorder %s29, 0
    %p101 = por %p99, %p100
    %p102 = scmp.ne.s32.totalorder %s91, %s94
    %p103 = scmp.eq.s32.totalorder %s34, 1
    %p104 = por %p102, %p103
    %p105 = scmp.ne.s32.totalorder %s94, %s95
    %p106 = scmp.eq.s32.totalorder %s34, 0
    %p107 = por %p105, %p106
    %p108 = scmp.ne.s32.totalorder %s94, %s95
    %p109 = scmp.eq.s32.totalorder %s35, 1
    %p110 = por %p108, %p109
    %p112 = scmp.ne.s32.totalorder %s95, %s111
    %p113 = scmp.eq.s32.totalorder %s35, 0
    %p114 = por %p112, %p113
    %s116 = sadd.s32 %s115, 1
    %p119 = scmp.eq.s32.totalorder %s29, 1
    %p120 = scmp.ne.s32.totalorder %s115, %s117
    %p121 = scmp.eq.s32.totalorder %s29, 0
    %p122 = por %p120, %p121
    %p123 = scmp.ne.s32.totalorder %s115, %s117
    %p124 = scmp.eq.s32.totalorder %s34, 1
    %p125 = por %p123, %p124
    %p126 = scmp.ne.s32.totalorder %s117, %s118
    %p127 = scmp.eq.s32.totalorder %s34, 0
    %p128 = por %p126, %p127
    %p129 = scmp.ne.s32.totalorder %s117, %s118
    %p130 = scmp.eq.s32.totalorder %s35, 1
    %p131 = por %p129, %p130
    %p133 = scmp.ne.s32.totalorder %s118, %s132
    %p134 = scmp.eq.s32.totalorder %s35, 0
    %p135 = por %p133, %p134
    %s137 = sadd.s32 %s136, 1
    %p140 = scmp.eq.s32.totalorder %s29, 1
    %p141 = scmp.ne.s32.totalorder %s136, %s138
    %p142 = scmp.eq.s32.totalorder %s29, 0
    %p143 = por %p141, %p142
    %p144 = scmp.ne.s32.totalorder %s136, %s138
    %p145 = scmp.eq.s32.totalorder %s34, 1
    %p146 = por %p144, %p145
    %p147 = scmp.ne.s32.totalorder %s138, %s139
    %p148 = scmp.eq.s32.totalorder %s34, 0
    %p149 = por %p147, %p148
    %p150 = scmp.ne.s32.totalorder %s138, %s139
    %p151 = scmp.eq.s32.totalorder %s35, 1
    %p152 = por %p150, %p151
    %p154 = scmp.ne.s32.totalorder %s139, %s153
    %p155 = scmp.eq.s32.totalorder %s35, 0
    %p156 = por %p154, %p155
    %s158 = sadd.s32 %s157, 1
    %p161 = scmp.eq.s32.totalorder %s29, 1
    %p162 = scmp.ne.s32.totalorder %s157, %s159
    %p163 = scmp.eq.s32.totalorder %s29, 0
    %p164 = por %p162, %p163
    %p165 = scmp.ne.s32.totalorder %s157, %s159
    %p166 = scmp.eq.s32.totalorder %s34, 1
    %p167 = por %p165, %p166
    %p168 = scmp.ne.s32.totalorder %s159, %s160
    %p169 = scmp.eq.s32.totalorder %s34, 0
    %p170 = por %p168, %p169
    %p171 = scmp.ne.s32.totalorder %s159, %s160
    %p172 = scmp.eq.s32.totalorder %s35, 1
    %p173 = por %p171, %p172
    %p175 = scmp.ne.s32.totalorder %s160, %s174
    %p176 = scmp.eq.s32.totalorder %s35, 0
    %p177 = por %p175, %p176
    %s179 = sadd.s32 %s178, 1
    %p182 = scmp.eq.s32.totalorder %s29, 1
    %p183 = scmp.ne.s32.totalorder %s178, %s180
    %p184 = scmp.eq.s32.totalorder %s29, 0
    %p185 = por %p183, %p184
    %p186 = scmp.ne.s32.totalorder %s178, %s180
    %p187 = scmp.eq.s32.totalorder %s34, 1
    %p188 = por %p186, %p187
    %p189 = scmp.ne.s32.totalorder %s180, %s181
    %p190 = scmp.eq.s32.totalorder %s34, 0
    %p191 = por %p189, %p190
    %p192 = scmp.ne.s32.totalorder %s180, %s181
    %p193 = scmp.eq.s32.totalorder %s35, 1
    %p194 = por %p192, %p193
    %p196 = scmp.ne.s32.totalorder %s181, %s195
    %p197 = scmp.eq.s32.totalorder %s35, 0
    %p198 = por %p196, %p197
    %s200 = sadd.s32 %s199, 1
    %p203 = scmp.eq.s32.totalorder %s29, 1
    %p204 = scmp.ne.s32.totalorder %s199, %s201
    %p205 = scmp.eq.s32.totalorder %s29, 0
    %p206 = por %p204, %p205
    %p207 = scmp.ne.s32.totalorder %s199, %s201
    %p208 = scmp.eq.s32.totalorder %s34, 1
    %p209 = por %p207, %p208
    %p210 = scmp.ne.s32.totalorder %s201, %s202
    %p211 = scmp.eq.s32.totalorder %s34, 0
    %p212 = por %p210, %p211
    %p213 = scmp.ne.s32.totalorder %s201, %s202
    %p214 = scmp.eq.s32.totalorder %s35, 1
    %p215 = por %p213, %p214
    %p217 = scmp.ne.s32.totalorder %s202, %s216
    %p218 = scmp.eq.s32.totalorder %s35, 0
    %p219 = por %p217, %p218
    %s221 = sadd.s32 %s220, 1
    %p224 = scmp.eq.s32.totalorder %s29, 1
    %p225 = scmp.ne.s32.totalorder %s220, %s222
    %p226 = scmp.eq.s32.totalorder %s29, 0
    %p227 = por %p225, %p226
    %p228 = scmp.ne.s32.totalorder %s220, %s222
    %p229 = scmp.eq.s32.totalorder %s34, 1
    %p230 = por %p228, %p229
    %p231 = scmp.ne.s32.totalorder %s222, %s223
    %p232 = scmp.eq.s32.totalorder %s34, 0
    %p233 = por %p231, %p232
    %p234 = scmp.ne.s32.totalorder %s222, %s223
    %p235 = scmp.eq.s32.totalorder %s35, 1
    %p236 = por %p234, %p235
    %p238 = scmp.ne.s32.totalorder %s223, %s237
    %p239 = scmp.eq.s32.totalorder %s35, 0
    %p240 = por %p238, %p239
    %s242 = sadd.s32 %s241, 1
    %p245 = scmp.eq.s32.totalorder %s29, 1
    %p246 = scmp.ne.s32.totalorder %s241, %s243
    %p247 = scmp.eq.s32.totalorder %s29, 0
    %p248 = por %p246, %p247
    %p249 = scmp.ne.s32.totalorder %s241, %s243
    %p250 = scmp.eq.s32.totalorder %s34, 1
    %p251 = por %p249, %p250
    %p252 = scmp.ne.s32.totalorder %s243, %s244
    %p253 = scmp.eq.s32.totalorder %s34, 0
    %p254 = por %p252, %p253
    %p255 = scmp.ne.s32.totalorder %s243, %s244
    %p256 = scmp.eq.s32.totalorder %s35, 1
    %p257 = por %p255, %p256
    %p259 = scmp.ne.s32.totalorder %s244, %s258
    %p260 = scmp.eq.s32.totalorder %s35, 0
    %p261 = por %p259, %p260
    %s263 = sadd.s32 %s262, 1
    %p266 = scmp.eq.s32.totalorder %s29, 1
    %p267 = scmp.ne.s32.totalorder %s262, %s264
    %p268 = scmp.eq.s32.totalorder %s29, 0
    %p269 = por %p267, %p268
    %p270 = scmp.ne.s32.totalorder %s262, %s264
    %p271 = scmp.eq.s32.totalorder %s34, 1
    %p272 = por %p270, %p271
    %p273 = scmp.ne.s32.totalorder %s264, %s265
    %p274 = scmp.eq.s32.totalorder %s34, 0
    %p275 = por %p273, %p274
    %p276 = scmp.ne.s32.totalorder %s264, %s265
    %p277 = scmp.eq.s32.totalorder %s35, 1
    %p278 = por %p276, %p277
    %p280 = scmp.ne.s32.totalorder %s265, %s279
    %p281 = scmp.eq.s32.totalorder %s35, 0
    %p282 = por %p280, %p281
    %s284 = sadd.s32 %s283, 1
    %p287 = scmp.eq.s32.totalorder %s29, 1
    %p288 = scmp.ne.s32.totalorder %s283, %s285
    %p289 = scmp.eq.s32.totalorder %s29, 0
    %p290 = por %p288, %p289
    %p291 = scmp.ne.s32.totalorder %s283, %s285
    %p292 = scmp.eq.s32.totalorder %s34, 1
    %p293 = por %p291, %p292
    %p294 = scmp.ne.s32.totalorder %s285, %s286
    %p295 = scmp.eq.s32.totalorder %s34, 0
    %p296 = por %p294, %p295
    %p297 = scmp.ne.s32.totalorder %s285, %s286
    %p298 = scmp.eq.s32.totalorder %s35, 1
    %p299 = por %p297, %p298
    %p301 = scmp.ne.s32.totalorder %s286, %s300
    %p302 = scmp.eq.s32.totalorder %s35, 0
    %p303 = por %p301, %p302
    %s305 = sadd.s32 %s304, 1
    %p308 = scmp.eq.s32.totalorder %s29, 1
    %p309 = scmp.ne.s32.totalorder %s304, %s306
    %p310 = scmp.eq.s32.totalorder %s29, 0
    %p311 = por %p309, %p310
    %p312 = scmp.ne.s32.totalorder %s304, %s306
    %p313 = scmp.eq.s32.totalorder %s34, 1
    %p314 = por %p312, %p313
    %p315 = scmp.ne.s32.totalorder %s306, %s307
    %p316 = scmp.eq.s32.totalorder %s34, 0
    %p317 = por %p315, %p316
    %p318 = scmp.ne.s32.totalorder %s306, %s307
    %p319 = scmp.eq.s32.totalorder %s35, 1
    %p320 = por %p318, %p319
    %p322 = scmp.ne.s32.totalorder %s307, %s321
    %p323 = scmp.eq.s32.totalorder %s35, 0
    %p324 = por %p322, %p323
    %s326 = sadd.s32 %s325, 1
    %p329 = scmp.eq.s32.totalorder %s29, 1
    %p330 = scmp.ne.s32.totalorder %s325, %s327
    %p331 = scmp.eq.s32.totalorder %s29, 0
    %p332 = por %p330, %p331
    %p333 = scmp.ne.s32.totalorder %s325, %s327
    %p334 = scmp.eq.s32.totalorder %s34, 1
    %p335 = por %p333, %p334
    %p336 = scmp.ne.s32.totalorder %s327, %s328
    %p337 = scmp.eq.s32.totalorder %s34, 0
    %p338 = por %p336, %p337
    %p339 = scmp.ne.s32.totalorder %s327, %s328
    %p340 = scmp.eq.s32.totalorder %s35, 1
    %p341 = por %p339, %p340
    %p343 = scmp.ne.s32.totalorder %s328, %s342
    %p344 = scmp.eq.s32.totalorder %s35, 0
    %p345 = por %p343, %p344
    %s347 = sadd.s32 %s346, 1
    %p350 = scmp.eq.s32.totalorder %s29, 1
    %p351 = scmp.ne.s32.totalorder %s346, %s348
    %p352 = scmp.eq.s32.totalorder %s29, 0
    %p353 = por %p351, %p352
    %p354 = scmp.ne.s32.totalorder %s346, %s348
    %p355 = scmp.eq.s32.totalorder %s34, 1
    %p356 = por %p354, %p355
    %p357 = scmp.ne.s32.totalorder %s348, %s349
    %p358 = scmp.eq.s32.totalorder %s34, 0
    %p359 = por %p357, %p358
    %p360 = scmp.ne.s32.totalorder %s348, %s349
    %p361 = scmp.eq.s32.totalorder %s35, 1
    %p362 = por %p360, %p361
    %p364 = scmp.ne.s32.totalorder %s349, %s363
    %p365 = scmp.eq.s32.totalorder %s35, 0
    %p366 = por %p364, %p365
    %s368 = sadd.s32 %s367, 1
    %p371 = scmp.eq.s32.totalorder %s29, 1
    %p372 = scmp.ne.s32.totalorder %s367, %s369
    %p373 = scmp.eq.s32.totalorder %s29, 0
    %p374 = por %p372, %p373
    %p375 = scmp.ne.s32.totalorder %s367, %s369
    %p376 = scmp.eq.s32.totalorder %s34, 1
    %p377 = por %p375, %p376
    %p378 = scmp.ne.s32.totalorder %s369, %s370
    %p379 = scmp.eq.s32.totalorder %s34, 0
    %p380 = por %p378, %p379
    %p381 = scmp.ne.s32.totalorder %s369, %s370
    %p382 = scmp.eq.s32.totalorder %s35, 1
    %p383 = por %p381, %p382
    %p385 = scmp.ne.s32.totalorder %s370, %s384
    %p386 = scmp.eq.s32.totalorder %s35, 0
    %p387 = por %p385, %p386
    %s389 = sadd.s32 %s388, 1
    %p392 = scmp.eq.s32.totalorder %s29, 1
    %p393 = scmp.ne.s32.totalorder %s388, %s390
    %p394 = scmp.eq.s32.totalorder %s29, 0
    %p395 = por %p393, %p394
    %p396 = scmp.ne.s32.totalorder %s388, %s390
    %p397 = scmp.eq.s32.totalorder %s34, 1
    %p398 = por %p396, %p397
    %p399 = scmp.ne.s32.totalorder %s390, %s391
    %p400 = scmp.eq.s32.totalorder %s34, 0
    %p401 = por %p399, %p400
    %p402 = scmp.ne.s32.totalorder %s390, %s391
    %p403 = scmp.eq.s32.totalorder %s35, 1
    %p404 = por %p402, %p403
    %p406 = scmp.ne.s32.totalorder %s391, %s405
    %p407 = scmp.eq.s32.totalorder %s35, 0
    %p408 = por %p406, %p407
    %s409 = ssub.s32 %s29, %s36
    %p410 = scmp.eq.s32.totalorder %s409, 0
    %s412 = sadd.s32 %s411, 1
    %s413 = scalar_select %p410, %s411, %s412
    %p416 = pneg %p410
    %p417 = scmp.eq.s32.totalorder %s29, 1
    %p418 = por %p416, %p417
    %p419 = scmp.ne.s32.totalorder %s411, %s414
    %p420 = scmp.eq.s32.totalorder %s29, 0
    %p421 = por %p419, %p420
    %p422 = scmp.ne.s32.totalorder %s411, %s414
    %p423 = scmp.eq.s32.totalorder %s34, 1
    %p424 = por %p422, %p423
    %p425 = scmp.ne.s32.totalorder %s414, %s415
    %p426 = scmp.eq.s32.totalorder %s34, 0
    %p427 = por %p425, %p426
    %p428 = scmp.ne.s32.totalorder %s414, %s415
    %p429 = scmp.eq.s32.totalorder %s35, 1
    %p430 = por %p428, %p429
    %p432 = scmp.ne.s32.totalorder %s415, %s431
    %p433 = scmp.eq.s32.totalorder %s35, 0
    %p434 = por %p432, %p433
    %s435 = ssub.s32 %s29, %s36
    %p436 = scmp.eq.s32.totalorder %s435, 0
    %s438 = sadd.s32 %s437, 1
    %s439 = scalar_select %p436, %s437, %s438
    %p442 = pneg %p436
    %p443 = scmp.eq.s32.totalorder %s29, 1
    %p444 = por %p442, %p443
    %p445 = scmp.ne.s32.totalorder %s437, %s440
    %p446 = scmp.eq.s32.totalorder %s29, 0
    %p447 = por %p445, %p446
    %p448 = scmp.ne.s32.totalorder %s437, %s440
    %p449 = scmp.eq.s32.totalorder %s34, 1
    %p450 = por %p448, %p449
    %p451 = scmp.ne.s32.totalorder %s440, %s441
    %p452 = scmp.eq.s32.totalorder %s34, 0
    %p453 = por %p451, %p452
    %p454 = scmp.ne.s32.totalorder %s440, %s441
    %p455 = scmp.eq.s32.totalorder %s35, 1
    %p456 = por %p454, %p455
    %p458 = scmp.ne.s32.totalorder %s441, %s457
    %p459 = scmp.eq.s32.totalorder %s35, 0
    %p460 = por %p458, %p459
    %s461 = ssub.s32 %s29, %s36
    %p462 = scmp.eq.s32.totalorder %s461, 0
    %s464 = sadd.s32 %s463, 1
    %s465 = scalar_select %p462, %s463, %s464
    %p468 = pneg %p462
    %p469 = scmp.eq.s32.totalorder %s29, 1
    %p470 = por %p468, %p469
    %p471 = scmp.ne.s32.totalorder %s463, %s466
    %p472 = scmp.eq.s32.totalorder %s29, 0
    %p473 = por %p471, %p472
    %p474 = scmp.ne.s32.totalorder %s463, %s466
    %p475 = scmp.eq.s32.totalorder %s34, 1
    %p476 = por %p474, %p475
    %p477 = scmp.ne.s32.totalorder %s466, %s467
    %p478 = scmp.eq.s32.totalorder %s34, 0
    %p479 = por %p477, %p478
    %p480 = scmp.ne.s32.totalorder %s466, %s467
    %p481 = scmp.eq.s32.totalorder %s35, 1
    %p482 = por %p480, %p481
    %p484 = scmp.ne.s32.totalorder %s467, %s483
    %p485 = scmp.eq.s32.totalorder %s35, 0
    %p486 = por %p484, %p485
    %s487 = ssub.s32 %s29, %s36
    %p488 = scmp.eq.s32.totalorder %s487, 0
    %s490 = sadd.s32 %s489, 1
    %s491 = scalar_select %p488, %s489, %s490
    %p494 = pneg %p488
    %p495 = scmp.eq.s32.totalorder %s29, 1
    %p496 = por %p494, %p495
    %p497 = scmp.ne.s32.totalorder %s489, %s492
    %p498 = scmp.eq.s32.totalorder %s29, 0
    %p499 = por %p497, %p498
    %p500 = scmp.ne.s32.totalorder %s489, %s492
    %p501 = scmp.eq.s32.totalorder %s34, 1
    %p502 = por %p500, %p501
    %p503 = scmp.ne.s32.totalorder %s492, %s493
    %p504 = scmp.eq.s32.totalorder %s34, 0
    %p505 = por %p503, %p504
    %p506 = scmp.ne.s32.totalorder %s492, %s493
    %p507 = scmp.eq.s32.totalorder %s35, 1
    %p508 = por %p506, %p507
    %p510 = scmp.ne.s32.totalorder %s493, %s509
    %p511 = scmp.eq.s32.totalorder %s35, 0
    %p512 = por %p510, %p511
    %p513 = scmp.le.s32.totalorder 1, %s29
    %p514 = scmp.lt.s32.totalorder %s29, 3
    %p515 = pnand %p513, %p514
    %p516 = pneg %p515
    // Predicated region
    $region9: #{tpu_custom_call.1} parent=5 // pred_check
      _
    $region10: #{tpu_custom_call.1} parent=5 // pred_check_branch
      %518 = sbr.rel (%p515) target = $region12
    $region11: #{tpu_custom_call.1} parent=5 // pred_region
      %s519 = ssub.s32 %s29, 1
      // Predicated region
      $region13: #{tpu_custom_call.1} parent=11 // pred_check
        %p520 = pneg %p128
      $region14: #{tpu_custom_call.1} parent=11 // pred_check_branch
        %522 = sbr.rel (%p520) target = $region16
      $region15: #{tpu_custom_call.1} parent=11 // pred_region
        _
      $region16: #{tpu_custom_call.1} parent=11 // pred_fallthru
        _
      // Predicated region
      $region17: #{tpu_custom_call.1} parent=11 // pred_check
        %p523 = pneg %p149
      $region18: #{tpu_custom_call.1} parent=11 // pred_check_branch
        %525 = sbr.rel (%p523) target = $region20
      $region19: #{tpu_custom_call.1} parent=11 // pred_region
        _
      $region20: #{tpu_custom_call.1} parent=11 // pred_fallthru
        _
      // Predicated region
      $region21: #{tpu_custom_call.1} parent=11 // pred_check
        %p526 = pneg %p170
      $region22: #{tpu_custom_call.1} parent=11 // pred_check_branch
        %528 = sbr.rel (%p526) target = $region24
      $region23: #{tpu_custom_call.1} parent=11 // pred_region
        _
      $region24: #{tpu_custom_call.1} parent=11 // pred_fallthru
        _
      // Predicated region
      $region25: #{tpu_custom_call.1} parent=11 // pred_check
        %p529 = pneg %p191
      $region26: #{tpu_custom_call.1} parent=11 // pred_check_branch
        %531 = sbr.rel (%p529) target = $region28
      $region27: #{tpu_custom_call.1} parent=11 // pred_region
        _
      $region28: #{tpu_custom_call.1} parent=11 // pred_fallthru
        _
      // Predicated region
      $region29: #{tpu_custom_call.1} parent=11 // pred_check
        %p532 = pneg %p212
      $region30: #{tpu_custom_call.1} parent=11 // pred_check_branch
        %534 = sbr.rel (%p532) target = $region32
      $region31: #{tpu_custom_call.1} parent=11 // pred_region
        _
      $region32: #{tpu_custom_call.1} parent=11 // pred_fallthru
        _
      // Predicated region
      $region33: #{tpu_custom_call.1} parent=11 // pred_check
        %p535 = pneg %p233
      $region34: #{tpu_custom_call.1} parent=11 // pred_check_branch
        %537 = sbr.rel (%p535) target = $region36
      $region35: #{tpu_custom_call.1} parent=11 // pred_region
        _
      $region36: #{tpu_custom_call.1} parent=11 // pred_fallthru
        _
      // Predicated region
      $region37: #{tpu_custom_call.1} parent=11 // pred_check
        %p538 = pneg %p254
      $region38: #{tpu_custom_call.1} parent=11 // pred_check_branch
        %540 = sbr.rel (%p538) target = $region40
      $region39: #{tpu_custom_call.1} parent=11 // pred_region
        _
      $region40: #{tpu_custom_call.1} parent=11 // pred_fallthru
        _
      // Predicated region
      $region41: #{tpu_custom_call.1} parent=11 // pred_check
        %p541 = pneg %p275
      $region42: #{tpu_custom_call.1} parent=11 // pred_check_branch
        %543 = sbr.rel (%p541) target = $region44
      $region43: #{tpu_custom_call.1} parent=11 // pred_region
        _
      $region44: #{tpu_custom_call.1} parent=11 // pred_fallthru
        _
      // Predicated region
      $region45: #{tpu_custom_call.1} parent=11 // pred_check
        %p544 = pneg %p296
      $region46: #{tpu_custom_call.1} parent=11 // pred_check_branch
        %546 = sbr.rel (%p544) target = $region48
      $region47: #{tpu_custom_call.1} parent=11 // pred_region
        _
      $region48: #{tpu_custom_call.1} parent=11 // pred_fallthru
        _
      // Predicated region
      $region49: #{tpu_custom_call.1} parent=11 // pred_check
        %p547 = pneg %p317
      $region50: #{tpu_custom_call.1} parent=11 // pred_check_branch
        %549 = sbr.rel (%p547) target = $region52
      $region51: #{tpu_custom_call.1} parent=11 // pred_region
        _
      $region52: #{tpu_custom_call.1} parent=11 // pred_fallthru
        _
      // Predicated region
      $region53: #{tpu_custom_call.1} parent=11 // pred_check
        %p550 = pneg %p338
      $region54: #{tpu_custom_call.1} parent=11 // pred_check_branch
        %552 = sbr.rel (%p550) target = $region56
      $region55: #{tpu_custom_call.1} parent=11 // pred_region
        _
      $region56: #{tpu_custom_call.1} parent=11 // pred_fallthru
        _
      // Predicated region
      $region57: #{tpu_custom_call.1} parent=11 // pred_check
        %p553 = pneg %p359
      $region58: #{tpu_custom_call.1} parent=11 // pred_check_branch
        %555 = sbr.rel (%p553) target = $region60
      $region59: #{tpu_custom_call.1} parent=11 // pred_region
        _
      $region60: #{tpu_custom_call.1} parent=11 // pred_fallthru
        _
      // Predicated region
      $region61: #{tpu_custom_call.1} parent=11 // pred_check
        %p556 = pneg %p380
      $region62: #{tpu_custom_call.1} parent=11 // pred_check_branch
        %558 = sbr.rel (%p556) target = $region64
      $region63: #{tpu_custom_call.1} parent=11 // pred_region
        _
      $region64: #{tpu_custom_call.1} parent=11 // pred_fallthru
        _
      // Predicated region
      $region65: #{tpu_custom_call.1} parent=11 // pred_check
        %p559 = pneg %p401
      $region66: #{tpu_custom_call.1} parent=11 // pred_check_branch
        %561 = sbr.rel (%p559) target = $region68
      $region67: #{tpu_custom_call.1} parent=11 // pred_region
        _
      $region68: #{tpu_custom_call.1} parent=11 // pred_fallthru
        _
    $region12: #{tpu_custom_call.1} parent=5 // pred_fallthru
      _
    %p562 = scmp.lt.s32.totalorder %s29, 2
    // Predicated region
    $region69: #{tpu_custom_call.1} parent=5 // pred_check
      %p563 = pneg %p562
    $region70: #{tpu_custom_call.1} parent=5 // pred_check_branch
      %565 = sbr.rel (%p563) target = $region72
    $region71: #{tpu_custom_call.1} parent=5 // pred_region
      // Predicated region
      $region73: #{tpu_custom_call.1} parent=71 // pred_check
        %p566 = pneg %p49
      $region74: #{tpu_custom_call.1} parent=71 // pred_check_branch
        %568 = sbr.rel (%p566) target = $region76
      $region75: #{tpu_custom_call.1} parent=71 // pred_region
        %p569 = scmp.lt.s32.totalorder %s29, 1
        %s570 = scalar_select %p569, %s29, 1
        %s571 = smul.addr %s570, 16
        %s572 = smul.addr %s571, 8
        %s573 = scalar_lea.vmem %s0, %s572
      $region76: #{tpu_custom_call.1} parent=71 // pred_fallthru
        _
      // Predicated region
      $region77: #{tpu_custom_call.1} parent=71 // pred_check
        %p574 = pneg %p75
      $region78: #{tpu_custom_call.1} parent=71 // pred_check_branch
        %576 = sbr.rel (%p574) target = $region80
      $region79: #{tpu_custom_call.1} parent=71 // pred_region
        %p577 = scmp.lt.s32.totalorder %s29, 1
        %s578 = scalar_select %p577, %s29, 1
        %s579 = smul.addr %s578, 16
        %s580 = smul.addr %s579, 8
        %s581 = scalar_lea.vmem %s1, %s580
      $region80: #{tpu_custom_call.1} parent=71 // pred_fallthru
        _
      // Predicated region
      $region81: #{tpu_custom_call.1} parent=71 // pred_check
        %p582 = pneg %p101
      $region82: #{tpu_custom_call.1} parent=71 // pred_check_branch
        %584 = sbr.rel (%p582) target = $region84
      $region83: #{tpu_custom_call.1} parent=71 // pred_region
        %p585 = scmp.lt.s32.totalorder %s29, 1
        %s586 = scalar_select %p585, %s29, 1
        %s587 = smul.addr %s586, 16
        %s588 = smul.addr %s587, 8
        %s589 = scalar_lea.vmem %s2, %s588
      $region84: #{tpu_custom_call.1} parent=71 // pred_fallthru
        _
    $region72: #{tpu_custom_call.1} parent=5 // pred_fallthru
      _
    %p590 = scmp.le.s32.totalorder 1, %s29
    %p591 = scmp.lt.s32.totalorder %s29, 3
    %p592 = pnand %p590, %p591
    %p593 = pneg %p592
    // Predicated region
    $region85: #{tpu_custom_call.1} parent=5 // pred_check
      _
    $region86: #{tpu_custom_call.1} parent=5 // pred_check_branch
      %595 = sbr.rel (%p592) target = $region88
    $region87: #{tpu_custom_call.1} parent=5 // pred_region
      %s596 = ssub.s32 %s29, 1
      %p597 = scmp.lt.s32.totalorder %s34, 1
      %s598 = scalar_select %p597, %s34, 1
      %s599 = smul.addr %s598, 16
      %s600 = smul.addr %s599, 8
      %s601 = scalar_lea.vmem %s0, %s600
      %p602 = pneg %p55
      %p603 = pneg %p52
      %p604 = scmp.lt.s32.totalorder %s34, 1
      %s605 = scalar_select %p604, %s34, 1
      %s606 = smul.addr %s605, 16
      %s607 = smul.addr %s606, 8
      %s608 = scalar_lea.vmem %s1, %s607
      %p609 = pneg %p81
      %p610 = pneg %p78
      %p611 = scmp.lt.s32.totalorder %s34, 1
      %s612 = scalar_select %p611, %s34, 1
      %s613 = smul.addr %s612, 16
      %s614 = smul.addr %s613, 8
      %s615 = scalar_lea.vmem %s2, %s614
      %p616 = pneg %p107
      %p617 = pneg %p104
      %p618 = pneg %p128
      %p619 = pneg %p125
      %p620 = pneg %p149
      %p621 = pneg %p146
      %p622 = pneg %p170
      %p623 = pneg %p167
      %p624 = pneg %p191
      %p625 = pneg %p188
      %p626 = pneg %p212
      %p627 = pneg %p209
      %p628 = pneg %p233
      %p629 = pneg %p230
      %p630 = pneg %p254
      %p631 = pneg %p251
      %p632 = pneg %p275
      %p633 = pneg %p272
      %p634 = pneg %p296
      %p635 = pneg %p293
      %p636 = pneg %p317
      %p637 = pneg %p314
      %p638 = pneg %p338
      %p639 = pneg %p335
      %p640 = pneg %p359
      %p641 = pneg %p356
      %p642 = pneg %p380
      %p643 = pneg %p377
      %p644 = pneg %p401
      %p645 = pneg %p398
      %p646 = pneg %p427
      %p647 = pneg %p424
      %p648 = scmp.lt.s32.totalorder %s34, 1
      %s649 = scalar_select %p648, %s34, 1
      %s650 = smul.addr %s649, 16
      %s651 = smul.addr %s650, 8
      %s652 = scalar_lea.vmem %s17, %s651
      %p653 = pneg %p453
      %p654 = pneg %p450
      %p655 = scmp.lt.s32.totalorder %s34, 1
      %s656 = scalar_select %p655, %s34, 1
      %s657 = smul.addr %s656, 16
      %s658 = smul.addr %s657, 8
      %s659 = scalar_lea.vmem %s18, %s658
      %p660 = pneg %p479
      %p661 = pneg %p476
      %p662 = scmp.lt.s32.totalorder %s34, 1
      %s663 = scalar_select %p662, %s34, 1
      %s664 = smul.addr %s663, 16
      %s665 = smul.addr %s664, 8
      %s666 = scalar_lea.vmem %s19, %s665
      %p667 = pneg %p505
      %p668 = pneg %p502
      %p669 = scmp.lt.s32.totalorder %s34, 1
      %s670 = scalar_select %p669, %s34, 1
      %s671 = smul.addr %s670, 16
      %s672 = smul.addr %s671, 8
      %s673 = scalar_lea.vmem %s20, %s672
      %p674 = scmp.lt.s32.totalorder %s34, 1
      %s675 = scalar_select %p674, %s34, 1
      %s676 = smul.addr %s675, 16
      %s677 = smul.addr %s676, 8
      %s678 = scalar_lea.vmem %s0, %s677
      %p679 = scmp.lt.s32.totalorder %s34, 1
      %s680 = scalar_select %p679, %s34, 1
      %s681 = smul.addr %s680, 16
      %s682 = smul.addr %s681, 8
      %s683 = scalar_lea.vmem %s1, %s682
      %p684 = scmp.lt.s32.totalorder %s34, 1
      %s685 = scalar_select %p684, %s34, 1
      %s686 = smul.addr %s685, 16
      %s687 = smul.addr %s686, 8
      %s688 = scalar_lea.vmem %s2, %s687
      %p689 = scmp.lt.s32.totalorder %s34, 1
      %s690 = scalar_select %p689, %s34, 1
      %s691 = smul.addr %s690, 16
      %s692 = smul.addr %s691, 8
      %s693 = scalar_lea.vmem %s17, %s692
      %p694 = scmp.lt.s32.totalorder %s34, 1
      %s695 = scalar_select %p694, %s34, 1
      %s696 = smul.addr %s695, 16
      %s697 = smul.addr %s696, 8
      %s698 = scalar_lea.vmem %s18, %s697
      %p699 = scmp.lt.s32.totalorder %s34, 1
      %s700 = scalar_select %p699, %s34, 1
      %s701 = smul.addr %s700, 16
      %s702 = smul.addr %s701, 8
      %s703 = scalar_lea.vmem %s19, %s702
      %p704 = scmp.lt.s32.totalorder %s34, 1
      %s705 = scalar_select %p704, %s34, 1
      %s706 = smul.addr %s705, 16
      %s707 = smul.addr %s706, 8
      %s708 = scalar_lea.vmem %s20, %s707
      %v709 = vld [vmem:[%s678] sm:$0xff]
      %v710 = vld [vmem:[%s678 + $0x8] sm:$0xff]
      %v711 = vld [vmem:[%s678 + $0x10] sm:$0xff]
      %v712 = vld [vmem:[%s678 + $0x18] sm:$0xff]
      %v713 = vld [vmem:[%s678 + $0x20] sm:$0xff]
      %v714 = vld [vmem:[%s678 + $0x28] sm:$0xff]
      %v715 = vld [vmem:[%s678 + $0x30] sm:$0xff]
      %v716 = vld [vmem:[%s678 + $0x38] sm:$0xff]
      %v717 = vld [vmem:[%s678 + $0x40] sm:$0xff]
      %v718 = vld [vmem:[%s678 + $0x48] sm:$0xff]
      %v719 = vld [vmem:[%s678 + $0x50] sm:$0xff]
      %v720 = vld [vmem:[%s678 + $0x58] sm:$0xff]
      %v721 = vld [vmem:[%s678 + $0x60] sm:$0xff]
      %v722 = vld [vmem:[%s678 + $0x68] sm:$0xff]
      %v723 = vld [vmem:[%s678 + $0x70] sm:$0xff]
      %v724 = vld [vmem:[%s678 + $0x78] sm:$0xff]
      %v725 = vld [vmem:[%s683] sm:$0xff]
      %v726 = vld [vmem:[%s683 + $0x8] sm:$0xff]
      %v727 = vld [vmem:[%s683 + $0x10] sm:$0xff]
      %v728 = vld [vmem:[%s683 + $0x18] sm:$0xff]
      %v729 = vld [vmem:[%s683 + $0x20] sm:$0xff]
      %v730 = vld [vmem:[%s683 + $0x28] sm:$0xff]
      %v731 = vld [vmem:[%s683 + $0x30] sm:$0xff]
      %v732 = vld [vmem:[%s683 + $0x38] sm:$0xff]
      %v733 = vld [vmem:[%s683 + $0x40] sm:$0xff]
      %v734 = vld [vmem:[%s683 + $0x48] sm:$0xff]
      %v735 = vld [vmem:[%s683 + $0x50] sm:$0xff]
      %v736 = vld [vmem:[%s683 + $0x58] sm:$0xff]
      %v737 = vld [vmem:[%s683 + $0x60] sm:$0xff]
      %v738 = vld [vmem:[%s683 + $0x68] sm:$0xff]
      %v739 = vld [vmem:[%s683 + $0x70] sm:$0xff]
      %v740 = vld [vmem:[%s683 + $0x78] sm:$0xff]
      %v741 = vld [vmem:[%s688] sm:$0xff]
      %v742 = vld [vmem:[%s688 + $0x8] sm:$0xff]
      %v743 = vld [vmem:[%s688 + $0x10] sm:$0xff]
      %v744 = vld [vmem:[%s688 + $0x18] sm:$0xff]
      %v745 = vld [vmem:[%s688 + $0x20] sm:$0xff]
      %v746 = vld [vmem:[%s688 + $0x28] sm:$0xff]
      %v747 = vld [vmem:[%s688 + $0x30] sm:$0xff]
      %v748 = vld [vmem:[%s688 + $0x38] sm:$0xff]
      %v749 = vld [vmem:[%s688 + $0x40] sm:$0xff]
      %v750 = vld [vmem:[%s688 + $0x48] sm:$0xff]
      %v751 = vld [vmem:[%s688 + $0x50] sm:$0xff]
      %v752 = vld [vmem:[%s688 + $0x58] sm:$0xff]
      %v753 = vld [vmem:[%s688 + $0x60] sm:$0xff]
      %v754 = vld [vmem:[%s688 + $0x68] sm:$0xff]
      %v755 = vld [vmem:[%s688 + $0x70] sm:$0xff]
      %v756 = vld [vmem:[%s688 + $0x78] sm:$0xff]
      %v757 = vld [vmem:[%s3] sm:$0xff]
      %v758 = vld [vmem:[%s3 + $0x8] sm:$0xff]
      %v759 = vld [vmem:[%s3 + $0x10] sm:$0xff]
      %v760 = vld [vmem:[%s3 + $0x18] sm:$0xff]
      %v761 = vld [vmem:[%s4] sm:$0x1]
      %v763 = vlaneseq
      %v764 = vshrl.u32 %v763, 7
      %v765 = vsub.s32 0, %v764
      %v766 = vrot.slane %v761, %v765
      %vm768 = vcmask 261120
      %v770 = vsel %vm768, %v709, 0
      %v773 = vsel %vm768, %v710, 0
      %v776 = vsel %vm768, %v711, 0
      %v779 = vsel %vm768, %v712, 0
      %v782 = vsel %vm768, %v713, 0
      %v785 = vsel %vm768, %v714, 0
      %v788 = vsel %vm768, %v715, 0
      %v791 = vsel %vm768, %v716, 0
      %v794 = vsel %vm768, %v717, 0
      %v797 = vsel %vm768, %v718, 0
      %v800 = vsel %vm768, %v719, 0
      %v803 = vsel %vm768, %v720, 0
      %v806 = vsel %vm768, %v721, 0
      %v809 = vsel %vm768, %v722, 0
      %v812 = vsel %vm768, %v723, 0
      %v815 = vsel %vm768, %v724, 0
      %817 = vmatprep.subr.mxu0 0.0
      %818 = vmatpush1.msra.mxu0 %v757
      %819 = vmatprep.subr.mxu0 0.0
      %820 = vmatpush1.msra.mxu0 %v758
      %821 = vmatprep.subr.mxu0 0.0
      %822 = vmatpush1.msra.mxu0 %v759
      %823 = vmatprep.subr.mxu0 0.0
      %824 = vmatpush1.msra.mxu0 %v760
      %825 = vmatprep.subr.mxu0 0.0
      %826 = vmatpush1.msra.mxu0 0.0
      %827 = vmatprep.subr.mxu0 0.0
      %828 = vmatpush1.msra.mxu0 0.0
      %829 = vmatprep.subr.mxu0 0.0
      %830 = vmatpush1.msra.mxu0 0.0
      %831 = vmatprep.subr.mxu0 0.0
      %832 = vmatpush1.msra.mxu0 0.0
      %833 = vmatprep.subr.mxu0 0.0
      %834 = vmatpush1.msra.mxu0 0.0
      %835 = vmatprep.subr.mxu0 0.0
      %836 = vmatpush1.msra.mxu0 0.0
      %837 = vmatprep.subr.mxu0 0.0
      %838 = vmatpush1.msra.mxu0 0.0
      %839 = vmatprep.subr.mxu0 0.0
      %840 = vmatpush1.msra.mxu0 0.0
      %841 = vmatprep.subr.mxu0 0.0
      %842 = vmatpush1.msra.mxu0 0.0
      %843 = vmatprep.subr.mxu0 0.0
      %844 = vmatpush1.msra.mxu0 0.0
      %845 = vmatprep.subr.mxu0 0.0
      %846 = vmatpush1.msra.mxu0 0.0
      %847 = vmatprep.subr.mxu0 0.0
      %848 = vmatpush1.msra.mxu0 0.0
      %849 = vmatprep.subr.mxu0 0.0
      %850 = vmatpush1.msra.mxu0 0.0
      %851 = vmatprep.subr.mxu0 0.0
      %852 = vmatpush1.msra.mxu0 0.0
      %853 = vmatprep.subr.mxu0 0.0
      %854 = vmatpush1.msra.mxu0 0.0
      %855 = vmatprep.subr.mxu0 0.0
      %856 = vmatpush1.msra.mxu0 0.0
      %857 = vmatprep.subr.mxu0 0.0
      %858 = vmatpush1.msra.mxu0 0.0
      %859 = vmatprep.subr.mxu0 0.0
      %860 = vmatpush1.msra.mxu0 0.0
      %861 = vmatprep.subr.mxu0 0.0
      %862 = vmatpush1.msra.mxu0 0.0
      %863 = vmatprep.subr.mxu0 0.0
      %864 = vmatpush1.msra.mxu0 0.0
      %865 = vmatprep.subr.mxu0 0.0
      %866 = vmatpush1.msra.mxu0 0.0
      %867 = vmatprep.subr.mxu0 0.0
      %868 = vmatpush1.msra.mxu0 0.0
      %869 = vmatprep.subr.mxu0 0.0
      %870 = vmatpush1.msra.mxu0 0.0
      %871 = vmatprep.subr.mxu0 0.0
      %872 = vmatpush1.msra.mxu0 0.0
      %873 = vmatprep.subr.mxu0 0.0
      %874 = vmatpush1.msra.mxu0 0.0
      %875 = vmatprep.subr.mxu0 0.0
      %876 = vmatpush1.msra.mxu0 0.0
      %877 = vmatprep.subr.mxu0 0.0
      %878 = vmatpush1.msra.mxu0 0.0
      %879 = vmatprep.subr.mxu0 0.0
      %880 = vmatpush1.msra.mxu0 0.0
      %881 = vmatprep.mubr.f32.mxu0 0.0
      %882 = vmatmul.mubr.f32.gmra.mrb[0].mxu0 %v770
      %v883 = vpop.f32.mrb[0].mxu0
      %v884 = vadd.f32 %v766, %v883
      %v885 = vpop.f32.mrb[0].mxu0
      %886 = vmatprep.mubr.f32.mxu0 0.0
      %887 = vmatmul.mubr.f32.gmra.mrb[0].mxu0 %v773
      %v888 = vpop.f32.mrb[0].mxu0
      %v889 = vadd.f32 %v766, %v888
      %v890 = vpop.f32.mrb[0].mxu0
      %891 = vmatprep.mubr.f32.mxu0 0.0
      %892 = vmatmul.mubr.f32.gmra.mrb[0].mxu0 %v776
      %v893 = vpop.f32.mrb[0].mxu0
      %v894 = vadd.f32 %v766, %v893
      %v895 = vpop.f32.mrb[0].mxu0
      %896 = vmatprep.mubr.f32.mxu0 0.0
      %897 = vmatmul.mubr.f32.gmra.mrb[0].mxu0 %v779
      %v898 = vpop.f32.mrb[0].mxu0
      %v899 = vadd.f32 %v766, %v898
      %v900 = vpop.f32.mrb[0].mxu0
      %901 = vmatprep.mubr.f32.mxu0 0.0
      %902 = vmatmul.mubr.f32.gmra.mrb[0].mxu0 %v782
      %v903 = vpop.f32.mrb[0].mxu0
      %v904 = vadd.f32 %v766, %v903
      %v905 = vpop.f32.mrb[0].mxu0
      %906 = vmatprep.mubr.f32.mxu0 0.0
      %907 = vmatmul.mubr.f32.gmra.mrb[0].mxu0 %v785
      %v908 = vpop.f32.mrb[0].mxu0
      %v909 = vadd.f32 %v766, %v908
      %v910 = vpop.f32.mrb[0].mxu0
      %911 = vmatprep.mubr.f32.mxu0 0.0
      %912 = vmatmul.mubr.f32.gmra.mrb[0].mxu0 %v788
      %v913 = vpop.f32.mrb[0].mxu0
      %v914 = vadd.f32 %v766, %v913
      %v915 = vpop.f32.mrb[0].mxu0
      %916 = vmatprep.mubr.f32.mxu0 0.0
      %917 = vmatmul.mubr.f32.gmra.mrb[0].mxu0 %v791
      %v918 = vpop.f32.mrb[0].mxu0
      %v919 = vadd.f32 %v766, %v918
      %v920 = vpop.f32.mrb[0].mxu0
      %921 = vmatprep.mubr.f32.mxu0 0.0
      %922 = vmatmul.mubr.f32.gmra.mrb[0].mxu0 %v794
      %v923 = vpop.f32.mrb[0].mxu0
      %v924 = vadd.f32 %v766, %v923
      %v925 = vpop.f32.mrb[0].mxu0
      %926 = vmatprep.mubr.f32.mxu0 0.0
      %927 = vmatmul.mubr.f32.gmra.mrb[0].mxu0 %v797
      %v928 = vpop.f32.mrb[0].mxu0
      %v929 = vadd.f32 %v766, %v928
      %v930 = vpop.f32.mrb[0].mxu0
      %931 = vmatprep.mubr.f32.mxu0 0.0
      %932 = vmatmul.mubr.f32.gmra.mrb[0].mxu0 %v800
      %v933 = vpop.f32.mrb[0].mxu0
      %v934 = vadd.f32 %v766, %v933
      %v935 = vpop.f32.mrb[0].mxu0
      %936 = vmatprep.mubr.f32.mxu0 0.0
      %937 = vmatmul.mubr.f32.gmra.mrb[0].mxu0 %v803
      %v938 = vpop.f32.mrb[0].mxu0
      %v939 = vadd.f32 %v766, %v938
      %v940 = vpop.f32.mrb[0].mxu0
      %941 = vmatprep.mubr.f32.mxu0 0.0
      %942 = vmatmul.mubr.f32.gmra.mrb[0].mxu0 %v806
      %v943 = vpop.f32.mrb[0].mxu0
      %v944 = vadd.f32 %v766, %v943
      %v945 = vpop.f32.mrb[0].mxu0
      %946 = vmatprep.mubr.f32.mxu0 0.0
      %947 = vmatmul.mubr.f32.gmra.mrb[0].mxu0 %v809
      %v948 = vpop.f32.mrb[0].mxu0
      %v949 = vadd.f32 %v766, %v948
      %v950 = vpop.f32.mrb[0].mxu0
      %951 = vmatprep.mubr.f32.mxu0 0.0
      %952 = vmatmul.mubr.f32.gmra.mrb[0].mxu0 %v812
      %v953 = vpop.f32.mrb[0].mxu0
      %v954 = vadd.f32 %v766, %v953
      %v955 = vpop.f32.mrb[0].mxu0
      %956 = vmatprep.mubr.f32.mxu0 0.0
      %957 = vmatmul.mubr.f32.gmra.mrb[0].mxu0 %v815
      %v958 = vpop.f32.mrb[0].mxu0
      %v959 = vadd.f32 %v766, %v958
      %v960 = vpop.f32.mrb[0].mxu0
      %961 = vdwg.mxu0
      %v962 = vld [vmem:[%s5] sm:$0x3]
      %v963 = vld [vmem:[%s6] sm:$0xff]
      %v964 = vld [vmem:[%s6 + $0x8] sm:$0xff]
      %v965 = vld [vmem:[%s7] sm:$0x1]
      %vm966 = vcmask 130048
      %v968 = vsel %vm966, %v962, 0
      %v971 = vsel %vm966, %v884, 0
      %v974 = vsel %vm966, %v889, 0
      %v977 = vsel %vm966, %v894, 0
      %v980 = vsel %vm966, %v899, 0
      %v983 = vsel %vm966, %v904, 0
      %v986 = vsel %vm966, %v909, 0
      %v989 = vsel %vm966, %v914, 0
      %v992 = vsel %vm966, %v919, 0
      %v995 = vsel %vm966, %v924, 0
      %v998 = vsel %vm966, %v929, 0
      %v1001 = vsel %vm966, %v934, 0
      %v1004 = vsel %vm966, %v939, 0
      %v1007 = vsel %vm966, %v944, 0
      %v1010 = vsel %vm966, %v949, 0
      %v1013 = vsel %vm966, %v954, 0
      %v1016 = vsel %vm966, %v959, 0
      %1018 = vmatprep.subr.mxu0 0.0
      %1019 = vmatpush1.xpose.msra.mxu0 %v971
      %1020 = vmatprep.subr.mxu0 0.0
      %1021 = vmatpush1.xpose.msra.mxu0 %v974
      %1022 = vmatprep.subr.mxu0 0.0
      %1023 = vmatpush1.xpose.msra.mxu0 %v977
      %1024 = vmatprep.subr.mxu0 0.0
      %1025 = vmatpush1.xpose.msra.mxu0 %v980
      %1026 = vmatprep.subr.mxu0 0.0
      %1027 = vmatpush1.xpose.msra.mxu0 %v983
      %1028 = vmatprep.subr.mxu0 0.0
      %1029 = vmatpush1.xpose.msra.mxu0 %v986
      %1030 = vmatprep.subr.mxu0 0.0
      %1031 = vmatpush1.xpose.msra.mxu0 %v989
      %1032 = vmatprep.subr.mxu0 0.0
      %1033 = vmatpush1.xpose.msra.mxu0 %v992
      %1034 = vmatprep.subr.mxu0 0.0
      %1035 = vmatpush1.xpose.msra.mxu0 %v995
      %1036 = vmatprep.subr.mxu0 0.0
      %1037 = vmatpush1.xpose.msra.mxu0 %v998
      %1038 = vmatprep.subr.mxu0 0.0
      %1039 = vmatpush1.xpose.msra.mxu0 %v1001
      %1040 = vmatprep.subr.mxu0 0.0
      %1041 = vmatpush1.xpose.msra.mxu0 %v1004
      %1042 = vmatprep.subr.mxu0 0.0
      %1043 = vmatpush1.xpose.msra.mxu0 %v1007
      %1044 = vmatprep.subr.mxu0 0.0
      %1045 = vmatpush1.xpose.msra.mxu0 %v1010
      %1046 = vmatprep.subr.mxu0 0.0
      %1047 = vmatpush1.xpose.msra.mxu0 %v1013
      %1048 = vmatprep.subr.mxu0 0.0
      %1049 = vmatpush1.xpose.msra.mxu0 %v1016
      %1050 = vmatprep.subr.mxu0 0.0
      %1051 = vmatpush1.xpose.msra.mxu0 0.0
      %1052 = vmatprep.subr.mxu0 0.0
      %1053 = vmatpush1.xpose.msra.mxu0 0.0
      %1054 = vmatprep.subr.mxu0 0.0
      %1055 = vmatpush1.xpose.msra.mxu0 0.0
      %1056 = vmatprep.subr.mxu0 0.0
      %1057 = vmatpush1.xpose.msra.mxu0 0.0
      %1058 = vmatprep.subr.mxu0 0.0
      %1059 = vmatpush1.xpose.msra.mxu0 0.0
      %1060 = vmatprep.subr.mxu0 0.0
      %1061 = vmatpush1.xpose.msra.mxu0 0.0
      %1062 = vmatprep.subr.mxu0 0.0
      %1063 = vmatpush1.xpose.msra.mxu0 0.0
      %1064 = vmatprep.subr.mxu0 0.0
      %1065 = vmatpush1.xpose.msra.mxu0 0.0
      %1066 = vmatprep.subr.mxu0 0.0
      %1067 = vmatpush1.xpose.msra.mxu0 0.0
      %1068 = vmatprep.subr.mxu0 0.0
      %1069 = vmatpush1.xpose.msra.mxu0 0.0
      %1070 = vmatprep.subr.mxu0 0.0
      %1071 = vmatpush1.xpose.msra.mxu0 0.0
      %1072 = vmatprep.subr.mxu0 0.0
      %1073 = vmatpush1.xpose.msra.mxu0 0.0
      %1074 = vmatprep.subr.mxu0 0.0
      %1075 = vmatpush1.xpose.msra.mxu0 0.0
      %1076 = vmatprep.subr.mxu0 0.0
      %1077 = vmatpush1.xpose.msra.mxu0 0.0
      %1078 = vmatprep.subr.mxu0 0.0
      %1079 = vmatpush1.xpose.msra.mxu0 0.0
      %1080 = vmatprep.subr.mxu0 0.0
      %1081 = vmatpush1.xpose.msra.mxu0 0.0
      %1082 = vmatprep.mubr.f32.mxu0 0.0
      %1083 = vmatmul.mubr.f32.gmra.mrb[0].mxu0 %v968
      %v1084 = vpop.f32.mrb[0].mxu0
      %v1085 = vadd.f32 0.0, %v1084
      %v1086 = vpop.f32.mrb[0].mxu0
      %1087 = vdwg.mxu0
      %1088 = vset.pattern.permute.xlu0 16
      %1089 = vperm.xlu0 %1088, %v884
      %v1090 = vpop.permute.xlu0 %1089
      %1092 = vset.pattern.permute.xlu0 16
      %1093 = vperm.xlu0 %1092, %v889
      %v1094 = vpop.permute.xlu0 %1093
      %1096 = vset.pattern.permute.xlu0 16
      %1097 = vperm.xlu0 %1096, %v894
      %v1098 = vpop.permute.xlu0 %1097
      %1100 = vset.pattern.permute.xlu0 16
      %1101 = vperm.xlu0 %1100, %v899
      %v1102 = vpop.permute.xlu0 %1101
      %1104 = vset.pattern.permute.xlu0 16
      %1105 = vperm.xlu0 %1104, %v904
      %v1106 = vpop.permute.xlu0 %1105
      %1108 = vset.pattern.permute.xlu0 16
      %1109 = vperm.xlu0 %1108, %v909
      %v1110 = vpop.permute.xlu0 %1109
      %1112 = vset.pattern.permute.xlu0 16
      %1113 = vperm.xlu0 %1112, %v914
      %v1114 = vpop.permute.xlu0 %1113
      %1116 = vset.pattern.permute.xlu0 16
      %1117 = vperm.xlu0 %1116, %v919
      %v1118 = vpop.permute.xlu0 %1117
      %1120 = vset.pattern.permute.xlu0 16
      %1121 = vperm.xlu0 %1120, %v924
      %v1122 = vpop.permute.xlu0 %1121
      %1124 = vset.pattern.permute.xlu0 16
      %1125 = vperm.xlu0 %1124, %v929
      %v1126 = vpop.permute.xlu0 %1125
      %1128 = vset.pattern.permute.xlu0 16
      %1129 = vperm.xlu0 %1128, %v934
      %v1130 = vpop.permute.xlu0 %1129
      %1132 = vset.pattern.permute.xlu0 16
      %1133 = vperm.xlu0 %1132, %v939
      %v1134 = vpop.permute.xlu0 %1133
      %1136 = vset.pattern.permute.xlu0 16
      %1137 = vperm.xlu0 %1136, %v944
      %v1138 = vpop.permute.xlu0 %1137
      %1140 = vset.pattern.permute.xlu0 16
      %1141 = vperm.xlu0 %1140, %v949
      %v1142 = vpop.permute.xlu0 %1141
      %1144 = vset.pattern.permute.xlu0 16
      %1145 = vperm.xlu0 %1144, %v954
      %v1146 = vpop.permute.xlu0 %1145
      %1148 = vset.pattern.permute.xlu0 16
      %1149 = vperm.xlu0 %1148, %v959
      %v1150 = vpop.permute.xlu0 %1149
      %v1152 = vlaneseq
      %v1153 = vshrl.u32 %v1152, 7
      %v1154 = vsub.s32 0, %v1153
      %v1155 = vrot.slane %v1085, %v1154
      %v1156 = vadd.f32 %v1090, %v1155
      %v1157 = vadd.f32 %v1094, %v1155
      %v1158 = vadd.f32 %v1098, %v1155
      %v1159 = vadd.f32 %v1102, %v1155
      %v1160 = vadd.f32 %v1106, %v1155
      %v1161 = vadd.f32 %v1110, %v1155
      %v1162 = vadd.f32 %v1114, %v1155
      %v1163 = vadd.f32 %v1118, %v1155
      %v1164 = vadd.f32 %v1122, %v1155
      %v1165 = vadd.f32 %v1126, %v1155
      %v1166 = vadd.f32 %v1130, %v1155
      %v1167 = vadd.f32 %v1134, %v1155
      %v1168 = vadd.f32 %v1138, %v1155
      %v1169 = vadd.f32 %v1142, %v1155
      %v1170 = vadd.f32 %v1146, %v1155
      %v1171 = vadd.f32 %v1150, %v1155
      %v1172 = vmul.f32 %v725, %v1156
      %v1173 = vmul.f32 %v726, %v1157
      %v1174 = vmul.f32 %v727, %v1158
      %v1175 = vmul.f32 %v728, %v1159
      %v1176 = vmul.f32 %v729, %v1160
      %v1177 = vmul.f32 %v730, %v1161
      %v1178 = vmul.f32 %v731, %v1162
      %v1179 = vmul.f32 %v732, %v1163
      %v1180 = vmul.f32 %v733, %v1164
      %v1181 = vmul.f32 %v734, %v1165
      %v1182 = vmul.f32 %v735, %v1166
      %v1183 = vmul.f32 %v736, %v1167
      %v1184 = vmul.f32 %v737, %v1168
      %v1185 = vmul.f32 %v738, %v1169
      %v1186 = vmul.f32 %v739, %v1170
      %v1187 = vmul.f32 %v740, %v1171
      %vm1188 = vcmp.ne.f32.partialorder %v1172, 0.0
      %vm1189 = vcmp.ne.f32.partialorder %v1173, 0.0
      %vm1190 = vcmp.ne.f32.partialorder %v1174, 0.0
      %vm1191 = vcmp.ne.f32.partialorder %v1175, 0.0
      %vm1192 = vcmp.ne.f32.partialorder %v1176, 0.0
      %vm1193 = vcmp.ne.f32.partialorder %v1177, 0.0
      %vm1194 = vcmp.ne.f32.partialorder %v1178, 0.0
      %vm1195 = vcmp.ne.f32.partialorder %v1179, 0.0
      %vm1196 = vcmp.ne.f32.partialorder %v1180, 0.0
      %vm1197 = vcmp.ne.f32.partialorder %v1181, 0.0
      %vm1198 = vcmp.ne.f32.partialorder %v1182, 0.0
      %vm1199 = vcmp.ne.f32.partialorder %v1183, 0.0
      %vm1200 = vcmp.ne.f32.partialorder %v1184, 0.0
      %vm1201 = vcmp.ne.f32.partialorder %v1185, 0.0
      %vm1202 = vcmp.ne.f32.partialorder %v1186, 0.0
      %vm1203 = vcmp.ne.f32.partialorder %v1187, 0.0
      %v1204 = vmul.f32 %v1172, 0.5
      %v1205 = vmul.f32 %v1173, 0.5
      %v1206 = vmul.f32 %v1174, 0.5
      %v1207 = vmul.f32 %v1175, 0.5
      %v1208 = vmul.f32 %v1176, 0.5
      %v1209 = vmul.f32 %v1177, 0.5
      %v1210 = vmul.f32 %v1178, 0.5
      %v1211 = vmul.f32 %v1179, 0.5
      %v1212 = vmul.f32 %v1180, 0.5
      %v1213 = vmul.f32 %v1181, 0.5
      %v1214 = vmul.f32 %v1182, 0.5
      %v1215 = vmul.f32 %v1183, 0.5
      %v1216 = vmul.f32 %v1184, 0.5
      %v1217 = vmul.f32 %v1185, 0.5
      %v1218 = vmul.f32 %v1186, 0.5
      %v1219 = vmul.f32 %v1187, 0.5
      %v1220 = vtanh.pop %v1204
      %v1221 = vtanh.pop %v1205
      %v1222 = vtanh.pop %v1206
      %v1223 = vtanh.pop %v1207
      %v1224 = vtanh.pop %v1208
      %v1225 = vtanh.pop %v1209
      %v1226 = vtanh.pop %v1210
      %v1227 = vtanh.pop %v1211
      %v1228 = vtanh.pop %v1212
      %v1229 = vtanh.pop %v1213
      %v1230 = vtanh.pop %v1214
      %v1231 = vtanh.pop %v1215
      %v1232 = vtanh.pop %v1216
      %v1233 = vtanh.pop %v1217
      %v1234 = vtanh.pop %v1218
      %v1235 = vtanh.pop %v1219
      %v1236 = vmul.f32 %v1220, 0.5
      %v1237 = vmul.f32 %v1221, 0.5
      %v1238 = vmul.f32 %v1222, 0.5
      %v1239 = vmul.f32 %v1223, 0.5
      %v1240 = vmul.f32 %v1224, 0.5
      %v1241 = vmul.f32 %v1225, 0.5
      %v1242 = vmul.f32 %v1226, 0.5
      %v1243 = vmul.f32 %v1227, 0.5
      %v1244 = vmul.f32 %v1228, 0.5
      %v1245 = vmul.f32 %v1229, 0.5
      %v1246 = vmul.f32 %v1230, 0.5
      %v1247 = vmul.f32 %v1231, 0.5
      %v1248 = vmul.f32 %v1232, 0.5
      %v1249 = vmul.f32 %v1233, 0.5
      %v1250 = vmul.f32 %v1234, 0.5
      %v1251 = vmul.f32 %v1235, 0.5
      %v1252 = vmul.f32 %v1236, 1.442695
      %v1253 = vpow.pop %v1252
      %v1254 = vmul.f32 %v1237, 1.442695
      %v1255 = vpow.pop %v1254
      %v1256 = vmul.f32 %v1238, 1.442695
      %v1257 = vpow.pop %v1256
      %v1258 = vmul.f32 %v1239, 1.442695
      %v1259 = vpow.pop %v1258
      %v1260 = vmul.f32 %v1240, 1.442695
      %v1261 = vpow.pop %v1260
      %v1262 = vmul.f32 %v1241, 1.442695
      %v1263 = vpow.pop %v1262
      %v1264 = vmul.f32 %v1242, 1.442695
      %v1265 = vpow.pop %v1264
      %v1266 = vmul.f32 %v1243, 1.442695
      %v1267 = vpow.pop %v1266
      %v1268 = vmul.f32 %v1244, 1.442695
      %v1269 = vpow.pop %v1268
      %v1270 = vmul.f32 %v1245, 1.442695
      %v1271 = vpow.pop %v1270
      %v1272 = vmul.f32 %v1246, 1.442695
      %v1273 = vpow.pop %v1272
      %v1274 = vmul.f32 %v1247, 1.442695
      %v1275 = vpow.pop %v1274
      %v1276 = vmul.f32 %v1248, 1.442695
      %v1277 = vpow.pop %v1276
      %v1278 = vmul.f32 %v1249, 1.442695
      %v1279 = vpow.pop %v1278
      %v1280 = vmul.f32 %v1250, 1.442695
      %v1281 = vpow.pop %v1280
      %v1282 = vmul.f32 %v1251, 1.442695
      %v1283 = vpow.pop %v1282
      %v1284 = vsel %vm1188, %v1253, 0.0
      %v1285 = vsel %vm1189, %v1255, 0.0
      %v1286 = vsel %vm1190, %v1257, 0.0
      %v1287 = vsel %vm1191, %v1259, 0.0
      %v1288 = vsel %vm1192, %v1261, 0.0
      %v1289 = vsel %vm1193, %v1263, 0.0
      %v1290 = vsel %vm1194, %v1265, 0.0
      %v1291 = vsel %vm1195, %v1267, 0.0
      %v1292 = vsel %vm1196, %v1269, 0.0
      %v1293 = vsel %vm1197, %v1271, 0.0
      %v1294 = vsel %vm1198, %v1273, 0.0
      %v1295 = vsel %vm1199, %v1275, 0.0
      %v1296 = vsel %vm1200, %v1277, 0.0
      %v1297 = vsel %vm1201, %v1279, 0.0
      %v1298 = vsel %vm1202, %v1281, 0.0
      %v1299 = vsel %vm1203, %v1283, 0.0
      %1300 = vadd.xlane.f32.xlu0 %v1284
      %v1301 = vpop.xlane.xlu0 %1300
      %1302 = vadd.xlane.f32.xlu0 %v1285
      %v1303 = vpop.xlane.xlu0 %1302
      %1304 = vadd.xlane.f32.xlu0 %v1286
      %v1305 = vpop.xlane.xlu0 %1304
      %1306 = vadd.xlane.f32.xlu0 %v1287
      %v1307 = vpop.xlane.xlu0 %1306
      %1308 = vadd.xlane.f32.xlu0 %v1288
      %v1309 = vpop.xlane.xlu0 %1308
      %1310 = vadd.xlane.f32.xlu0 %v1289
      %v1311 = vpop.xlane.xlu0 %1310
      %1312 = vadd.xlane.f32.xlu0 %v1290
      %v1313 = vpop.xlane.xlu0 %1312
      %1314 = vadd.xlane.f32.xlu0 %v1291
      %v1315 = vpop.xlane.xlu0 %1314
      %1316 = vadd.xlane.f32.xlu0 %v1292
      %v1317 = vpop.xlane.xlu0 %1316
      %1318 = vadd.xlane.f32.xlu0 %v1293
      %v1319 = vpop.xlane.xlu0 %1318
      %1320 = vadd.xlane.f32.xlu0 %v1294
      %v1321 = vpop.xlane.xlu0 %1320
      %1322 = vadd.xlane.f32.xlu0 %v1295
      %v1323 = vpop.xlane.xlu0 %1322
      %1324 = vadd.xlane.f32.xlu0 %v1296
      %v1325 = vpop.xlane.xlu0 %1324
      %1326 = vadd.xlane.f32.xlu0 %v1297
      %v1327 = vpop.xlane.xlu0 %1326
      %1328 = vadd.xlane.f32.xlu0 %v1298
      %v1329 = vpop.xlane.xlu0 %1328
      %1330 = vadd.xlane.f32.xlu0 %v1299
      %v1331 = vpop.xlane.xlu0 %1330
      %v1332 = vrcp.pop %v1301
      %v1333 = vrcp.pop %v1303
      %v1334 = vrcp.pop %v1305
      %v1335 = vrcp.pop %v1307
      %v1336 = vrcp.pop %v1309
      %v1337 = vrcp.pop %v1311
      %v1338 = vrcp.pop %v1313
      %v1339 = vrcp.pop %v1315
      %v1340 = vrcp.pop %v1317
      %v1341 = vrcp.pop %v1319
      %v1342 = vrcp.pop %v1321
      %v1343 = vrcp.pop %v1323
      %v1344 = vrcp.pop %v1325
      %v1345 = vrcp.pop %v1327
      %v1346 = vrcp.pop %v1329
      %v1347 = vrcp.pop %v1331
      %v1348 = vmul.f32 %v1284, %v1332
      %v1349 = vmul.f32 %v1285, %v1333
      %v1350 = vmul.f32 %v1286, %v1334
      %v1351 = vmul.f32 %v1287, %v1335
      %v1352 = vmul.f32 %v1288, %v1336
      %v1353 = vmul.f32 %v1289, %v1337
      %v1354 = vmul.f32 %v1290, %v1338
      %v1355 = vmul.f32 %v1291, %v1339
      %v1356 = vmul.f32 %v1292, %v1340
      %v1357 = vmul.f32 %v1293, %v1341
      %v1358 = vmul.f32 %v1294, %v1342
      %v1359 = vmul.f32 %v1295, %v1343
      %v1360 = vmul.f32 %v1296, %v1344
      %v1361 = vmul.f32 %v1297, %v1345
      %v1362 = vmul.f32 %v1298, %v1346
      %v1363 = vmul.f32 %v1299, %v1347
      %v1364 = vsel %vm1188, %v1348, 0.0
      %v1365 = vsel %vm1189, %v1349, 0.0
      %v1366 = vsel %vm1190, %v1350, 0.0
      %v1367 = vsel %vm1191, %v1351, 0.0
      %v1368 = vsel %vm1192, %v1352, 0.0
      %v1369 = vsel %vm1193, %v1353, 0.0
      %v1370 = vsel %vm1194, %v1354, 0.0
      %v1371 = vsel %vm1195, %v1355, 0.0
      %v1372 = vsel %vm1196, %v1356, 0.0
      %v1373 = vsel %vm1197, %v1357, 0.0
      %v1374 = vsel %vm1198, %v1358, 0.0
      %v1375 = vsel %vm1199, %v1359, 0.0
      %v1376 = vsel %vm1200, %v1360, 0.0
      %v1377 = vsel %vm1201, %v1361, 0.0
      %v1378 = vsel %vm1202, %v1362, 0.0
      %v1379 = vsel %vm1203, %v1363, 0.0
      %1380 = vmatprep.subr.mxu0 0.0
      %1381 = vmatpush1.msra.mxu0 %v884
      %1382 = vmatprep.subr.mxu0 0.0
      %1383 = vmatpush1.msra.mxu0 %v889
      %1384 = vmatprep.subr.mxu0 0.0
      %1385 = vmatpush1.msra.mxu0 %v894
      %1386 = vmatprep.subr.mxu0 0.0
      %1387 = vmatpush1.msra.mxu0 %v899
      %1388 = vmatprep.subr.mxu0 0.0
      %1389 = vmatpush1.msra.mxu0 %v904
      %1390 = vmatprep.subr.mxu0 0.0
      %1391 = vmatpush1.msra.mxu0 %v909
      %1392 = vmatprep.subr.mxu0 0.0
      %1393 = vmatpush1.msra.mxu0 %v914
      %1394 = vmatprep.subr.mxu0 0.0
      %1395 = vmatpush1.msra.mxu0 %v919
      %1396 = vmatprep.subr.mxu0 0.0
      %1397 = vmatpush1.msra.mxu0 %v924
      %1398 = vmatprep.subr.mxu0 0.0
      %1399 = vmatpush1.msra.mxu0 %v929
      %1400 = vmatprep.subr.mxu0 0.0
      %1401 = vmatpush1.msra.mxu0 %v934
      %1402 = vmatprep.subr.mxu0 0.0
      %1403 = vmatpush1.msra.mxu0 %v939
      %1404 = vmatprep.subr.mxu0 0.0
      %1405 = vmatpush1.msra.mxu0 %v944
      %1406 = vmatprep.subr.mxu0 0.0
      %1407 = vmatpush1.msra.mxu0 %v949
      %1408 = vmatprep.subr.mxu0 0.0
      %1409 = vmatpush1.msra.mxu0 %v954
      %1410 = vmatprep.subr.mxu0 0.0
      %1411 = vmatpush1.msra.mxu0 %v959
      %1412 = vmatprep.subr.mxu0 0.0
      %1413 = vmatpush1.msra.mxu0 0.0
      %1414 = vmatprep.subr.mxu0 0.0
      %1415 = vmatpush1.msra.mxu0 0.0
      %1416 = vmatprep.subr.mxu0 0.0
      %1417 = vmatpush1.msra.mxu0 0.0
      %1418 = vmatprep.subr.mxu0 0.0
      %1419 = vmatpush1.msra.mxu0 0.0
      %1420 = vmatprep.subr.mxu0 0.0
      %1421 = vmatpush1.msra.mxu0 0.0
      %1422 = vmatprep.subr.mxu0 0.0
      %1423 = vmatpush1.msra.mxu0 0.0
      %1424 = vmatprep.subr.mxu0 0.0
      %1425 = vmatpush1.msra.mxu0 0.0
      %1426 = vmatprep.subr.mxu0 0.0
      %1427 = vmatpush1.msra.mxu0 0.0
      %1428 = vmatprep.subr.mxu0 0.0
      %1429 = vmatpush1.msra.mxu0 0.0
      %1430 = vmatprep.subr.mxu0 0.0
      %1431 = vmatpush1.msra.mxu0 0.0
      %1432 = vmatprep.subr.mxu0 0.0
      %1433 = vmatpush1.msra.mxu0 0.0
      %1434 = vmatprep.subr.mxu0 0.0
      %1435 = vmatpush1.msra.mxu0 0.0
      %1436 = vmatprep.subr.mxu0 0.0
      %1437 = vmatpush1.msra.mxu0 0.0
      %1438 = vmatprep.subr.mxu0 0.0
      %1439 = vmatpush1.msra.mxu0 0.0
      %1440 = vmatprep.subr.mxu0 0.0
      %1441 = vmatpush1.msra.mxu0 0.0
      %1442 = vmatprep.subr.mxu0 0.0
      %1443 = vmatpush1.msra.mxu0 0.0
      %1444 = vmatprep.mubr.f32.mxu0 0.0
      %1445 = vmatmul.mubr.f32.gmra.mrb[0].mxu0 %v1364
      %v1446 = vpop.f32.mrb[0].mxu0
      %v1447 = vadd.f32 0.0, %v1446
      %v1448 = vpop.f32.mrb[0].mxu0
      %1449 = vmatprep.mubr.f32.mxu0 0.0
      %1450 = vmatmul.mubr.f32.gmra.mrb[0].mxu0 %v1365
      %v1451 = vpop.f32.mrb[0].mxu0
      %v1452 = vadd.f32 0.0, %v1451
      %v1453 = vpop.f32.mrb[0].mxu0
      %1454 = vmatprep.mubr.f32.mxu0 0.0
      %1455 = vmatmul.mubr.f32.gmra.mrb[0].mxu0 %v1366
      %v1456 = vpop.f32.mrb[0].mxu0
      %v1457 = vadd.f32 0.0, %v1456
      %v1458 = vpop.f32.mrb[0].mxu0
      %1459 = vmatprep.mubr.f32.mxu0 0.0
      %1460 = vmatmul.mubr.f32.gmra.mrb[0].mxu0 %v1367
      %v1461 = vpop.f32.mrb[0].mxu0
      %v1462 = vadd.f32 0.0, %v1461
      %v1463 = vpop.f32.mrb[0].mxu0
      %1464 = vmatprep.mubr.f32.mxu0 0.0
      %1465 = vmatmul.mubr.f32.gmra.mrb[0].mxu0 %v1368
      %v1466 = vpop.f32.mrb[0].mxu0
      %v1467 = vadd.f32 0.0, %v1466
      %v1468 = vpop.f32.mrb[0].mxu0
      %1469 = vmatprep.mubr.f32.mxu0 0.0
      %1470 = vmatmul.mubr.f32.gmra.mrb[0].mxu0 %v1369
      %v1471 = vpop.f32.mrb[0].mxu0
      %v1472 = vadd.f32 0.0, %v1471
      %v1473 = vpop.f32.mrb[0].mxu0
      %1474 = vmatprep.mubr.f32.mxu0 0.0
      %1475 = vmatmul.mubr.f32.gmra.mrb[0].mxu0 %v1370
      %v1476 = vpop.f32.mrb[0].mxu0
      %v1477 = vadd.f32 0.0, %v1476
      %v1478 = vpop.f32.mrb[0].mxu0
      %1479 = vmatprep.mubr.f32.mxu0 0.0
      %1480 = vmatmul.mubr.f32.gmra.mrb[0].mxu0 %v1371
      %v1481 = vpop.f32.mrb[0].mxu0
      %v1482 = vadd.f32 0.0, %v1481
      %v1483 = vpop.f32.mrb[0].mxu0
      %1484 = vmatprep.mubr.f32.mxu0 0.0
      %1485 = vmatmul.mubr.f32.gmra.mrb[0].mxu0 %v1372
      %v1486 = vpop.f32.mrb[0].mxu0
      %v1487 = vadd.f32 0.0, %v1486
      %v1488 = vpop.f32.mrb[0].mxu0
      %1489 = vmatprep.mubr.f32.mxu0 0.0
      %1490 = vmatmul.mubr.f32.gmra.mrb[0].mxu0 %v1373
      %v1491 = vpop.f32.mrb[0].mxu0
      %v1492 = vadd.f32 0.0, %v1491
      %v1493 = vpop.f32.mrb[0].mxu0
      %1494 = vmatprep.mubr.f32.mxu0 0.0
      %1495 = vmatmul.mubr.f32.gmra.mrb[0].mxu0 %v1374
      %v1496 = vpop.f32.mrb[0].mxu0
      %v1497 = vadd.f32 0.0, %v1496
      %v1498 = vpop.f32.mrb[0].mxu0
      %1499 = vmatprep.mubr.f32.mxu0 0.0
      %1500 = vmatmul.mubr.f32.gmra.mrb[0].mxu0 %v1375
      %v1501 = vpop.f32.mrb[0].mxu0
      %v1502 = vadd.f32 0.0, %v1501
      %v1503 = vpop.f32.mrb[0].mxu0
      %1504 = vmatprep.mubr.f32.mxu0 0.0
      %1505 = vmatmul.mubr.f32.gmra.mrb[0].mxu0 %v1376
      %v1506 = vpop.f32.mrb[0].mxu0
      %v1507 = vadd.f32 0.0, %v1506
      %v1508 = vpop.f32.mrb[0].mxu0
      %1509 = vmatprep.mubr.f32.mxu0 0.0
      %1510 = vmatmul.mubr.f32.gmra.mrb[0].mxu0 %v1377
      %v1511 = vpop.f32.mrb[0].mxu0
      %v1512 = vadd.f32 0.0, %v1511
      %v1513 = vpop.f32.mrb[0].mxu0
      %1514 = vmatprep.mubr.f32.mxu0 0.0
      %1515 = vmatmul.mubr.f32.gmra.mrb[0].mxu0 %v1378
      %v1516 = vpop.f32.mrb[0].mxu0
      %v1517 = vadd.f32 0.0, %v1516
      %v1518 = vpop.f32.mrb[0].mxu0
      %1519 = vmatprep.mubr.f32.mxu0 0.0
      %1520 = vmatmul.mubr.f32.gmra.mrb[0].mxu0 %v1379
      %v1521 = vpop.f32.mrb[0].mxu0
      %v1522 = vadd.f32 0.0, %v1521
      %v1523 = vpop.f32.mrb[0].mxu0
      %1524 = vdwg.mxu0
      %1525 = vset.pattern.permute.xlu0 17
      %1526 = vperm.xlu0 %1525, %v884
      %v1527 = vpop.permute.xlu0 %1526
      %1529 = vset.pattern.permute.xlu0 17
      %1530 = vperm.xlu0 %1529, %v889
      %v1531 = vpop.permute.xlu0 %1530
      %1533 = vset.pattern.permute.xlu0 17
      %1534 = vperm.xlu0 %1533, %v894
      %v1535 = vpop.permute.xlu0 %1534
      %1537 = vset.pattern.permute.xlu0 17
      %1538 = vperm.xlu0 %1537, %v899
      %v1539 = vpop.permute.xlu0 %1538
      %1541 = vset.pattern.permute.xlu0 17
      %1542 = vperm.xlu0 %1541, %v904
      %v1543 = vpop.permute.xlu0 %1542
      %1545 = vset.pattern.permute.xlu0 17
      %1546 = vperm.xlu0 %1545, %v909
      %v1547 = vpop.permute.xlu0 %1546
      %1549 = vset.pattern.permute.xlu0 17
      %1550 = vperm.xlu0 %1549, %v914
      %v1551 = vpop.permute.xlu0 %1550
      %1553 = vset.pattern.permute.xlu0 17
      %1554 = vperm.xlu0 %1553, %v919
      %v1555 = vpop.permute.xlu0 %1554
      %1557 = vset.pattern.permute.xlu0 17
      %1558 = vperm.xlu0 %1557, %v924
      %v1559 = vpop.permute.xlu0 %1558
      %1561 = vset.pattern.permute.xlu0 17
      %1562 = vperm.xlu0 %1561, %v929
      %v1563 = vpop.permute.xlu0 %1562
      %1565 = vset.pattern.permute.xlu0 17
      %1566 = vperm.xlu0 %1565, %v934
      %v1567 = vpop.permute.xlu0 %1566
      %1569 = vset.pattern.permute.xlu0 17
      %1570 = vperm.xlu0 %1569, %v939
      %v1571 = vpop.permute.xlu0 %1570
      %1573 = vset.pattern.permute.xlu0 17
      %1574 = vperm.xlu0 %1573, %v944
      %v1575 = vpop.permute.xlu0 %1574
      %1577 = vset.pattern.permute.xlu0 17
      %1578 = vperm.xlu0 %1577, %v949
      %v1579 = vpop.permute.xlu0 %1578
      %1581 = vset.pattern.permute.xlu0 17
      %1582 = vperm.xlu0 %1581, %v954
      %v1583 = vpop.permute.xlu0 %1582
      %1585 = vset.pattern.permute.xlu0 17
      %1586 = vperm.xlu0 %1585, %v959
      %v1587 = vpop.permute.xlu0 %1586
      %v1589 = vlaneseq
      %v1590 = vshrl.u32 %v1589, 7
      %v1591 = vsub.s32 1, %v1590
      %v1592 = vrot.slane %v1085, %v1591
      %v1593 = vadd.f32 %v1527, %v1592
      %v1594 = vadd.f32 %v1531, %v1592
      %v1595 = vadd.f32 %v1535, %v1592
      %v1596 = vadd.f32 %v1539, %v1592
      %v1597 = vadd.f32 %v1543, %v1592
      %v1598 = vadd.f32 %v1547, %v1592
      %v1599 = vadd.f32 %v1551, %v1592
      %v1600 = vadd.f32 %v1555, %v1592
      %v1601 = vadd.f32 %v1559, %v1592
      %v1602 = vadd.f32 %v1563, %v1592
      %v1603 = vadd.f32 %v1567, %v1592
      %v1604 = vadd.f32 %v1571, %v1592
      %v1605 = vadd.f32 %v1575, %v1592
      %v1606 = vadd.f32 %v1579, %v1592
      %v1607 = vadd.f32 %v1583, %v1592
      %v1608 = vadd.f32 %v1587, %v1592
      %v1609 = vmul.f32 %v725, %v1593
      %v1610 = vmul.f32 %v726, %v1594
      %v1611 = vmul.f32 %v727, %v1595
      %v1612 = vmul.f32 %v728, %v1596
      %v1613 = vmul.f32 %v729, %v1597
      %v1614 = vmul.f32 %v730, %v1598
      %v1615 = vmul.f32 %v731, %v1599
      %v1616 = vmul.f32 %v732, %v1600
      %v1617 = vmul.f32 %v733, %v1601
      %v1618 = vmul.f32 %v734, %v1602
      %v1619 = vmul.f32 %v735, %v1603
      %v1620 = vmul.f32 %v736, %v1604
      %v1621 = vmul.f32 %v737, %v1605
      %v1622 = vmul.f32 %v738, %v1606
      %v1623 = vmul.f32 %v739, %v1607
      %v1624 = vmul.f32 %v740, %v1608
      %vm1625 = vcmp.ne.f32.partialorder %v1609, 0.0
      %vm1626 = vcmp.ne.f32.partialorder %v1610, 0.0
      %vm1627 = vcmp.ne.f32.partialorder %v1611, 0.0
      %vm1628 = vcmp.ne.f32.partialorder %v1612, 0.0
      %vm1629 = vcmp.ne.f32.partialorder %v1613, 0.0
      %vm1630 = vcmp.ne.f32.partialorder %v1614, 0.0
      %vm1631 = vcmp.ne.f32.partialorder %v1615, 0.0
      %vm1632 = vcmp.ne.f32.partialorder %v1616, 0.0
      %vm1633 = vcmp.ne.f32.partialorder %v1617, 0.0
      %vm1634 = vcmp.ne.f32.partialorder %v1618, 0.0
      %vm1635 = vcmp.ne.f32.partialorder %v1619, 0.0
      %vm1636 = vcmp.ne.f32.partialorder %v1620, 0.0
      %vm1637 = vcmp.ne.f32.partialorder %v1621, 0.0
      %vm1638 = vcmp.ne.f32.partialorder %v1622, 0.0
      %vm1639 = vcmp.ne.f32.partialorder %v1623, 0.0
      %vm1640 = vcmp.ne.f32.partialorder %v1624, 0.0
      %v1641 = vmul.f32 %v1609, 0.5
      %v1642 = vmul.f32 %v1610, 0.5
      %v1643 = vmul.f32 %v1611, 0.5
      %v1644 = vmul.f32 %v1612, 0.5
      %v1645 = vmul.f32 %v1613, 0.5
      %v1646 = vmul.f32 %v1614, 0.5
      %v1647 = vmul.f32 %v1615, 0.5
      %v1648 = vmul.f32 %v1616, 0.5
      %v1649 = vmul.f32 %v1617, 0.5
      %v1650 = vmul.f32 %v1618, 0.5
      %v1651 = vmul.f32 %v1619, 0.5
      %v1652 = vmul.f32 %v1620, 0.5
      %v1653 = vmul.f32 %v1621, 0.5
      %v1654 = vmul.f32 %v1622, 0.5
      %v1655 = vmul.f32 %v1623, 0.5
      %v1656 = vmul.f32 %v1624, 0.5
      %v1657 = vtanh.pop %v1641
      %v1658 = vtanh.pop %v1642
      %v1659 = vtanh.pop %v1643
      %v1660 = vtanh.pop %v1644
      %v1661 = vtanh.pop %v1645
      %v1662 = vtanh.pop %v1646
      %v1663 = vtanh.pop %v1647
      %v1664 = vtanh.pop %v1648
      %v1665 = vtanh.pop %v1649
      %v1666 = vtanh.pop %v1650
      %v1667 = vtanh.pop %v1651
      %v1668 = vtanh.pop %v1652
      %v1669 = vtanh.pop %v1653
      %v1670 = vtanh.pop %v1654
      %v1671 = vtanh.pop %v1655
      %v1672 = vtanh.pop %v1656
      %v1673 = vmul.f32 %v1657, 0.5
      %v1674 = vmul.f32 %v1658, 0.5
      %v1675 = vmul.f32 %v1659, 0.5
      %v1676 = vmul.f32 %v1660, 0.5
      %v1677 = vmul.f32 %v1661, 0.5
      %v1678 = vmul.f32 %v1662, 0.5
      %v1679 = vmul.f32 %v1663, 0.5
      %v1680 = vmul.f32 %v1664, 0.5
      %v1681 = vmul.f32 %v1665, 0.5
      %v1682 = vmul.f32 %v1666, 0.5
      %v1683 = vmul.f32 %v1667, 0.5
      %v1684 = vmul.f32 %v1668, 0.5
      %v1685 = vmul.f32 %v1669, 0.5
      %v1686 = vmul.f32 %v1670, 0.5
      %v1687 = vmul.f32 %v1671, 0.5
      %v1688 = vmul.f32 %v1672, 0.5
      %v1689 = vmul.f32 %v1673, 1.442695
      %v1690 = vpow.pop %v1689
      %v1691 = vmul.f32 %v1674, 1.442695
      %v1692 = vpow.pop %v1691
      %v1693 = vmul.f32 %v1675, 1.442695
      %v1694 = vpow.pop %v1693
      %v1695 = vmul.f32 %v1676, 1.442695
      %v1696 = vpow.pop %v1695
      %v1697 = vmul.f32 %v1677, 1.442695
      %v1698 = vpow.pop %v1697
      %v1699 = vmul.f32 %v1678, 1.442695
      %v1700 = vpow.pop %v1699
      %v1701 = vmul.f32 %v1679, 1.442695
      %v1702 = vpow.pop %v1701
      %v1703 = vmul.f32 %v1680, 1.442695
      %v1704 = vpow.pop %v1703
      %v1705 = vmul.f32 %v1681, 1.442695
      %v1706 = vpow.pop %v1705
      %v1707 = vmul.f32 %v1682, 1.442695
      %v1708 = vpow.pop %v1707
      %v1709 = vmul.f32 %v1683, 1.442695
      %v1710 = vpow.pop %v1709
      %v1711 = vmul.f32 %v1684, 1.442695
      %v1712 = vpow.pop %v1711
      %v1713 = vmul.f32 %v1685, 1.442695
      %v1714 = vpow.pop %v1713
      %v1715 = vmul.f32 %v1686, 1.442695
      %v1716 = vpow.pop %v1715
      %v1717 = vmul.f32 %v1687, 1.442695
      %v1718 = vpow.pop %v1717
      %v1719 = vmul.f32 %v1688, 1.442695
      %v1720 = vpow.pop %v1719
      %v1721 = vsel %vm1625, %v1690, 0.0
      %v1722 = vsel %vm1626, %v1692, 0.0
      %v1723 = vsel %vm1627, %v1694, 0.0
      %v1724 = vsel %vm1628, %v1696, 0.0
      %v1725 = vsel %vm1629, %v1698, 0.0
      %v1726 = vsel %vm1630, %v1700, 0.0
      %v1727 = vsel %vm1631, %v1702, 0.0
      %v1728 = vsel %vm1632, %v1704, 0.0
      %v1729 = vsel %vm1633, %v1706, 0.0
      %v1730 = vsel %vm1634, %v1708, 0.0
      %v1731 = vsel %vm1635, %v1710, 0.0
      %v1732 = vsel %vm1636, %v1712, 0.0
      %v1733 = vsel %vm1637, %v1714, 0.0
      %v1734 = vsel %vm1638, %v1716, 0.0
      %v1735 = vsel %vm1639, %v1718, 0.0
      %v1736 = vsel %vm1640, %v1720, 0.0
      %1737 = vadd.xlane.f32.xlu0 %v1721
      %v1738 = vpop.xlane.xlu0 %1737
      %1739 = vadd.xlane.f32.xlu0 %v1722
      %v1740 = vpop.xlane.xlu0 %1739
      %1741 = vadd.xlane.f32.xlu0 %v1723
      %v1742 = vpop.xlane.xlu0 %1741
      %1743 = vadd.xlane.f32.xlu0 %v1724
      %v1744 = vpop.xlane.xlu0 %1743
      %1745 = vadd.xlane.f32.xlu0 %v1725
      %v1746 = vpop.xlane.xlu0 %1745
      %1747 = vadd.xlane.f32.xlu0 %v1726
      %v1748 = vpop.xlane.xlu0 %1747
      %1749 = vadd.xlane.f32.xlu0 %v1727
      %v1750 = vpop.xlane.xlu0 %1749
      %1751 = vadd.xlane.f32.xlu0 %v1728
      %v1752 = vpop.xlane.xlu0 %1751
      %1753 = vadd.xlane.f32.xlu0 %v1729
      %v1754 = vpop.xlane.xlu0 %1753
      %1755 = vadd.xlane.f32.xlu0 %v1730
      %v1756 = vpop.xlane.xlu0 %1755
      %1757 = vadd.xlane.f32.xlu0 %v1731
      %v1758 = vpop.xlane.xlu0 %1757
      %1759 = vadd.xlane.f32.xlu0 %v1732
      %v1760 = vpop.xlane.xlu0 %1759
      %1761 = vadd.xlane.f32.xlu0 %v1733
      %v1762 = vpop.xlane.xlu0 %1761
      %1763 = vadd.xlane.f32.xlu0 %v1734
      %v1764 = vpop.xlane.xlu0 %1763
      %1765 = vadd.xlane.f32.xlu0 %v1735
      %v1766 = vpop.xlane.xlu0 %1765
      %1767 = vadd.xlane.f32.xlu0 %v1736
      %v1768 = vpop.xlane.xlu0 %1767
      %v1769 = vrcp.pop %v1738
      %v1770 = vrcp.pop %v1740
      %v1771 = vrcp.pop %v1742
      %v1772 = vrcp.pop %v1744
      %v1773 = vrcp.pop %v1746
      %v1774 = vrcp.pop %v1748
      %v1775 = vrcp.pop %v1750
      %v1776 = vrcp.pop %v1752
      %v1777 = vrcp.pop %v1754
      %v1778 = vrcp.pop %v1756
      %v1779 = vrcp.pop %v1758
      %v1780 = vrcp.pop %v1760
      %v1781 = vrcp.pop %v1762
      %v1782 = vrcp.pop %v1764
      %v1783 = vrcp.pop %v1766
      %v1784 = vrcp.pop %v1768
      %v1785 = vmul.f32 %v1721, %v1769
      %v1786 = vmul.f32 %v1722, %v1770
      %v1787 = vmul.f32 %v1723, %v1771
      %v1788 = vmul.f32 %v1724, %v1772
      %v1789 = vmul.f32 %v1725, %v1773
      %v1790 = vmul.f32 %v1726, %v1774
      %v1791 = vmul.f32 %v1727, %v1775
      %v1792 = vmul.f32 %v1728, %v1776
      %v1793 = vmul.f32 %v1729, %v1777
      %v1794 = vmul.f32 %v1730, %v1778
      %v1795 = vmul.f32 %v1731, %v1779
      %v1796 = vmul.f32 %v1732, %v1780
      %v1797 = vmul.f32 %v1733, %v1781
      %v1798 = vmul.f32 %v1734, %v1782
      %v1799 = vmul.f32 %v1735, %v1783
      %v1800 = vmul.f32 %v1736, %v1784
      %v1801 = vsel %vm1625, %v1785, 0.0
      %v1802 = vsel %vm1626, %v1786, 0.0
      %v1803 = vsel %vm1627, %v1787, 0.0
      %v1804 = vsel %vm1628, %v1788, 0.0
      %v1805 = vsel %vm1629, %v1789, 0.0
      %v1806 = vsel %vm1630, %v1790, 0.0
      %v1807 = vsel %vm1631, %v1791, 0.0
      %v1808 = vsel %vm1632, %v1792, 0.0
      %v1809 = vsel %vm1633, %v1793, 0.0
      %v1810 = vsel %vm1634, %v1794, 0.0
      %v1811 = vsel %vm1635, %v1795, 0.0
      %v1812 = vsel %vm1636, %v1796, 0.0
      %v1813 = vsel %vm1637, %v1797, 0.0
      %v1814 = vsel %vm1638, %v1798, 0.0
      %v1815 = vsel %vm1639, %v1799, 0.0
      %v1816 = vsel %vm1640, %v1800, 0.0
      %1817 = vrot.lane.b32.xlu0 %v884, 120
      %v1818 = vpop.permute.xlu0 %1817
      %1819 = vrot.lane.b32.xlu0 %v889, 120
      %v1820 = vpop.permute.xlu0 %1819
      %1821 = vrot.lane.b32.xlu0 %v894, 120
      %v1822 = vpop.permute.xlu0 %1821
      %1823 = vrot.lane.b32.xlu0 %v899, 120
      %v1824 = vpop.permute.xlu0 %1823
      %1825 = vrot.lane.b32.xlu0 %v904, 120
      %v1826 = vpop.permute.xlu0 %1825
      %1827 = vrot.lane.b32.xlu0 %v909, 120
      %v1828 = vpop.permute.xlu0 %1827
      %1829 = vrot.lane.b32.xlu0 %v914, 120
      %v1830 = vpop.permute.xlu0 %1829
      %1831 = vrot.lane.b32.xlu0 %v919, 120
      %v1832 = vpop.permute.xlu0 %1831
      %1833 = vrot.lane.b32.xlu0 %v924, 120
      %v1834 = vpop.permute.xlu0 %1833
      %1835 = vrot.lane.b32.xlu0 %v929, 120
      %v1836 = vpop.permute.xlu0 %1835
      %1837 = vrot.lane.b32.xlu0 %v934, 120
      %v1838 = vpop.permute.xlu0 %1837
      %1839 = vrot.lane.b32.xlu0 %v939, 120
      %v1840 = vpop.permute.xlu0 %1839
      %1841 = vrot.lane.b32.xlu0 %v944, 120
      %v1842 = vpop.permute.xlu0 %1841
      %1843 = vrot.lane.b32.xlu0 %v949, 120
      %v1844 = vpop.permute.xlu0 %1843
      %1845 = vrot.lane.b32.xlu0 %v954, 120
      %v1846 = vpop.permute.xlu0 %1845
      %1847 = vrot.lane.b32.xlu0 %v959, 120
      %v1848 = vpop.permute.xlu0 %1847
      %1865 = vmatprep.subr.mxu0 0.0
      %1866 = vmatpush1.msra.mxu0 %v1818
      %1867 = vmatprep.subr.mxu0 0.0
      %1868 = vmatpush1.msra.mxu0 %v1820
      %1869 = vmatprep.subr.mxu0 0.0
      %1870 = vmatpush1.msra.mxu0 %v1822
      %1871 = vmatprep.subr.mxu0 0.0
      %1872 = vmatpush1.msra.mxu0 %v1824
      %1873 = vmatprep.subr.mxu0 0.0
      %1874 = vmatpush1.msra.mxu0 %v1826
      %1875 = vmatprep.subr.mxu0 0.0
      %1876 = vmatpush1.msra.mxu0 %v1828
      %1877 = vmatprep.subr.mxu0 0.0
      %1878 = vmatpush1.msra.mxu0 %v1830
      %1879 = vmatprep.subr.mxu0 0.0
      %1880 = vmatpush1.msra.mxu0 %v1832
      %1881 = vmatprep.subr.mxu0 0.0
      %1882 = vmatpush1.msra.mxu0 %v1834
      %1883 = vmatprep.subr.mxu0 0.0
      %1884 = vmatpush1.msra.mxu0 %v1836
      %1885 = vmatprep.subr.mxu0 0.0
      %1886 = vmatpush1.msra.mxu0 %v1838
      %1887 = vmatprep.subr.mxu0 0.0
      %1888 = vmatpush1.msra.mxu0 %v1840
      %1889 = vmatprep.subr.mxu0 0.0
      %1890 = vmatpush1.msra.mxu0 %v1842
      %1891 = vmatprep.subr.mxu0 0.0
      %1892 = vmatpush1.msra.mxu0 %v1844
      %1893 = vmatprep.subr.mxu0 0.0
      %1894 = vmatpush1.msra.mxu0 %v1846
      %1895 = vmatprep.subr.mxu0 0.0
      %1896 = vmatpush1.msra.mxu0 %v1848
      %1897 = vmatprep.subr.mxu0 0.0
      %1898 = vmatpush1.msra.mxu0 0.0
      %1899 = vmatprep.subr.mxu0 0.0
      %1900 = vmatpush1.msra.mxu0 0.0
      %1901 = vmatprep.subr.mxu0 0.0
      %1902 = vmatpush1.msra.mxu0 0.0
      %1903 = vmatprep.subr.mxu0 0.0
      %1904 = vmatpush1.msra.mxu0 0.0
      %1905 = vmatprep.subr.mxu0 0.0
      %1906 = vmatpush1.msra.mxu0 0.0
      %1907 = vmatprep.subr.mxu0 0.0
      %1908 = vmatpush1.msra.mxu0 0.0
      %1909 = vmatprep.subr.mxu0 0.0
      %1910 = vmatpush1.msra.mxu0 0.0
      %1911 = vmatprep.subr.mxu0 0.0
      %1912 = vmatpush1.msra.mxu0 0.0
      %1913 = vmatprep.subr.mxu0 0.0
      %1914 = vmatpush1.msra.mxu0 0.0
      %1915 = vmatprep.subr.mxu0 0.0
      %1916 = vmatpush1.msra.mxu0 0.0
      %1917 = vmatprep.subr.mxu0 0.0
      %1918 = vmatpush1.msra.mxu0 0.0
      %1919 = vmatprep.subr.mxu0 0.0
      %1920 = vmatpush1.msra.mxu0 0.0
      %1921 = vmatprep.subr.mxu0 0.0
      %1922 = vmatpush1.msra.mxu0 0.0
      %1923 = vmatprep.subr.mxu0 0.0
      %1924 = vmatpush1.msra.mxu0 0.0
      %1925 = vmatprep.subr.mxu0 0.0
      %1926 = vmatpush1.msra.mxu0 0.0
      %1927 = vmatprep.subr.mxu0 0.0
      %1928 = vmatpush1.msra.mxu0 0.0
      %1929 = vmatprep.mubr.f32.mxu0 0.0
      %1930 = vmatmul.mubr.f32.gmra.mrb[0].mxu0 %v1801
      %v1931 = vpop.f32.mrb[0].mxu0
      %v1932 = vadd.f32 0.0, %v1931
      %v1933 = vpop.f32.mrb[0].mxu0
      %1934 = vmatprep.mubr.f32.mxu0 0.0
      %1935 = vmatmul.mubr.f32.gmra.mrb[0].mxu0 %v1802
      %v1936 = vpop.f32.mrb[0].mxu0
      %v1937 = vadd.f32 0.0, %v1936
      %v1938 = vpop.f32.mrb[0].mxu0
      %1939 = vmatprep.mubr.f32.mxu0 0.0
      %1940 = vmatmul.mubr.f32.gmra.mrb[0].mxu0 %v1803
      %v1941 = vpop.f32.mrb[0].mxu0
      %v1942 = vadd.f32 0.0, %v1941
      %v1943 = vpop.f32.mrb[0].mxu0
      %1944 = vmatprep.mubr.f32.mxu0 0.0
      %1945 = vmatmul.mubr.f32.gmra.mrb[0].mxu0 %v1804
      %v1946 = vpop.f32.mrb[0].mxu0
      %v1947 = vadd.f32 0.0, %v1946
      %v1948 = vpop.f32.mrb[0].mxu0
      %1949 = vmatprep.mubr.f32.mxu0 0.0
      %1950 = vmatmul.mubr.f32.gmra.mrb[0].mxu0 %v1805
      %v1951 = vpop.f32.mrb[0].mxu0
      %v1952 = vadd.f32 0.0, %v1951
      %v1953 = vpop.f32.mrb[0].mxu0
      %1954 = vmatprep.mubr.f32.mxu0 0.0
      %1955 = vmatmul.mubr.f32.gmra.mrb[0].mxu0 %v1806
      %v1956 = vpop.f32.mrb[0].mxu0
      %v1957 = vadd.f32 0.0, %v1956
      %v1958 = vpop.f32.mrb[0].mxu0
      %1959 = vmatprep.mubr.f32.mxu0 0.0
      %1960 = vmatmul.mubr.f32.gmra.mrb[0].mxu0 %v1807
      %v1961 = vpop.f32.mrb[0].mxu0
      %v1962 = vadd.f32 0.0, %v1961
      %v1963 = vpop.f32.mrb[0].mxu0
      %1964 = vmatprep.mubr.f32.mxu0 0.0
      %1965 = vmatmul.mubr.f32.gmra.mrb[0].mxu0 %v1808
      %v1966 = vpop.f32.mrb[0].mxu0
      %v1967 = vadd.f32 0.0, %v1966
      %v1968 = vpop.f32.mrb[0].mxu0
      %1969 = vmatprep.mubr.f32.mxu0 0.0
      %1970 = vmatmul.mubr.f32.gmra.mrb[0].mxu0 %v1809
      %v1971 = vpop.f32.mrb[0].mxu0
      %v1972 = vadd.f32 0.0, %v1971
      %v1973 = vpop.f32.mrb[0].mxu0
      %1974 = vmatprep.mubr.f32.mxu0 0.0
      %1975 = vmatmul.mubr.f32.gmra.mrb[0].mxu0 %v1810
      %v1976 = vpop.f32.mrb[0].mxu0
      %v1977 = vadd.f32 0.0, %v1976
      %v1978 = vpop.f32.mrb[0].mxu0
      %1979 = vmatprep.mubr.f32.mxu0 0.0
      %1980 = vmatmul.mubr.f32.gmra.mrb[0].mxu0 %v1811
      %v1981 = vpop.f32.mrb[0].mxu0
      %v1982 = vadd.f32 0.0, %v1981
      %v1983 = vpop.f32.mrb[0].mxu0
      %1984 = vmatprep.mubr.f32.mxu0 0.0
      %1985 = vmatmul.mubr.f32.gmra.mrb[0].mxu0 %v1812
      %v1986 = vpop.f32.mrb[0].mxu0
      %v1987 = vadd.f32 0.0, %v1986
      %v1988 = vpop.f32.mrb[0].mxu0
      %1989 = vmatprep.mubr.f32.mxu0 0.0
      %1990 = vmatmul.mubr.f32.gmra.mrb[0].mxu0 %v1813
      %v1991 = vpop.f32.mrb[0].mxu0
      %v1992 = vadd.f32 0.0, %v1991
      %v1993 = vpop.f32.mrb[0].mxu0
      %1994 = vmatprep.mubr.f32.mxu0 0.0
      %1995 = vmatmul.mubr.f32.gmra.mrb[0].mxu0 %v1814
      %v1996 = vpop.f32.mrb[0].mxu0
      %v1997 = vadd.f32 0.0, %v1996
      %v1998 = vpop.f32.mrb[0].mxu0
      %1999 = vmatprep.mubr.f32.mxu0 0.0
      %2000 = vmatmul.mubr.f32.gmra.mrb[0].mxu0 %v1815
      %v2001 = vpop.f32.mrb[0].mxu0
      %v2002 = vadd.f32 0.0, %v2001
      %v2003 = vpop.f32.mrb[0].mxu0
      %2004 = vmatprep.mubr.f32.mxu0 0.0
      %2005 = vmatmul.mubr.f32.gmra.mrb[0].mxu0 %v1816
      %v2006 = vpop.f32.mrb[0].mxu0
      %v2007 = vadd.f32 0.0, %v2006
      %v2008 = vpop.f32.mrb[0].mxu0
      %2009 = vdwg.mxu0
      %vm2010 = vcmp.gt.f32.partialorder %v1447, 0.0
      %vm2011 = vcmp.gt.f32.partialorder %v1452, 0.0
      %vm2012 = vcmp.gt.f32.partialorder %v1457, 0.0
      %vm2013 = vcmp.gt.f32.partialorder %v1462, 0.0
      %vm2014 = vcmp.gt.f32.partialorder %v1467, 0.0
      %vm2015 = vcmp.gt.f32.partialorder %v1472, 0.0
      %vm2016 = vcmp.gt.f32.partialorder %v1477, 0.0
      %vm2017 = vcmp.gt.f32.partialorder %v1482, 0.0
      %vm2018 = vcmp.gt.f32.partialorder %v1487, 0.0
      %vm2019 = vcmp.gt.f32.partialorder %v1492, 0.0
      %vm2020 = vcmp.gt.f32.partialorder %v1497, 0.0
      %vm2021 = vcmp.gt.f32.partialorder %v1502, 0.0
      %vm2022 = vcmp.gt.f32.partialorder %v1507, 0.0
      %vm2023 = vcmp.gt.f32.partialorder %v1512, 0.0
      %vm2024 = vcmp.gt.f32.partialorder %v1517, 0.0
      %vm2025 = vcmp.gt.f32.partialorder %v1522, 0.0
      %v2026 = vmin.f32 %v1447, 0.0
      %v2027 = vmin.f32 %v1452, 0.0
      %v2028 = vmin.f32 %v1457, 0.0
      %v2029 = vmin.f32 %v1462, 0.0
      %v2030 = vmin.f32 %v1467, 0.0
      %v2031 = vmin.f32 %v1472, 0.0
      %v2032 = vmin.f32 %v1477, 0.0
      %v2033 = vmin.f32 %v1482, 0.0
      %v2034 = vmin.f32 %v1487, 0.0
      %v2035 = vmin.f32 %v1492, 0.0
      %v2036 = vmin.f32 %v1497, 0.0
      %v2037 = vmin.f32 %v1502, 0.0
      %v2038 = vmin.f32 %v1507, 0.0
      %v2039 = vmin.f32 %v1512, 0.0
      %v2040 = vmin.f32 %v1517, 0.0
      %v2041 = vmin.f32 %v1522, 0.0
      %v2042 = vmul.f32 %v2026, 1.442695
      %v2043 = vpow.pop %v2042
      %v2044 = vmul.f32 %v2027, 1.442695
      %v2045 = vpow.pop %v2044
      %v2046 = vmul.f32 %v2028, 1.442695
      %v2047 = vpow.pop %v2046
      %v2048 = vmul.f32 %v2029, 1.442695
      %v2049 = vpow.pop %v2048
      %v2050 = vmul.f32 %v2030, 1.442695
      %v2051 = vpow.pop %v2050
      %v2052 = vmul.f32 %v2031, 1.442695
      %v2053 = vpow.pop %v2052
      %v2054 = vmul.f32 %v2032, 1.442695
      %v2055 = vpow.pop %v2054
      %v2056 = vmul.f32 %v2033, 1.442695
      %v2057 = vpow.pop %v2056
      %v2058 = vmul.f32 %v2034, 1.442695
      %v2059 = vpow.pop %v2058
      %v2060 = vmul.f32 %v2035, 1.442695
      %v2061 = vpow.pop %v2060
      %v2062 = vmul.f32 %v2036, 1.442695
      %v2063 = vpow.pop %v2062
      %v2064 = vmul.f32 %v2037, 1.442695
      %v2065 = vpow.pop %v2064
      %v2066 = vmul.f32 %v2038, 1.442695
      %v2067 = vpow.pop %v2066
      %v2068 = vmul.f32 %v2039, 1.442695
      %v2069 = vpow.pop %v2068
      %v2070 = vmul.f32 %v2040, 1.442695
      %v2071 = vpow.pop %v2070
      %v2072 = vmul.f32 %v2041, 1.442695
      %v2073 = vpow.pop %v2072
      %v2074 = vsub.f32 %v2043, 1.0
      %v2075 = vsub.f32 %v2045, 1.0
      %v2076 = vsub.f32 %v2047, 1.0
      %v2077 = vsub.f32 %v2049, 1.0
      %v2078 = vsub.f32 %v2051, 1.0
      %v2079 = vsub.f32 %v2053, 1.0
      %v2080 = vsub.f32 %v2055, 1.0
      %v2081 = vsub.f32 %v2057, 1.0
      %v2082 = vsub.f32 %v2059, 1.0
      %v2083 = vsub.f32 %v2061, 1.0
      %v2084 = vsub.f32 %v2063, 1.0
      %v2085 = vsub.f32 %v2065, 1.0
      %v2086 = vsub.f32 %v2067, 1.0
      %v2087 = vsub.f32 %v2069, 1.0
      %v2088 = vsub.f32 %v2071, 1.0
      %v2089 = vsub.f32 %v2073, 1.0
      %v2090 = vsel %vm2010, %v1447, %v2074
      %v2091 = vsel %vm2011, %v1452, %v2075
      %v2092 = vsel %vm2012, %v1457, %v2076
      %v2093 = vsel %vm2013, %v1462, %v2077
      %v2094 = vsel %vm2014, %v1467, %v2078
      %v2095 = vsel %vm2015, %v1472, %v2079
      %v2096 = vsel %vm2016, %v1477, %v2080
      %v2097 = vsel %vm2017, %v1482, %v2081
      %v2098 = vsel %vm2018, %v1487, %v2082
      %v2099 = vsel %vm2019, %v1492, %v2083
      %v2100 = vsel %vm2020, %v1497, %v2084
      %v2101 = vsel %vm2021, %v1502, %v2085
      %v2102 = vsel %vm2022, %v1507, %v2086
      %v2103 = vsel %vm2023, %v1512, %v2087
      %v2104 = vsel %vm2024, %v1517, %v2088
      %v2105 = vsel %vm2025, %v1522, %v2089
      %vm2106 = vcmp.gt.f32.partialorder %v1932, 0.0
      %vm2107 = vcmp.gt.f32.partialorder %v1937, 0.0
      %vm2108 = vcmp.gt.f32.partialorder %v1942, 0.0
      %vm2109 = vcmp.gt.f32.partialorder %v1947, 0.0
      %vm2110 = vcmp.gt.f32.partialorder %v1952, 0.0
      %vm2111 = vcmp.gt.f32.partialorder %v1957, 0.0
      %vm2112 = vcmp.gt.f32.partialorder %v1962, 0.0
      %vm2113 = vcmp.gt.f32.partialorder %v1967, 0.0
      %vm2114 = vcmp.gt.f32.partialorder %v1972, 0.0
      %vm2115 = vcmp.gt.f32.partialorder %v1977, 0.0
      %vm2116 = vcmp.gt.f32.partialorder %v1982, 0.0
      %vm2117 = vcmp.gt.f32.partialorder %v1987, 0.0
      %vm2118 = vcmp.gt.f32.partialorder %v1992, 0.0
      %vm2119 = vcmp.gt.f32.partialorder %v1997, 0.0
      %vm2120 = vcmp.gt.f32.partialorder %v2002, 0.0
      %vm2121 = vcmp.gt.f32.partialorder %v2007, 0.0
      %v2122 = vmin.f32 %v1932, 0.0
      %v2123 = vmin.f32 %v1937, 0.0
      %v2124 = vmin.f32 %v1942, 0.0
      %v2125 = vmin.f32 %v1947, 0.0
      %v2126 = vmin.f32 %v1952, 0.0
      %v2127 = vmin.f32 %v1957, 0.0
      %v2128 = vmin.f32 %v1962, 0.0
      %v2129 = vmin.f32 %v1967, 0.0
      %v2130 = vmin.f32 %v1972, 0.0
      %v2131 = vmin.f32 %v1977, 0.0
      %v2132 = vmin.f32 %v1982, 0.0
      %v2133 = vmin.f32 %v1987, 0.0
      %v2134 = vmin.f32 %v1992, 0.0
      %v2135 = vmin.f32 %v1997, 0.0
      %v2136 = vmin.f32 %v2002, 0.0
      %v2137 = vmin.f32 %v2007, 0.0
      %v2138 = vmul.f32 %v2122, 1.442695
      %v2139 = vpow.pop %v2138
      %v2140 = vmul.f32 %v2123, 1.442695
      %v2141 = vpow.pop %v2140
      %v2142 = vmul.f32 %v2124, 1.442695
      %v2143 = vpow.pop %v2142
      %v2144 = vmul.f32 %v2125, 1.442695
      %v2145 = vpow.pop %v2144
      %v2146 = vmul.f32 %v2126, 1.442695
      %v2147 = vpow.pop %v2146
      %v2148 = vmul.f32 %v2127, 1.442695
      %v2149 = vpow.pop %v2148
      %v2150 = vmul.f32 %v2128, 1.442695
      %v2151 = vpow.pop %v2150
      %v2152 = vmul.f32 %v2129, 1.442695
      %v2153 = vpow.pop %v2152
      %v2154 = vmul.f32 %v2130, 1.442695
      %v2155 = vpow.pop %v2154
      %v2156 = vmul.f32 %v2131, 1.442695
      %v2157 = vpow.pop %v2156
      %v2158 = vmul.f32 %v2132, 1.442695
      %v2159 = vpow.pop %v2158
      %v2160 = vmul.f32 %v2133, 1.442695
      %v2161 = vpow.pop %v2160
      %v2162 = vmul.f32 %v2134, 1.442695
      %v2163 = vpow.pop %v2162
      %v2164 = vmul.f32 %v2135, 1.442695
      %v2165 = vpow.pop %v2164
      %v2166 = vmul.f32 %v2136, 1.442695
      %v2167 = vpow.pop %v2166
      %v2168 = vmul.f32 %v2137, 1.442695
      %v2169 = vpow.pop %v2168
      %v2170 = vsub.f32 %v2139, 1.0
      %v2171 = vsub.f32 %v2141, 1.0
      %v2172 = vsub.f32 %v2143, 1.0
      %v2173 = vsub.f32 %v2145, 1.0
      %v2174 = vsub.f32 %v2147, 1.0
      %v2175 = vsub.f32 %v2149, 1.0
      %v2176 = vsub.f32 %v2151, 1.0
      %v2177 = vsub.f32 %v2153, 1.0
      %v2178 = vsub.f32 %v2155, 1.0
      %v2179 = vsub.f32 %v2157, 1.0
      %v2180 = vsub.f32 %v2159, 1.0
      %v2181 = vsub.f32 %v2161, 1.0
      %v2182 = vsub.f32 %v2163, 1.0
      %v2183 = vsub.f32 %v2165, 1.0
      %v2184 = vsub.f32 %v2167, 1.0
      %v2185 = vsub.f32 %v2169, 1.0
      %v2186 = vsel %vm2106, %v1932, %v2170
      %v2187 = vsel %vm2107, %v1937, %v2171
      %v2188 = vsel %vm2108, %v1942, %v2172
      %v2189 = vsel %vm2109, %v1947, %v2173
      %v2190 = vsel %vm2110, %v1952, %v2174
      %v2191 = vsel %vm2111, %v1957, %v2175
      %v2192 = vsel %vm2112, %v1962, %v2176
      %v2193 = vsel %vm2113, %v1967, %v2177
      %v2194 = vsel %vm2114, %v1972, %v2178
      %v2195 = vsel %vm2115, %v1977, %v2179
      %v2196 = vsel %vm2116, %v1982, %v2180
      %v2197 = vsel %vm2117, %v1987, %v2181
      %v2198 = vsel %vm2118, %v1992, %v2182
      %v2199 = vsel %vm2119, %v1997, %v2183
      %v2200 = vsel %vm2120, %v2002, %v2184
      %v2201 = vsel %vm2121, %v2007, %v2185
      %vm2202 = vcmask 64512
      %v2204 = vsel %vm2202, %v2186, 0
      %v2207 = vsel %vm2202, %v2187, 0
      %v2210 = vsel %vm2202, %v2188, 0
      %v2213 = vsel %vm2202, %v2189, 0
      %v2216 = vsel %vm2202, %v2190, 0
      %v2219 = vsel %vm2202, %v2191, 0
      %v2222 = vsel %vm2202, %v2192, 0
      %v2225 = vsel %vm2202, %v2193, 0
      %v2228 = vsel %vm2202, %v2194, 0
      %v2231 = vsel %vm2202, %v2195, 0
      %v2234 = vsel %vm2202, %v2196, 0
      %v2237 = vsel %vm2202, %v2197, 0
      %v2240 = vsel %vm2202, %v2198, 0
      %v2243 = vsel %vm2202, %v2199, 0
      %v2246 = vsel %vm2202, %v2200, 0
      %v2249 = vsel %vm2202, %v2201, 0
      %2251 = vmatprep.subr.mxu0 0.0
      %2252 = vmatpush1.msra.mxu0 %v964
      %2253 = vmatprep.subr.mxu0 0.0
      %2254 = vmatpush1.msra.mxu0 0.0
      %2255 = vmatprep.subr.mxu0 0.0
      %2256 = vmatpush1.msra.mxu0 0.0
      %2257 = vmatprep.subr.mxu0 0.0
      %2258 = vmatpush1.msra.mxu0 0.0
      %2259 = vmatprep.subr.mxu0 0.0
      %2260 = vmatpush1.msra.mxu0 0.0
      %2261 = vmatprep.subr.mxu0 0.0
      %2262 = vmatpush1.msra.mxu0 0.0
      %2263 = vmatprep.subr.mxu0 0.0
      %2264 = vmatpush1.msra.mxu0 0.0
      %2265 = vmatprep.subr.mxu0 0.0
      %2266 = vmatpush1.msra.mxu0 0.0
      %2267 = vmatprep.subr.mxu0 0.0
      %2268 = vmatpush1.msra.mxu0 0.0
      %2269 = vmatprep.subr.mxu0 0.0
      %2270 = vmatpush1.msra.mxu0 0.0
      %2271 = vmatprep.subr.mxu0 0.0
      %2272 = vmatpush1.msra.mxu0 0.0
      %2273 = vmatprep.subr.mxu0 0.0
      %2274 = vmatpush1.msra.mxu0 0.0
      %2275 = vmatprep.subr.mxu0 0.0
      %2276 = vmatpush1.msra.mxu0 0.0
      %2277 = vmatprep.subr.mxu0 0.0
      %2278 = vmatpush1.msra.mxu0 0.0
      %2279 = vmatprep.subr.mxu0 0.0
      %2280 = vmatpush1.msra.mxu0 0.0
      %2281 = vmatprep.subr.mxu0 0.0
      %2282 = vmatpush1.msra.mxu0 0.0
      %2283 = vmatprep.subr.mxu0 0.0
      %2284 = vmatpush1.msra.mxu0 0.0
      %2285 = vmatprep.subr.mxu0 0.0
      %2286 = vmatpush1.msra.mxu0 0.0
      %2287 = vmatprep.subr.mxu0 0.0
      %2288 = vmatpush1.msra.mxu0 0.0
      %2289 = vmatprep.subr.mxu0 0.0
      %2290 = vmatpush1.msra.mxu0 0.0
      %2291 = vmatprep.subr.mxu0 0.0
      %2292 = vmatpush1.msra.mxu0 0.0
      %2293 = vmatprep.subr.mxu0 0.0
      %2294 = vmatpush1.msra.mxu0 0.0
      %2295 = vmatprep.subr.mxu0 0.0
      %2296 = vmatpush1.msra.mxu0 0.0
      %2297 = vmatprep.subr.mxu0 0.0
      %2298 = vmatpush1.msra.mxu0 0.0
      %2299 = vmatprep.subr.mxu0 0.0
      %2300 = vmatpush1.msra.mxu0 0.0
      %2301 = vmatprep.subr.mxu0 0.0
      %2302 = vmatpush1.msra.mxu0 0.0
      %2303 = vmatprep.subr.mxu0 0.0
      %2304 = vmatpush1.msra.mxu0 0.0
      %2305 = vmatprep.subr.mxu0 0.0
      %2306 = vmatpush1.msra.mxu0 0.0
      %2307 = vmatprep.subr.mxu0 0.0
      %2308 = vmatpush1.msra.mxu0 0.0
      %2309 = vmatprep.subr.mxu0 0.0
      %2310 = vmatpush1.msra.mxu0 0.0
      %2311 = vmatprep.subr.mxu0 0.0
      %2312 = vmatpush1.msra.mxu0 0.0
      %2313 = vmatprep.subr.mxu0 0.0
      %2314 = vmatpush1.msra.mxu0 0.0
      %2315 = vmatprep.mubr.f32.mxu0 0.0
      %2316 = vmatmul.mubr.f32.gmra.mrb[0].mxu0 %v2204
      %v2317 = vpop.f32.mrb[0].mxu0
      %v2318 = vadd.f32 0.0, %v2317
      %v2319 = vpop.f32.mrb[0].mxu0
      %2320 = vmatprep.mubr.f32.mxu0 0.0
      %2321 = vmatmul.mubr.f32.gmra.mrb[0].mxu0 %v2207
      %v2322 = vpop.f32.mrb[0].mxu0
      %v2323 = vadd.f32 0.0, %v2322
      %v2324 = vpop.f32.mrb[0].mxu0
      %2325 = vmatprep.mubr.f32.mxu0 0.0
      %2326 = vmatmul.mubr.f32.gmra.mrb[0].mxu0 %v2210
      %v2327 = vpop.f32.mrb[0].mxu0
      %v2328 = vadd.f32 0.0, %v2327
      %v2329 = vpop.f32.mrb[0].mxu0
      %2330 = vmatprep.mubr.f32.mxu0 0.0
      %2331 = vmatmul.mubr.f32.gmra.mrb[0].mxu0 %v2213
      %v2332 = vpop.f32.mrb[0].mxu0
      %v2333 = vadd.f32 0.0, %v2332
      %v2334 = vpop.f32.mrb[0].mxu0
      %2335 = vmatprep.mubr.f32.mxu0 0.0
      %2336 = vmatmul.mubr.f32.gmra.mrb[0].mxu0 %v2216
      %v2337 = vpop.f32.mrb[0].mxu0
      %v2338 = vadd.f32 0.0, %v2337
      %v2339 = vpop.f32.mrb[0].mxu0
      %2340 = vmatprep.mubr.f32.mxu0 0.0
      %2341 = vmatmul.mubr.f32.gmra.mrb[0].mxu0 %v2219
      %v2342 = vpop.f32.mrb[0].mxu0
      %v2343 = vadd.f32 0.0, %v2342
      %v2344 = vpop.f32.mrb[0].mxu0
      %2345 = vmatprep.mubr.f32.mxu0 0.0
      %2346 = vmatmul.mubr.f32.gmra.mrb[0].mxu0 %v2222
      %v2347 = vpop.f32.mrb[0].mxu0
      %v2348 = vadd.f32 0.0, %v2347
      %v2349 = vpop.f32.mrb[0].mxu0
      %2350 = vmatprep.mubr.f32.mxu0 0.0
      %2351 = vmatmul.mubr.f32.gmra.mrb[0].mxu0 %v2225
      %v2352 = vpop.f32.mrb[0].mxu0
      %v2353 = vadd.f32 0.0, %v2352
      %v2354 = vpop.f32.mrb[0].mxu0
      %2355 = vmatprep.mubr.f32.mxu0 0.0
      %2356 = vmatmul.mubr.f32.gmra.mrb[0].mxu0 %v2228
      %v2357 = vpop.f32.mrb[0].mxu0
      %v2358 = vadd.f32 0.0, %v2357
      %v2359 = vpop.f32.mrb[0].mxu0
      %2360 = vmatprep.mubr.f32.mxu0 0.0
      %2361 = vmatmul.mubr.f32.gmra.mrb[0].mxu0 %v2231
      %v2362 = vpop.f32.mrb[0].mxu0
      %v2363 = vadd.f32 0.0, %v2362
      %v2364 = vpop.f32.mrb[0].mxu0
      %2365 = vmatprep.mubr.f32.mxu0 0.0
      %2366 = vmatmul.mubr.f32.gmra.mrb[0].mxu0 %v2234
      %v2367 = vpop.f32.mrb[0].mxu0
      %v2368 = vadd.f32 0.0, %v2367
      %v2369 = vpop.f32.mrb[0].mxu0
      %2370 = vmatprep.mubr.f32.mxu0 0.0
      %2371 = vmatmul.mubr.f32.gmra.mrb[0].mxu0 %v2237
      %v2372 = vpop.f32.mrb[0].mxu0
      %v2373 = vadd.f32 0.0, %v2372
      %v2374 = vpop.f32.mrb[0].mxu0
      %2375 = vmatprep.mubr.f32.mxu0 0.0
      %2376 = vmatmul.mubr.f32.gmra.mrb[0].mxu0 %v2240
      %v2377 = vpop.f32.mrb[0].mxu0
      %v2378 = vadd.f32 0.0, %v2377
      %v2379 = vpop.f32.mrb[0].mxu0
      %2380 = vmatprep.mubr.f32.mxu0 0.0
      %2381 = vmatmul.mubr.f32.gmra.mrb[0].mxu0 %v2243
      %v2382 = vpop.f32.mrb[0].mxu0
      %v2383 = vadd.f32 0.0, %v2382
      %v2384 = vpop.f32.mrb[0].mxu0
      %2385 = vmatprep.mubr.f32.mxu0 0.0
      %2386 = vmatmul.mubr.f32.gmra.mrb[0].mxu0 %v2246
      %v2387 = vpop.f32.mrb[0].mxu0
      %v2388 = vadd.f32 0.0, %v2387
      %v2389 = vpop.f32.mrb[0].mxu0
      %2390 = vmatprep.mubr.f32.mxu0 0.0
      %2391 = vmatmul.mubr.f32.gmra.mrb[0].mxu0 %v2249
      %v2392 = vpop.f32.mrb[0].mxu0
      %v2393 = vadd.f32 0.0, %v2392
      %v2394 = vpop.f32.mrb[0].mxu0
      %2395 = vdwg.mxu0
      %v2397 = vsel %vm2202, %v2090, 0
      %v2400 = vsel %vm2202, %v2091, 0
      %v2403 = vsel %vm2202, %v2092, 0
      %v2406 = vsel %vm2202, %v2093, 0
      %v2409 = vsel %vm2202, %v2094, 0
      %v2412 = vsel %vm2202, %v2095, 0
      %v2415 = vsel %vm2202, %v2096, 0
      %v2418 = vsel %vm2202, %v2097, 0
      %v2421 = vsel %vm2202, %v2098, 0
      %v2424 = vsel %vm2202, %v2099, 0
      %v2427 = vsel %vm2202, %v2100, 0
      %v2430 = vsel %vm2202, %v2101, 0
      %v2433 = vsel %vm2202, %v2102, 0
      %v2436 = vsel %vm2202, %v2103, 0
      %v2439 = vsel %vm2202, %v2104, 0
      %v2442 = vsel %vm2202, %v2105, 0
      %2444 = vmatprep.subr.mxu0 0.0
      %2445 = vmatpush1.msra.mxu0 %v963
      %2446 = vmatprep.subr.mxu0 0.0
      %2447 = vmatpush1.msra.mxu0 0.0
      %2448 = vmatprep.subr.mxu0 0.0
      %2449 = vmatpush1.msra.mxu0 0.0
      %2450 = vmatprep.subr.mxu0 0.0
      %2451 = vmatpush1.msra.mxu0 0.0
      %2452 = vmatprep.subr.mxu0 0.0
      %2453 = vmatpush1.msra.mxu0 0.0
      %2454 = vmatprep.subr.mxu0 0.0
      %2455 = vmatpush1.msra.mxu0 0.0
      %2456 = vmatprep.subr.mxu0 0.0
      %2457 = vmatpush1.msra.mxu0 0.0
      %2458 = vmatprep.subr.mxu0 0.0
      %2459 = vmatpush1.msra.mxu0 0.0
      %2460 = vmatprep.subr.mxu0 0.0
      %2461 = vmatpush1.msra.mxu0 0.0
      %2462 = vmatprep.subr.mxu0 0.0
      %2463 = vmatpush1.msra.mxu0 0.0
      %2464 = vmatprep.subr.mxu0 0.0
      %2465 = vmatpush1.msra.mxu0 0.0
      %2466 = vmatprep.subr.mxu0 0.0
      %2467 = vmatpush1.msra.mxu0 0.0
      %2468 = vmatprep.subr.mxu0 0.0
      %2469 = vmatpush1.msra.mxu0 0.0
      %2470 = vmatprep.subr.mxu0 0.0
      %2471 = vmatpush1.msra.mxu0 0.0
      %2472 = vmatprep.subr.mxu0 0.0
      %2473 = vmatpush1.msra.mxu0 0.0
      %2474 = vmatprep.subr.mxu0 0.0
      %2475 = vmatpush1.msra.mxu0 0.0
      %2476 = vmatprep.subr.mxu0 0.0
      %2477 = vmatpush1.msra.mxu0 0.0
      %2478 = vmatprep.subr.mxu0 0.0
      %2479 = vmatpush1.msra.mxu0 0.0
      %2480 = vmatprep.subr.mxu0 0.0
      %2481 = vmatpush1.msra.mxu0 0.0
      %2482 = vmatprep.subr.mxu0 0.0
      %2483 = vmatpush1.msra.mxu0 0.0
      %2484 = vmatprep.subr.mxu0 0.0
      %2485 = vmatpush1.msra.mxu0 0.0
      %2486 = vmatprep.subr.mxu0 0.0
      %2487 = vmatpush1.msra.mxu0 0.0
      %2488 = vmatprep.subr.mxu0 0.0
      %2489 = vmatpush1.msra.mxu0 0.0
      %2490 = vmatprep.subr.mxu0 0.0
      %2491 = vmatpush1.msra.mxu0 0.0
      %2492 = vmatprep.subr.mxu0 0.0
      %2493 = vmatpush1.msra.mxu0 0.0
      %2494 = vmatprep.subr.mxu0 0.0
      %2495 = vmatpush1.msra.mxu0 0.0
      %2496 = vmatprep.subr.mxu0 0.0
      %2497 = vmatpush1.msra.mxu0 0.0
      %2498 = vmatprep.subr.mxu0 0.0
      %2499 = vmatpush1.msra.mxu0 0.0
      %2500 = vmatprep.subr.mxu0 0.0
      %2501 = vmatpush1.msra.mxu0 0.0
      %2502 = vmatprep.subr.mxu0 0.0
      %2503 = vmatpush1.msra.mxu0 0.0
      %2504 = vmatprep.subr.mxu0 0.0
      %2505 = vmatpush1.msra.mxu0 0.0
      %2506 = vmatprep.subr.mxu0 0.0
      %2507 = vmatpush1.msra.mxu0 0.0
      %2508 = vmatprep.mubr.f32.mxu0 0.0
      %2509 = vmatmul.mubr.f32.gmra.mrb[0].mxu0 %v2397
      %v2510 = vpop.f32.mrb[0].mxu0
      %v2511 = vadd.f32 %v2318, %v2510
      %v2512 = vpop.f32.mrb[0].mxu0
      %2513 = vmatprep.mubr.f32.mxu0 0.0
      %2514 = vmatmul.mubr.f32.gmra.mrb[0].mxu0 %v2400
      %v2515 = vpop.f32.mrb[0].mxu0
      %v2516 = vadd.f32 %v2323, %v2515
      %v2517 = vpop.f32.mrb[0].mxu0
      %2518 = vmatprep.mubr.f32.mxu0 0.0
      %2519 = vmatmul.mubr.f32.gmra.mrb[0].mxu0 %v2403
      %v2520 = vpop.f32.mrb[0].mxu0
      %v2521 = vadd.f32 %v2328, %v2520
      %v2522 = vpop.f32.mrb[0].mxu0
      %2523 = vmatprep.mubr.f32.mxu0 0.0
      %2524 = vmatmul.mubr.f32.gmra.mrb[0].mxu0 %v2406
      %v2525 = vpop.f32.mrb[0].mxu0
      %v2526 = vadd.f32 %v2333, %v2525
      %v2527 = vpop.f32.mrb[0].mxu0
      %2528 = vmatprep.mubr.f32.mxu0 0.0
      %2529 = vmatmul.mubr.f32.gmra.mrb[0].mxu0 %v2409
      %v2530 = vpop.f32.mrb[0].mxu0
      %v2531 = vadd.f32 %v2338, %v2530
      %v2532 = vpop.f32.mrb[0].mxu0
      %2533 = vmatprep.mubr.f32.mxu0 0.0
      %2534 = vmatmul.mubr.f32.gmra.mrb[0].mxu0 %v2412
      %v2535 = vpop.f32.mrb[0].mxu0
      %v2536 = vadd.f32 %v2343, %v2535
      %v2537 = vpop.f32.mrb[0].mxu0
      %2538 = vmatprep.mubr.f32.mxu0 0.0
      %2539 = vmatmul.mubr.f32.gmra.mrb[0].mxu0 %v2415
      %v2540 = vpop.f32.mrb[0].mxu0
      %v2541 = vadd.f32 %v2348, %v2540
      %v2542 = vpop.f32.mrb[0].mxu0
      %2543 = vmatprep.mubr.f32.mxu0 0.0
      %2544 = vmatmul.mubr.f32.gmra.mrb[0].mxu0 %v2418
      %v2545 = vpop.f32.mrb[0].mxu0
      %v2546 = vadd.f32 %v2353, %v2545
      %v2547 = vpop.f32.mrb[0].mxu0
      %2548 = vmatprep.mubr.f32.mxu0 0.0
      %2549 = vmatmul.mubr.f32.gmra.mrb[0].mxu0 %v2421
      %v2550 = vpop.f32.mrb[0].mxu0
      %v2551 = vadd.f32 %v2358, %v2550
      %v2552 = vpop.f32.mrb[0].mxu0
      %2553 = vmatprep.mubr.f32.mxu0 0.0
      %2554 = vmatmul.mubr.f32.gmra.mrb[0].mxu0 %v2424
      %v2555 = vpop.f32.mrb[0].mxu0
      %v2556 = vadd.f32 %v2363, %v2555
      %v2557 = vpop.f32.mrb[0].mxu0
      %2558 = vmatprep.mubr.f32.mxu0 0.0
      %2559 = vmatmul.mubr.f32.gmra.mrb[0].mxu0 %v2427
      %v2560 = vpop.f32.mrb[0].mxu0
      %v2561 = vadd.f32 %v2368, %v2560
      %v2562 = vpop.f32.mrb[0].mxu0
      %2563 = vmatprep.mubr.f32.mxu0 0.0
      %2564 = vmatmul.mubr.f32.gmra.mrb[0].mxu0 %v2430
      %v2565 = vpop.f32.mrb[0].mxu0
      %v2566 = vadd.f32 %v2373, %v2565
      %v2567 = vpop.f32.mrb[0].mxu0
      %2568 = vmatprep.mubr.f32.mxu0 0.0
      %2569 = vmatmul.mubr.f32.gmra.mrb[0].mxu0 %v2433
      %v2570 = vpop.f32.mrb[0].mxu0
      %v2571 = vadd.f32 %v2378, %v2570
      %v2572 = vpop.f32.mrb[0].mxu0
      %2573 = vmatprep.mubr.f32.mxu0 0.0
      %2574 = vmatmul.mubr.f32.gmra.mrb[0].mxu0 %v2436
      %v2575 = vpop.f32.mrb[0].mxu0
      %v2576 = vadd.f32 %v2383, %v2575
      %v2577 = vpop.f32.mrb[0].mxu0
      %2578 = vmatprep.mubr.f32.mxu0 0.0
      %2579 = vmatmul.mubr.f32.gmra.mrb[0].mxu0 %v2439
      %v2580 = vpop.f32.mrb[0].mxu0
      %v2581 = vadd.f32 %v2388, %v2580
      %v2582 = vpop.f32.mrb[0].mxu0
      %2583 = vmatprep.mubr.f32.mxu0 0.0
      %2584 = vmatmul.mubr.f32.gmra.mrb[0].mxu0 %v2442
      %v2585 = vpop.f32.mrb[0].mxu0
      %v2586 = vadd.f32 %v2393, %v2585
      %v2587 = vpop.f32.mrb[0].mxu0
      %2588 = vdwg.mxu0
      %v2590 = vlaneseq
      %v2591 = vshrl.u32 %v2590, 7
      %v2592 = vsub.s32 0, %v2591
      %v2593 = vrot.slane %v965, %v2592
      %v2595 = vadd.f32 %v2511, %v2593
      %v2596 = vadd.f32 %v2516, %v2593
      %v2597 = vadd.f32 %v2521, %v2593
      %v2598 = vadd.f32 %v2526, %v2593
      %v2599 = vadd.f32 %v2531, %v2593
      %v2600 = vadd.f32 %v2536, %v2593
      %v2601 = vadd.f32 %v2541, %v2593
      %v2602 = vadd.f32 %v2546, %v2593
      %v2603 = vadd.f32 %v2551, %v2593
      %v2604 = vadd.f32 %v2556, %v2593
      %v2605 = vadd.f32 %v2561, %v2593
      %v2606 = vadd.f32 %v2566, %v2593
      %v2607 = vadd.f32 %v2571, %v2593
      %v2608 = vadd.f32 %v2576, %v2593
      %v2609 = vadd.f32 %v2581, %v2593
      %v2610 = vadd.f32 %v2586, %v2593
      %2611 = vst.msk [vmem:[%s693] sm:$0xff] %vm2202, %v2595
      %2612 = vst.msk [vmem:[%s693 + $0x8] sm:$0xff] %vm2202, %v2596
      %2613 = vst.msk [vmem:[%s693 + $0x10] sm:$0xff] %vm2202, %v2597
      %2614 = vst.msk [vmem:[%s693 + $0x18] sm:$0xff] %vm2202, %v2598
      %2615 = vst.msk [vmem:[%s693 + $0x20] sm:$0xff] %vm2202, %v2599
      %2616 = vst.msk [vmem:[%s693 + $0x28] sm:$0xff] %vm2202, %v2600
      %2617 = vst.msk [vmem:[%s693 + $0x30] sm:$0xff] %vm2202, %v2601
      %2618 = vst.msk [vmem:[%s693 + $0x38] sm:$0xff] %vm2202, %v2602
      %2619 = vst.msk [vmem:[%s693 + $0x40] sm:$0xff] %vm2202, %v2603
      %2620 = vst.msk [vmem:[%s693 + $0x48] sm:$0xff] %vm2202, %v2604
      %2621 = vst.msk [vmem:[%s693 + $0x50] sm:$0xff] %vm2202, %v2605
      %2622 = vst.msk [vmem:[%s693 + $0x58] sm:$0xff] %vm2202, %v2606
      %2623 = vst.msk [vmem:[%s693 + $0x60] sm:$0xff] %vm2202, %v2607
      %2624 = vst.msk [vmem:[%s693 + $0x68] sm:$0xff] %vm2202, %v2608
      %2625 = vst.msk [vmem:[%s693 + $0x70] sm:$0xff] %vm2202, %v2609
      %2626 = vst.msk [vmem:[%s693 + $0x78] sm:$0xff] %vm2202, %v2610
      %vm2627 = vcmp.gt.f32.partialorder %v2595, 0.0
      %vm2628 = vcmp.gt.f32.partialorder %v2596, 0.0
      %vm2629 = vcmp.gt.f32.partialorder %v2597, 0.0
      %vm2630 = vcmp.gt.f32.partialorder %v2598, 0.0
      %vm2631 = vcmp.gt.f32.partialorder %v2599, 0.0
      %vm2632 = vcmp.gt.f32.partialorder %v2600, 0.0
      %vm2633 = vcmp.gt.f32.partialorder %v2601, 0.0
      %vm2634 = vcmp.gt.f32.partialorder %v2602, 0.0
      %vm2635 = vcmp.gt.f32.partialorder %v2603, 0.0
      %vm2636 = vcmp.gt.f32.partialorder %v2604, 0.0
      %vm2637 = vcmp.gt.f32.partialorder %v2605, 0.0
      %vm2638 = vcmp.gt.f32.partialorder %v2606, 0.0
      %vm2639 = vcmp.gt.f32.partialorder %v2607, 0.0
      %vm2640 = vcmp.gt.f32.partialorder %v2608, 0.0
      %vm2641 = vcmp.gt.f32.partialorder %v2609, 0.0
      %vm2642 = vcmp.gt.f32.partialorder %v2610, 0.0
      %v2643 = vmin.f32 %v2595, 0.0
      %v2644 = vmin.f32 %v2596, 0.0
      %v2645 = vmin.f32 %v2597, 0.0
      %v2646 = vmin.f32 %v2598, 0.0
      %v2647 = vmin.f32 %v2599, 0.0
      %v2648 = vmin.f32 %v2600, 0.0
      %v2649 = vmin.f32 %v2601, 0.0
      %v2650 = vmin.f32 %v2602, 0.0
      %v2651 = vmin.f32 %v2603, 0.0
      %v2652 = vmin.f32 %v2604, 0.0
      %v2653 = vmin.f32 %v2605, 0.0
      %v2654 = vmin.f32 %v2606, 0.0
      %v2655 = vmin.f32 %v2607, 0.0
      %v2656 = vmin.f32 %v2608, 0.0
      %v2657 = vmin.f32 %v2609, 0.0
      %v2658 = vmin.f32 %v2610, 0.0
      %v2659 = vmul.f32 %v2643, 1.442695
      %v2660 = vpow.pop %v2659
      %v2661 = vmul.f32 %v2644, 1.442695
      %v2662 = vpow.pop %v2661
      %v2663 = vmul.f32 %v2645, 1.442695
      %v2664 = vpow.pop %v2663
      %v2665 = vmul.f32 %v2646, 1.442695
      %v2666 = vpow.pop %v2665
      %v2667 = vmul.f32 %v2647, 1.442695
      %v2668 = vpow.pop %v2667
      %v2669 = vmul.f32 %v2648, 1.442695
      %v2670 = vpow.pop %v2669
      %v2671 = vmul.f32 %v2649, 1.442695
      %v2672 = vpow.pop %v2671
      %v2673 = vmul.f32 %v2650, 1.442695
      %v2674 = vpow.pop %v2673
      %v2675 = vmul.f32 %v2651, 1.442695
      %v2676 = vpow.pop %v2675
      %v2677 = vmul.f32 %v2652, 1.442695
      %v2678 = vpow.pop %v2677
      %v2679 = vmul.f32 %v2653, 1.442695
      %v2680 = vpow.pop %v2679
      %v2681 = vmul.f32 %v2654, 1.442695
      %v2682 = vpow.pop %v2681
      %v2683 = vmul.f32 %v2655, 1.442695
      %v2684 = vpow.pop %v2683
      %v2685 = vmul.f32 %v2656, 1.442695
      %v2686 = vpow.pop %v2685
      %v2687 = vmul.f32 %v2657, 1.442695
      %v2688 = vpow.pop %v2687
      %v2689 = vmul.f32 %v2658, 1.442695
      %v2690 = vpow.pop %v2689
      %v2691 = vsub.f32 %v2660, 1.0
      %v2692 = vsub.f32 %v2662, 1.0
      %v2693 = vsub.f32 %v2664, 1.0
      %v2694 = vsub.f32 %v2666, 1.0
      %v2695 = vsub.f32 %v2668, 1.0
      %v2696 = vsub.f32 %v2670, 1.0
      %v2697 = vsub.f32 %v2672, 1.0
      %v2698 = vsub.f32 %v2674, 1.0
      %v2699 = vsub.f32 %v2676, 1.0
      %v2700 = vsub.f32 %v2678, 1.0
      %v2701 = vsub.f32 %v2680, 1.0
      %v2702 = vsub.f32 %v2682, 1.0
      %v2703 = vsub.f32 %v2684, 1.0
      %v2704 = vsub.f32 %v2686, 1.0
      %v2705 = vsub.f32 %v2688, 1.0
      %v2706 = vsub.f32 %v2690, 1.0
      %v2707 = vsel %vm2627, %v2595, %v2691
      %v2708 = vsel %vm2628, %v2596, %v2692
      %v2709 = vsel %vm2629, %v2597, %v2693
      %v2710 = vsel %vm2630, %v2598, %v2694
      %v2711 = vsel %vm2631, %v2599, %v2695
      %v2712 = vsel %vm2632, %v2600, %v2696
      %v2713 = vsel %vm2633, %v2601, %v2697
      %v2714 = vsel %vm2634, %v2602, %v2698
      %v2715 = vsel %vm2635, %v2603, %v2699
      %v2716 = vsel %vm2636, %v2604, %v2700
      %v2717 = vsel %vm2637, %v2605, %v2701
      %v2718 = vsel %vm2638, %v2606, %v2702
      %v2719 = vsel %vm2639, %v2607, %v2703
      %v2720 = vsel %vm2640, %v2608, %v2704
      %v2721 = vsel %vm2641, %v2609, %v2705
      %v2722 = vsel %vm2642, %v2610, %v2706
      %v2723 = vld [vmem:[%s8] sm:$0xff]
      %v2724 = vld [vmem:[%s9] sm:$0x1]
      %v2726 = vlaneseq
      %v2727 = vshrl.u32 %v2726, 7
      %v2728 = vsub.s32 0, %v2727
      %v2729 = vrot.slane %v2724, %v2728
      %v2732 = vsel %vm2202, %v2707, 0
      %v2735 = vsel %vm2202, %v2708, 0
      %v2738 = vsel %vm2202, %v2709, 0
      %v2741 = vsel %vm2202, %v2710, 0
      %v2744 = vsel %vm2202, %v2711, 0
      %v2747 = vsel %vm2202, %v2712, 0
      %v2750 = vsel %vm2202, %v2713, 0
      %v2753 = vsel %vm2202, %v2714, 0
      %v2756 = vsel %vm2202, %v2715, 0
      %v2759 = vsel %vm2202, %v2716, 0
      %v2762 = vsel %vm2202, %v2717, 0
      %v2765 = vsel %vm2202, %v2718, 0
      %v2768 = vsel %vm2202, %v2719, 0
      %v2771 = vsel %vm2202, %v2720, 0
      %v2774 = vsel %vm2202, %v2721, 0
      %v2777 = vsel %vm2202, %v2722, 0
      %2779 = vmatprep.subr.mxu0 0.0
      %2780 = vmatpush1.msra.mxu0 %v2723
      %2781 = vmatprep.subr.mxu0 0.0
      %2782 = vmatpush1.msra.mxu0 0.0
      %2783 = vmatprep.subr.mxu0 0.0
      %2784 = vmatpush1.msra.mxu0 0.0
      %2785 = vmatprep.subr.mxu0 0.0
      %2786 = vmatpush1.msra.mxu0 0.0
      %2787 = vmatprep.subr.mxu0 0.0
      %2788 = vmatpush1.msra.mxu0 0.0
      %2789 = vmatprep.subr.mxu0 0.0
      %2790 = vmatpush1.msra.mxu0 0.0
      %2791 = vmatprep.subr.mxu0 0.0
      %2792 = vmatpush1.msra.mxu0 0.0
      %2793 = vmatprep.subr.mxu0 0.0
      %2794 = vmatpush1.msra.mxu0 0.0
      %2795 = vmatprep.subr.mxu0 0.0
      %2796 = vmatpush1.msra.mxu0 0.0
      %2797 = vmatprep.subr.mxu0 0.0
      %2798 = vmatpush1.msra.mxu0 0.0
      %2799 = vmatprep.subr.mxu0 0.0
      %2800 = vmatpush1.msra.mxu0 0.0
      %2801 = vmatprep.subr.mxu0 0.0
      %2802 = vmatpush1.msra.mxu0 0.0
      %2803 = vmatprep.subr.mxu0 0.0
      %2804 = vmatpush1.msra.mxu0 0.0
      %2805 = vmatprep.subr.mxu0 0.0
      %2806 = vmatpush1.msra.mxu0 0.0
      %2807 = vmatprep.subr.mxu0 0.0
      %2808 = vmatpush1.msra.mxu0 0.0
      %2809 = vmatprep.subr.mxu0 0.0
      %2810 = vmatpush1.msra.mxu0 0.0
      %2811 = vmatprep.subr.mxu0 0.0
      %2812 = vmatpush1.msra.mxu0 0.0
      %2813 = vmatprep.subr.mxu0 0.0
      %2814 = vmatpush1.msra.mxu0 0.0
      %2815 = vmatprep.subr.mxu0 0.0
      %2816 = vmatpush1.msra.mxu0 0.0
      %2817 = vmatprep.subr.mxu0 0.0
      %2818 = vmatpush1.msra.mxu0 0.0
      %2819 = vmatprep.subr.mxu0 0.0
      %2820 = vmatpush1.msra.mxu0 0.0
      %2821 = vmatprep.subr.mxu0 0.0
      %2822 = vmatpush1.msra.mxu0 0.0
      %2823 = vmatprep.subr.mxu0 0.0
      %2824 = vmatpush1.msra.mxu0 0.0
      %2825 = vmatprep.subr.mxu0 0.0
      %2826 = vmatpush1.msra.mxu0 0.0
      %2827 = vmatprep.subr.mxu0 0.0
      %2828 = vmatpush1.msra.mxu0 0.0
      %2829 = vmatprep.subr.mxu0 0.0
      %2830 = vmatpush1.msra.mxu0 0.0
      %2831 = vmatprep.subr.mxu0 0.0
      %2832 = vmatpush1.msra.mxu0 0.0
      %2833 = vmatprep.subr.mxu0 0.0
      %2834 = vmatpush1.msra.mxu0 0.0
      %2835 = vmatprep.subr.mxu0 0.0
      %2836 = vmatpush1.msra.mxu0 0.0
      %2837 = vmatprep.subr.mxu0 0.0
      %2838 = vmatpush1.msra.mxu0 0.0
      %2839 = vmatprep.subr.mxu0 0.0
      %2840 = vmatpush1.msra.mxu0 0.0
      %2841 = vmatprep.subr.mxu0 0.0
      %2842 = vmatpush1.msra.mxu0 0.0
      %2843 = vmatprep.mubr.f32.mxu0 0.0
      %2844 = vmatmul.mubr.f32.gmra.mrb[0].mxu0 %v2732
      %v2845 = vpop.f32.mrb[0].mxu0
      %v2846 = vadd.f32 %v2729, %v2845
      %v2847 = vpop.f32.mrb[0].mxu0
      %2848 = vmatprep.mubr.f32.mxu0 0.0
      %2849 = vmatmul.mubr.f32.gmra.mrb[0].mxu0 %v2735
      %v2850 = vpop.f32.mrb[0].mxu0
      %v2851 = vadd.f32 %v2729, %v2850
      %v2852 = vpop.f32.mrb[0].mxu0
      %2853 = vmatprep.mubr.f32.mxu0 0.0
      %2854 = vmatmul.mubr.f32.gmra.mrb[0].mxu0 %v2738
      %v2855 = vpop.f32.mrb[0].mxu0
      %v2856 = vadd.f32 %v2729, %v2855
      %v2857 = vpop.f32.mrb[0].mxu0
      %2858 = vmatprep.mubr.f32.mxu0 0.0
      %2859 = vmatmul.mubr.f32.gmra.mrb[0].mxu0 %v2741
      %v2860 = vpop.f32.mrb[0].mxu0
      %v2861 = vadd.f32 %v2729, %v2860
      %v2862 = vpop.f32.mrb[0].mxu0
      %2863 = vmatprep.mubr.f32.mxu0 0.0
      %2864 = vmatmul.mubr.f32.gmra.mrb[0].mxu0 %v2744
      %v2865 = vpop.f32.mrb[0].mxu0
      %v2866 = vadd.f32 %v2729, %v2865
      %v2867 = vpop.f32.mrb[0].mxu0
      %2868 = vmatprep.mubr.f32.mxu0 0.0
      %2869 = vmatmul.mubr.f32.gmra.mrb[0].mxu0 %v2747
      %v2870 = vpop.f32.mrb[0].mxu0
      %v2871 = vadd.f32 %v2729, %v2870
      %v2872 = vpop.f32.mrb[0].mxu0
      %2873 = vmatprep.mubr.f32.mxu0 0.0
      %2874 = vmatmul.mubr.f32.gmra.mrb[0].mxu0 %v2750
      %v2875 = vpop.f32.mrb[0].mxu0
      %v2876 = vadd.f32 %v2729, %v2875
      %v2877 = vpop.f32.mrb[0].mxu0
      %2878 = vmatprep.mubr.f32.mxu0 0.0
      %2879 = vmatmul.mubr.f32.gmra.mrb[0].mxu0 %v2753
      %v2880 = vpop.f32.mrb[0].mxu0
      %v2881 = vadd.f32 %v2729, %v2880
      %v2882 = vpop.f32.mrb[0].mxu0
      %2883 = vmatprep.mubr.f32.mxu0 0.0
      %2884 = vmatmul.mubr.f32.gmra.mrb[0].mxu0 %v2756
      %v2885 = vpop.f32.mrb[0].mxu0
      %v2886 = vadd.f32 %v2729, %v2885
      %v2887 = vpop.f32.mrb[0].mxu0
      %2888 = vmatprep.mubr.f32.mxu0 0.0
      %2889 = vmatmul.mubr.f32.gmra.mrb[0].mxu0 %v2759
      %v2890 = vpop.f32.mrb[0].mxu0
      %v2891 = vadd.f32 %v2729, %v2890
      %v2892 = vpop.f32.mrb[0].mxu0
      %2893 = vmatprep.mubr.f32.mxu0 0.0
      %2894 = vmatmul.mubr.f32.gmra.mrb[0].mxu0 %v2762
      %v2895 = vpop.f32.mrb[0].mxu0
      %v2896 = vadd.f32 %v2729, %v2895
      %v2897 = vpop.f32.mrb[0].mxu0
      %2898 = vmatprep.mubr.f32.mxu0 0.0
      %2899 = vmatmul.mubr.f32.gmra.mrb[0].mxu0 %v2765
      %v2900 = vpop.f32.mrb[0].mxu0
      %v2901 = vadd.f32 %v2729, %v2900
      %v2902 = vpop.f32.mrb[0].mxu0
      %2903 = vmatprep.mubr.f32.mxu0 0.0
      %2904 = vmatmul.mubr.f32.gmra.mrb[0].mxu0 %v2768
      %v2905 = vpop.f32.mrb[0].mxu0
      %v2906 = vadd.f32 %v2729, %v2905
      %v2907 = vpop.f32.mrb[0].mxu0
      %2908 = vmatprep.mubr.f32.mxu0 0.0
      %2909 = vmatmul.mubr.f32.gmra.mrb[0].mxu0 %v2771
      %v2910 = vpop.f32.mrb[0].mxu0
      %v2911 = vadd.f32 %v2729, %v2910
      %v2912 = vpop.f32.mrb[0].mxu0
      %2913 = vmatprep.mubr.f32.mxu0 0.0
      %2914 = vmatmul.mubr.f32.gmra.mrb[0].mxu0 %v2774
      %v2915 = vpop.f32.mrb[0].mxu0
      %v2916 = vadd.f32 %v2729, %v2915
      %v2917 = vpop.f32.mrb[0].mxu0
      %2918 = vmatprep.mubr.f32.mxu0 0.0
      %2919 = vmatmul.mubr.f32.gmra.mrb[0].mxu0 %v2777
      %v2920 = vpop.f32.mrb[0].mxu0
      %v2921 = vadd.f32 %v2729, %v2920
      %v2922 = vpop.f32.mrb[0].mxu0
      %2923 = vdwg.mxu0
      %vm2924 = vcmask 31744
      %v2925 = vsel %vm2924, %v2846, -inf
      %2926 = vmax.xlane.f32.xlu0 %v2925
      %v2927 = vpop.xlane.xlu0 %2926
      %v2928 = vsel %vm2924, %v2851, -inf
      %2929 = vmax.xlane.f32.xlu0 %v2928
      %v2930 = vpop.xlane.xlu0 %2929
      %v2931 = vsel %vm2924, %v2856, -inf
      %2932 = vmax.xlane.f32.xlu0 %v2931
      %v2933 = vpop.xlane.xlu0 %2932
      %v2934 = vsel %vm2924, %v2861, -inf
      %2935 = vmax.xlane.f32.xlu0 %v2934
      %v2936 = vpop.xlane.xlu0 %2935
      %v2937 = vsel %vm2924, %v2866, -inf
      %2938 = vmax.xlane.f32.xlu0 %v2937
      %v2939 = vpop.xlane.xlu0 %2938
      %v2940 = vsel %vm2924, %v2871, -inf
      %2941 = vmax.xlane.f32.xlu0 %v2940
      %v2942 = vpop.xlane.xlu0 %2941
      %v2943 = vsel %vm2924, %v2876, -inf
      %2944 = vmax.xlane.f32.xlu0 %v2943
      %v2945 = vpop.xlane.xlu0 %2944
      %v2946 = vsel %vm2924, %v2881, -inf
      %2947 = vmax.xlane.f32.xlu0 %v2946
      %v2948 = vpop.xlane.xlu0 %2947
      %v2949 = vsel %vm2924, %v2886, -inf
      %2950 = vmax.xlane.f32.xlu0 %v2949
      %v2951 = vpop.xlane.xlu0 %2950
      %v2952 = vsel %vm2924, %v2891, -inf
      %2953 = vmax.xlane.f32.xlu0 %v2952
      %v2954 = vpop.xlane.xlu0 %2953
      %v2955 = vsel %vm2924, %v2896, -inf
      %2956 = vmax.xlane.f32.xlu0 %v2955
      %v2957 = vpop.xlane.xlu0 %2956
      %v2958 = vsel %vm2924, %v2901, -inf
      %2959 = vmax.xlane.f32.xlu0 %v2958
      %v2960 = vpop.xlane.xlu0 %2959
      %v2961 = vsel %vm2924, %v2906, -inf
      %2962 = vmax.xlane.f32.xlu0 %v2961
      %v2963 = vpop.xlane.xlu0 %2962
      %v2964 = vsel %vm2924, %v2911, -inf
      %2965 = vmax.xlane.f32.xlu0 %v2964
      %v2966 = vpop.xlane.xlu0 %2965
      %v2967 = vsel %vm2924, %v2916, -inf
      %2968 = vmax.xlane.f32.xlu0 %v2967
      %v2969 = vpop.xlane.xlu0 %2968
      %v2970 = vsel %vm2924, %v2921, -inf
      %2971 = vmax.xlane.f32.xlu0 %v2970
      %v2972 = vpop.xlane.xlu0 %2971
      %v2973 = vsub.f32 %v2846, %v2927
      %v2974 = vsub.f32 %v2851, %v2930
      %v2975 = vsub.f32 %v2856, %v2933
      %v2976 = vsub.f32 %v2861, %v2936
      %v2977 = vsub.f32 %v2866, %v2939
      %v2978 = vsub.f32 %v2871, %v2942
      %v2979 = vsub.f32 %v2876, %v2945
      %v2980 = vsub.f32 %v2881, %v2948
      %v2981 = vsub.f32 %v2886, %v2951
      %v2982 = vsub.f32 %v2891, %v2954
      %v2983 = vsub.f32 %v2896, %v2957
      %v2984 = vsub.f32 %v2901, %v2960
      %v2985 = vsub.f32 %v2906, %v2963
      %v2986 = vsub.f32 %v2911, %v2966
      %v2987 = vsub.f32 %v2916, %v2969
      %v2988 = vsub.f32 %v2921, %v2972
      %v2989 = vmul.f32 %v2973, 1.442695
      %v2990 = vpow.pop %v2989
      %v2991 = vmul.f32 %v2974, 1.442695
      %v2992 = vpow.pop %v2991
      %v2993 = vmul.f32 %v2975, 1.442695
      %v2994 = vpow.pop %v2993
      %v2995 = vmul.f32 %v2976, 1.442695
      %v2996 = vpow.pop %v2995
      %v2997 = vmul.f32 %v2977, 1.442695
      %v2998 = vpow.pop %v2997
      %v2999 = vmul.f32 %v2978, 1.442695
      %v3000 = vpow.pop %v2999
      %v3001 = vmul.f32 %v2979, 1.442695
      %v3002 = vpow.pop %v3001
      %v3003 = vmul.f32 %v2980, 1.442695
      %v3004 = vpow.pop %v3003
      %v3005 = vmul.f32 %v2981, 1.442695
      %v3006 = vpow.pop %v3005
      %v3007 = vmul.f32 %v2982, 1.442695
      %v3008 = vpow.pop %v3007
      %v3009 = vmul.f32 %v2983, 1.442695
      %v3010 = vpow.pop %v3009
      %v3011 = vmul.f32 %v2984, 1.442695
      %v3012 = vpow.pop %v3011
      %v3013 = vmul.f32 %v2985, 1.442695
      %v3014 = vpow.pop %v3013
      %v3015 = vmul.f32 %v2986, 1.442695
      %v3016 = vpow.pop %v3015
      %v3017 = vmul.f32 %v2987, 1.442695
      %v3018 = vpow.pop %v3017
      %v3019 = vmul.f32 %v2988, 1.442695
      %v3020 = vpow.pop %v3019
      %v3021 = vsel %vm2924, %v2990, 0.0
      %3022 = vadd.xlane.f32.xlu0 %v3021
      %v3023 = vpop.xlane.xlu0 %3022
      %v3024 = vsel %vm2924, %v2992, 0.0
      %3025 = vadd.xlane.f32.xlu0 %v3024
      %v3026 = vpop.xlane.xlu0 %3025
      %v3027 = vsel %vm2924, %v2994, 0.0
      %3028 = vadd.xlane.f32.xlu0 %v3027
      %v3029 = vpop.xlane.xlu0 %3028
      %v3030 = vsel %vm2924, %v2996, 0.0
      %3031 = vadd.xlane.f32.xlu0 %v3030
      %v3032 = vpop.xlane.xlu0 %3031
      %v3033 = vsel %vm2924, %v2998, 0.0
      %3034 = vadd.xlane.f32.xlu0 %v3033
      %v3035 = vpop.xlane.xlu0 %3034
      %v3036 = vsel %vm2924, %v3000, 0.0
      %3037 = vadd.xlane.f32.xlu0 %v3036
      %v3038 = vpop.xlane.xlu0 %3037
      %v3039 = vsel %vm2924, %v3002, 0.0
      %3040 = vadd.xlane.f32.xlu0 %v3039
      %v3041 = vpop.xlane.xlu0 %3040
      %v3042 = vsel %vm2924, %v3004, 0.0
      %3043 = vadd.xlane.f32.xlu0 %v3042
      %v3044 = vpop.xlane.xlu0 %3043
      %v3045 = vsel %vm2924, %v3006, 0.0
      %3046 = vadd.xlane.f32.xlu0 %v3045
      %v3047 = vpop.xlane.xlu0 %3046
      %v3048 = vsel %vm2924, %v3008, 0.0
      %3049 = vadd.xlane.f32.xlu0 %v3048
      %v3050 = vpop.xlane.xlu0 %3049
      %v3051 = vsel %vm2924, %v3010, 0.0
      %3052 = vadd.xlane.f32.xlu0 %v3051
      %v3053 = vpop.xlane.xlu0 %3052
      %v3054 = vsel %vm2924, %v3012, 0.0
      %3055 = vadd.xlane.f32.xlu0 %v3054
      %v3056 = vpop.xlane.xlu0 %3055
      %v3057 = vsel %vm2924, %v3014, 0.0
      %3058 = vadd.xlane.f32.xlu0 %v3057
      %v3059 = vpop.xlane.xlu0 %3058
      %v3060 = vsel %vm2924, %v3016, 0.0
      %3061 = vadd.xlane.f32.xlu0 %v3060
      %v3062 = vpop.xlane.xlu0 %3061
      %v3063 = vsel %vm2924, %v3018, 0.0
      %3064 = vadd.xlane.f32.xlu0 %v3063
      %v3065 = vpop.xlane.xlu0 %3064
      %v3066 = vsel %vm2924, %v3020, 0.0
      %3067 = vadd.xlane.f32.xlu0 %v3066
      %v3068 = vpop.xlane.xlu0 %3067
      %v3069 = vrcp.pop %v3023
      %v3070 = vrcp.pop %v3026
      %v3071 = vrcp.pop %v3029
      %v3072 = vrcp.pop %v3032
      %v3073 = vrcp.pop %v3035
      %v3074 = vrcp.pop %v3038
      %v3075 = vrcp.pop %v3041
      %v3076 = vrcp.pop %v3044
      %v3077 = vrcp.pop %v3047
      %v3078 = vrcp.pop %v3050
      %v3079 = vrcp.pop %v3053
      %v3080 = vrcp.pop %v3056
      %v3081 = vrcp.pop %v3059
      %v3082 = vrcp.pop %v3062
      %v3083 = vrcp.pop %v3065
      %v3084 = vrcp.pop %v3068
      %v3085 = vmul.f32 %v2990, %v3069
      %v3086 = vmul.f32 %v2992, %v3070
      %v3087 = vmul.f32 %v2994, %v3071
      %v3088 = vmul.f32 %v2996, %v3072
      %v3089 = vmul.f32 %v2998, %v3073
      %v3090 = vmul.f32 %v3000, %v3074
      %v3091 = vmul.f32 %v3002, %v3075
      %v3092 = vmul.f32 %v3004, %v3076
      %v3093 = vmul.f32 %v3006, %v3077
      %v3094 = vmul.f32 %v3008, %v3078
      %v3095 = vmul.f32 %v3010, %v3079
      %v3096 = vmul.f32 %v3012, %v3080
      %v3097 = vmul.f32 %v3014, %v3081
      %v3098 = vmul.f32 %v3016, %v3082
      %v3099 = vmul.f32 %v3018, %v3083
      %v3100 = vmul.f32 %v3020, %v3084
      %3101 = vst.msk [vmem:[%s698] sm:$0xff] %vm2924, %v3085
      %3102 = vst.msk [vmem:[%s698 + $0x8] sm:$0xff] %vm2924, %v3086
      %3103 = vst.msk [vmem:[%s698 + $0x10] sm:$0xff] %vm2924, %v3087
      %3104 = vst.msk [vmem:[%s698 + $0x18] sm:$0xff] %vm2924, %v3088
      %3105 = vst.msk [vmem:[%s698 + $0x20] sm:$0xff] %vm2924, %v3089
      %3106 = vst.msk [vmem:[%s698 + $0x28] sm:$0xff] %vm2924, %v3090
      %3107 = vst.msk [vmem:[%s698 + $0x30] sm:$0xff] %vm2924, %v3091
      %3108 = vst.msk [vmem:[%s698 + $0x38] sm:$0xff] %vm2924, %v3092
      %3109 = vst.msk [vmem:[%s698 + $0x40] sm:$0xff] %vm2924, %v3093
      %3110 = vst.msk [vmem:[%s698 + $0x48] sm:$0xff] %vm2924, %v3094
      %3111 = vst.msk [vmem:[%s698 + $0x50] sm:$0xff] %vm2924, %v3095
      %3112 = vst.msk [vmem:[%s698 + $0x58] sm:$0xff] %vm2924, %v3096
      %3113 = vst.msk [vmem:[%s698 + $0x60] sm:$0xff] %vm2924, %v3097
      %3114 = vst.msk [vmem:[%s698 + $0x68] sm:$0xff] %vm2924, %v3098
      %3115 = vst.msk [vmem:[%s698 + $0x70] sm:$0xff] %vm2924, %v3099
      %3116 = vst.msk [vmem:[%s698 + $0x78] sm:$0xff] %vm2924, %v3100
      %vm3117 = vcmp.gt.f32.partialorder %v741, 0.0
      %vm3118 = vcmp.gt.f32.partialorder %v742, 0.0
      %vm3119 = vcmp.gt.f32.partialorder %v743, 0.0
      %vm3120 = vcmp.gt.f32.partialorder %v744, 0.0
      %vm3121 = vcmp.gt.f32.partialorder %v745, 0.0
      %vm3122 = vcmp.gt.f32.partialorder %v746, 0.0
      %vm3123 = vcmp.gt.f32.partialorder %v747, 0.0
      %vm3124 = vcmp.gt.f32.partialorder %v748, 0.0
      %vm3125 = vcmp.gt.f32.partialorder %v749, 0.0
      %vm3126 = vcmp.gt.f32.partialorder %v750, 0.0
      %vm3127 = vcmp.gt.f32.partialorder %v751, 0.0
      %vm3128 = vcmp.gt.f32.partialorder %v752, 0.0
      %vm3129 = vcmp.gt.f32.partialorder %v753, 0.0
      %vm3130 = vcmp.gt.f32.partialorder %v754, 0.0
      %vm3131 = vcmp.gt.f32.partialorder %v755, 0.0
      %vm3132 = vcmp.gt.f32.partialorder %v756, 0.0
      %v3133 = vmin.f32 %v741, 0.0
      %v3134 = vmin.f32 %v742, 0.0
      %v3135 = vmin.f32 %v743, 0.0
      %v3136 = vmin.f32 %v744, 0.0
      %v3137 = vmin.f32 %v745, 0.0
      %v3138 = vmin.f32 %v746, 0.0
      %v3139 = vmin.f32 %v747, 0.0
      %v3140 = vmin.f32 %v748, 0.0
      %v3141 = vmin.f32 %v749, 0.0
      %v3142 = vmin.f32 %v750, 0.0
      %v3143 = vmin.f32 %v751, 0.0
      %v3144 = vmin.f32 %v752, 0.0
      %v3145 = vmin.f32 %v753, 0.0
      %v3146 = vmin.f32 %v754, 0.0
      %v3147 = vmin.f32 %v755, 0.0
      %v3148 = vmin.f32 %v756, 0.0
      %v3149 = vmul.f32 %v3133, 1.442695
      %v3150 = vpow.pop %v3149
      %v3151 = vmul.f32 %v3134, 1.442695
      %v3152 = vpow.pop %v3151
      %v3153 = vmul.f32 %v3135, 1.442695
      %v3154 = vpow.pop %v3153
      %v3155 = vmul.f32 %v3136, 1.442695
      %v3156 = vpow.pop %v3155
      %v3157 = vmul.f32 %v3137, 1.442695
      %v3158 = vpow.pop %v3157
      %v3159 = vmul.f32 %v3138, 1.442695
      %v3160 = vpow.pop %v3159
      %v3161 = vmul.f32 %v3139, 1.442695
      %v3162 = vpow.pop %v3161
      %v3163 = vmul.f32 %v3140, 1.442695
      %v3164 = vpow.pop %v3163
      %v3165 = vmul.f32 %v3141, 1.442695
      %v3166 = vpow.pop %v3165
      %v3167 = vmul.f32 %v3142, 1.442695
      %v3168 = vpow.pop %v3167
      %v3169 = vmul.f32 %v3143, 1.442695
      %v3170 = vpow.pop %v3169
      %v3171 = vmul.f32 %v3144, 1.442695
      %v3172 = vpow.pop %v3171
      %v3173 = vmul.f32 %v3145, 1.442695
      %v3174 = vpow.pop %v3173
      %v3175 = vmul.f32 %v3146, 1.442695
      %v3176 = vpow.pop %v3175
      %v3177 = vmul.f32 %v3147, 1.442695
      %v3178 = vpow.pop %v3177
      %v3179 = vmul.f32 %v3148, 1.442695
      %v3180 = vpow.pop %v3179
      %v3181 = vsub.f32 %v3150, 1.0
      %v3182 = vsub.f32 %v3152, 1.0
      %v3183 = vsub.f32 %v3154, 1.0
      %v3184 = vsub.f32 %v3156, 1.0
      %v3185 = vsub.f32 %v3158, 1.0
      %v3186 = vsub.f32 %v3160, 1.0
      %v3187 = vsub.f32 %v3162, 1.0
      %v3188 = vsub.f32 %v3164, 1.0
      %v3189 = vsub.f32 %v3166, 1.0
      %v3190 = vsub.f32 %v3168, 1.0
      %v3191 = vsub.f32 %v3170, 1.0
      %v3192 = vsub.f32 %v3172, 1.0
      %v3193 = vsub.f32 %v3174, 1.0
      %v3194 = vsub.f32 %v3176, 1.0
      %v3195 = vsub.f32 %v3178, 1.0
      %v3196 = vsub.f32 %v3180, 1.0
      %v3197 = vsel %vm3117, %v741, %v3181
      %v3198 = vsel %vm3118, %v742, %v3182
      %v3199 = vsel %vm3119, %v743, %v3183
      %v3200 = vsel %vm3120, %v744, %v3184
      %v3201 = vsel %vm3121, %v745, %v3185
      %v3202 = vsel %vm3122, %v746, %v3186
      %v3203 = vsel %vm3123, %v747, %v3187
      %v3204 = vsel %vm3124, %v748, %v3188
      %v3205 = vsel %vm3125, %v749, %v3189
      %v3206 = vsel %vm3126, %v750, %v3190
      %v3207 = vsel %vm3127, %v751, %v3191
      %v3208 = vsel %vm3128, %v752, %v3192
      %v3209 = vsel %vm3129, %v753, %v3193
      %v3210 = vsel %vm3130, %v754, %v3194
      %v3211 = vsel %vm3131, %v755, %v3195
      %v3212 = vsel %vm3132, %v756, %v3196
      %v3213 = vld [vmem:[%s10] sm:$0xff]
      %v3214 = vld [vmem:[%s10 + $0x8] sm:$0xf]
      %v3216 = vsel %vm2924, %v3197, 0
      %v3219 = vsel %vm2924, %v3198, 0
      %v3222 = vsel %vm2924, %v3199, 0
      %v3225 = vsel %vm2924, %v3200, 0
      %v3228 = vsel %vm2924, %v3201, 0
      %v3231 = vsel %vm2924, %v3202, 0
      %v3234 = vsel %vm2924, %v3203, 0
      %v3237 = vsel %vm2924, %v3204, 0
      %v3240 = vsel %vm2924, %v3205, 0
      %v3243 = vsel %vm2924, %v3206, 0
      %v3246 = vsel %vm2924, %v3207, 0
      %v3249 = vsel %vm2924, %v3208, 0
      %v3252 = vsel %vm2924, %v3209, 0
      %v3255 = vsel %vm2924, %v3210, 0
      %v3258 = vsel %vm2924, %v3211, 0
      %v3261 = vsel %vm2924, %v3212, 0
      %vm3263 = vcmask 1043456
      %v3265 = vsel %vm3263, %v3214, 0
      %3267 = vmatprep.subr.mxu0 0.0
      %3268 = vmatpush1.msra.mxu0 %v3265
      %3269 = vmatprep.subr.mxu0 0.0
      %3270 = vmatpush1.msra.mxu0 0.0
      %3271 = vmatprep.subr.mxu0 0.0
      %3272 = vmatpush1.msra.mxu0 0.0
      %3273 = vmatprep.subr.mxu0 0.0
      %3274 = vmatpush1.msra.mxu0 0.0
      %3275 = vmatprep.subr.mxu0 0.0
      %3276 = vmatpush1.msra.mxu0 0.0
      %3277 = vmatprep.subr.mxu0 0.0
      %3278 = vmatpush1.msra.mxu0 0.0
      %3279 = vmatprep.subr.mxu0 0.0
      %3280 = vmatpush1.msra.mxu0 0.0
      %3281 = vmatprep.subr.mxu0 0.0
      %3282 = vmatpush1.msra.mxu0 0.0
      %3283 = vmatprep.subr.mxu0 0.0
      %3284 = vmatpush1.msra.mxu0 0.0
      %3285 = vmatprep.subr.mxu0 0.0
      %3286 = vmatpush1.msra.mxu0 0.0
      %3287 = vmatprep.subr.mxu0 0.0
      %3288 = vmatpush1.msra.mxu0 0.0
      %3289 = vmatprep.subr.mxu0 0.0
      %3290 = vmatpush1.msra.mxu0 0.0
      %3291 = vmatprep.subr.mxu0 0.0
      %3292 = vmatpush1.msra.mxu0 0.0
      %3293 = vmatprep.subr.mxu0 0.0
      %3294 = vmatpush1.msra.mxu0 0.0
      %3295 = vmatprep.subr.mxu0 0.0
      %3296 = vmatpush1.msra.mxu0 0.0
      %3297 = vmatprep.subr.mxu0 0.0
      %3298 = vmatpush1.msra.mxu0 0.0
      %3299 = vmatprep.subr.mxu0 0.0
      %3300 = vmatpush1.msra.mxu0 0.0
      %3301 = vmatprep.subr.mxu0 0.0
      %3302 = vmatpush1.msra.mxu0 0.0
      %3303 = vmatprep.subr.mxu0 0.0
      %3304 = vmatpush1.msra.mxu0 0.0
      %3305 = vmatprep.subr.mxu0 0.0
      %3306 = vmatpush1.msra.mxu0 0.0
      %3307 = vmatprep.subr.mxu0 0.0
      %3308 = vmatpush1.msra.mxu0 0.0
      %3309 = vmatprep.subr.mxu0 0.0
      %3310 = vmatpush1.msra.mxu0 0.0
      %3311 = vmatprep.subr.mxu0 0.0
      %3312 = vmatpush1.msra.mxu0 0.0
      %3313 = vmatprep.subr.mxu0 0.0
      %3314 = vmatpush1.msra.mxu0 0.0
      %3315 = vmatprep.subr.mxu0 0.0
      %3316 = vmatpush1.msra.mxu0 0.0
      %3317 = vmatprep.subr.mxu0 0.0
      %3318 = vmatpush1.msra.mxu0 0.0
      %3319 = vmatprep.subr.mxu0 0.0
      %3320 = vmatpush1.msra.mxu0 0.0
      %3321 = vmatprep.subr.mxu0 0.0
      %3322 = vmatpush1.msra.mxu0 0.0
      %3323 = vmatprep.subr.mxu0 0.0
      %3324 = vmatpush1.msra.mxu0 0.0
      %3325 = vmatprep.subr.mxu0 0.0
      %3326 = vmatpush1.msra.mxu0 0.0
      %3327 = vmatprep.subr.mxu0 0.0
      %3328 = vmatpush1.msra.mxu0 0.0
      %3329 = vmatprep.subr.mxu0 0.0
      %3330 = vmatpush1.msra.mxu0 0.0
      %3331 = vmatprep.mubr.f32.mxu0 0.0
      %3332 = vmatmul.mubr.f32.gmra.mrb[0].mxu0 %v3216
      %v3333 = vpop.f32.mrb[0].mxu0
      %v3334 = vadd.f32 0.0, %v3333
      %v3335 = vpop.f32.mrb[0].mxu0
      %3336 = vmatprep.mubr.f32.mxu0 0.0
      %3337 = vmatmul.mubr.f32.gmra.mrb[0].mxu0 %v3219
      %v3338 = vpop.f32.mrb[0].mxu0
      %v3339 = vadd.f32 0.0, %v3338
      %v3340 = vpop.f32.mrb[0].mxu0
      %3341 = vmatprep.mubr.f32.mxu0 0.0
      %3342 = vmatmul.mubr.f32.gmra.mrb[0].mxu0 %v3222
      %v3343 = vpop.f32.mrb[0].mxu0
      %v3344 = vadd.f32 0.0, %v3343
      %v3345 = vpop.f32.mrb[0].mxu0
      %3346 = vmatprep.mubr.f32.mxu0 0.0
      %3347 = vmatmul.mubr.f32.gmra.mrb[0].mxu0 %v3225
      %v3348 = vpop.f32.mrb[0].mxu0
      %v3349 = vadd.f32 0.0, %v3348
      %v3350 = vpop.f32.mrb[0].mxu0
      %3351 = vmatprep.mubr.f32.mxu0 0.0
      %3352 = vmatmul.mubr.f32.gmra.mrb[0].mxu0 %v3228
      %v3353 = vpop.f32.mrb[0].mxu0
      %v3354 = vadd.f32 0.0, %v3353
      %v3355 = vpop.f32.mrb[0].mxu0
      %3356 = vmatprep.mubr.f32.mxu0 0.0
      %3357 = vmatmul.mubr.f32.gmra.mrb[0].mxu0 %v3231
      %v3358 = vpop.f32.mrb[0].mxu0
      %v3359 = vadd.f32 0.0, %v3358
      %v3360 = vpop.f32.mrb[0].mxu0
      %3361 = vmatprep.mubr.f32.mxu0 0.0
      %3362 = vmatmul.mubr.f32.gmra.mrb[0].mxu0 %v3234
      %v3363 = vpop.f32.mrb[0].mxu0
      %v3364 = vadd.f32 0.0, %v3363
      %v3365 = vpop.f32.mrb[0].mxu0
      %3366 = vmatprep.mubr.f32.mxu0 0.0
      %3367 = vmatmul.mubr.f32.gmra.mrb[0].mxu0 %v3237
      %v3368 = vpop.f32.mrb[0].mxu0
      %v3369 = vadd.f32 0.0, %v3368
      %v3370 = vpop.f32.mrb[0].mxu0
      %3371 = vmatprep.mubr.f32.mxu0 0.0
      %3372 = vmatmul.mubr.f32.gmra.mrb[0].mxu0 %v3240
      %v3373 = vpop.f32.mrb[0].mxu0
      %v3374 = vadd.f32 0.0, %v3373
      %v3375 = vpop.f32.mrb[0].mxu0
      %3376 = vmatprep.mubr.f32.mxu0 0.0
      %3377 = vmatmul.mubr.f32.gmra.mrb[0].mxu0 %v3243
      %v3378 = vpop.f32.mrb[0].mxu0
      %v3379 = vadd.f32 0.0, %v3378
      %v3380 = vpop.f32.mrb[0].mxu0
      %3381 = vmatprep.mubr.f32.mxu0 0.0
      %3382 = vmatmul.mubr.f32.gmra.mrb[0].mxu0 %v3246
      %v3383 = vpop.f32.mrb[0].mxu0
      %v3384 = vadd.f32 0.0, %v3383
      %v3385 = vpop.f32.mrb[0].mxu0
      %3386 = vmatprep.mubr.f32.mxu0 0.0
      %3387 = vmatmul.mubr.f32.gmra.mrb[0].mxu0 %v3249
      %v3388 = vpop.f32.mrb[0].mxu0
      %v3389 = vadd.f32 0.0, %v3388
      %v3390 = vpop.f32.mrb[0].mxu0
      %3391 = vmatprep.mubr.f32.mxu0 0.0
      %3392 = vmatmul.mubr.f32.gmra.mrb[0].mxu0 %v3252
      %v3393 = vpop.f32.mrb[0].mxu0
      %v3394 = vadd.f32 0.0, %v3393
      %v3395 = vpop.f32.mrb[0].mxu0
      %3396 = vmatprep.mubr.f32.mxu0 0.0
      %3397 = vmatmul.mubr.f32.gmra.mrb[0].mxu0 %v3255
      %v3398 = vpop.f32.mrb[0].mxu0
      %v3399 = vadd.f32 0.0, %v3398
      %v3400 = vpop.f32.mrb[0].mxu0
      %3401 = vmatprep.mubr.f32.mxu0 0.0
      %3402 = vmatmul.mubr.f32.gmra.mrb[0].mxu0 %v3258
      %v3403 = vpop.f32.mrb[0].mxu0
      %v3404 = vadd.f32 0.0, %v3403
      %v3405 = vpop.f32.mrb[0].mxu0
      %3406 = vmatprep.mubr.f32.mxu0 0.0
      %3407 = vmatmul.mubr.f32.gmra.mrb[0].mxu0 %v3261
      %v3408 = vpop.f32.mrb[0].mxu0
      %v3409 = vadd.f32 0.0, %v3408
      %v3410 = vpop.f32.mrb[0].mxu0
      %3411 = vdwg.mxu0
      %3412 = vmatprep.subr.mxu0 0.0
      %3413 = vmatpush1.msra.mxu0 %v3213
      %3414 = vmatprep.subr.mxu0 0.0
      %3415 = vmatpush1.msra.mxu0 0.0
      %3416 = vmatprep.subr.mxu0 0.0
      %3417 = vmatpush1.msra.mxu0 0.0
      %3418 = vmatprep.subr.mxu0 0.0
      %3419 = vmatpush1.msra.mxu0 0.0
      %3420 = vmatprep.subr.mxu0 0.0
      %3421 = vmatpush1.msra.mxu0 0.0
      %3422 = vmatprep.subr.mxu0 0.0
      %3423 = vmatpush1.msra.mxu0 0.0
      %3424 = vmatprep.subr.mxu0 0.0
      %3425 = vmatpush1.msra.mxu0 0.0
      %3426 = vmatprep.subr.mxu0 0.0
      %3427 = vmatpush1.msra.mxu0 0.0
      %3428 = vmatprep.subr.mxu0 0.0
      %3429 = vmatpush1.msra.mxu0 0.0
      %3430 = vmatprep.subr.mxu0 0.0
      %3431 = vmatpush1.msra.mxu0 0.0
      %3432 = vmatprep.subr.mxu0 0.0
      %3433 = vmatpush1.msra.mxu0 0.0
      %3434 = vmatprep.subr.mxu0 0.0
      %3435 = vmatpush1.msra.mxu0 0.0
      %3436 = vmatprep.subr.mxu0 0.0
      %3437 = vmatpush1.msra.mxu0 0.0
      %3438 = vmatprep.subr.mxu0 0.0
      %3439 = vmatpush1.msra.mxu0 0.0
      %3440 = vmatprep.subr.mxu0 0.0
      %3441 = vmatpush1.msra.mxu0 0.0
      %3442 = vmatprep.subr.mxu0 0.0
      %3443 = vmatpush1.msra.mxu0 0.0
      %3444 = vmatprep.subr.mxu0 0.0
      %3445 = vmatpush1.msra.mxu0 0.0
      %3446 = vmatprep.subr.mxu0 0.0
      %3447 = vmatpush1.msra.mxu0 0.0
      %3448 = vmatprep.subr.mxu0 0.0
      %3449 = vmatpush1.msra.mxu0 0.0
      %3450 = vmatprep.subr.mxu0 0.0
      %3451 = vmatpush1.msra.mxu0 0.0
      %3452 = vmatprep.subr.mxu0 0.0
      %3453 = vmatpush1.msra.mxu0 0.0
      %3454 = vmatprep.subr.mxu0 0.0
      %3455 = vmatpush1.msra.mxu0 0.0
      %3456 = vmatprep.subr.mxu0 0.0
      %3457 = vmatpush1.msra.mxu0 0.0
      %3458 = vmatprep.subr.mxu0 0.0
      %3459 = vmatpush1.msra.mxu0 0.0
      %3460 = vmatprep.subr.mxu0 0.0
      %3461 = vmatpush1.msra.mxu0 0.0
      %3462 = vmatprep.subr.mxu0 0.0
      %3463 = vmatpush1.msra.mxu0 0.0
      %3464 = vmatprep.subr.mxu0 0.0
      %3465 = vmatpush1.msra.mxu0 0.0
      %3466 = vmatprep.subr.mxu0 0.0
      %3467 = vmatpush1.msra.mxu0 0.0
      %3468 = vmatprep.subr.mxu0 0.0
      %3469 = vmatpush1.msra.mxu0 0.0
      %3470 = vmatprep.subr.mxu0 0.0
      %3471 = vmatpush1.msra.mxu0 0.0
      %3472 = vmatprep.subr.mxu0 0.0
      %3473 = vmatpush1.msra.mxu0 0.0
      %3474 = vmatprep.subr.mxu0 0.0
      %3475 = vmatpush1.msra.mxu0 0.0
      %3476 = vmatprep.mubr.f32.mxu0 0.0
      %3477 = vmatmul.mubr.f32.gmra.mrb[0].mxu0 %v2732
      %v3478 = vpop.f32.mrb[0].mxu0
      %v3479 = vadd.f32 %v3334, %v3478
      %v3480 = vpop.f32.mrb[0].mxu0
      %3481 = vmatprep.mubr.f32.mxu0 0.0
      %3482 = vmatmul.mubr.f32.gmra.mrb[0].mxu0 %v2735
      %v3483 = vpop.f32.mrb[0].mxu0
      %v3484 = vadd.f32 %v3339, %v3483
      %v3485 = vpop.f32.mrb[0].mxu0
      %3486 = vmatprep.mubr.f32.mxu0 0.0
      %3487 = vmatmul.mubr.f32.gmra.mrb[0].mxu0 %v2738
      %v3488 = vpop.f32.mrb[0].mxu0
      %v3489 = vadd.f32 %v3344, %v3488
      %v3490 = vpop.f32.mrb[0].mxu0
      %3491 = vmatprep.mubr.f32.mxu0 0.0
      %3492 = vmatmul.mubr.f32.gmra.mrb[0].mxu0 %v2741
      %v3493 = vpop.f32.mrb[0].mxu0
      %v3494 = vadd.f32 %v3349, %v3493
      %v3495 = vpop.f32.mrb[0].mxu0
      %3496 = vmatprep.mubr.f32.mxu0 0.0
      %3497 = vmatmul.mubr.f32.gmra.mrb[0].mxu0 %v2744
      %v3498 = vpop.f32.mrb[0].mxu0
      %v3499 = vadd.f32 %v3354, %v3498
      %v3500 = vpop.f32.mrb[0].mxu0
      %3501 = vmatprep.mubr.f32.mxu0 0.0
      %3502 = vmatmul.mubr.f32.gmra.mrb[0].mxu0 %v2747
      %v3503 = vpop.f32.mrb[0].mxu0
      %v3504 = vadd.f32 %v3359, %v3503
      %v3505 = vpop.f32.mrb[0].mxu0
      %3506 = vmatprep.mubr.f32.mxu0 0.0
      %3507 = vmatmul.mubr.f32.gmra.mrb[0].mxu0 %v2750
      %v3508 = vpop.f32.mrb[0].mxu0
      %v3509 = vadd.f32 %v3364, %v3508
      %v3510 = vpop.f32.mrb[0].mxu0
      %3511 = vmatprep.mubr.f32.mxu0 0.0
      %3512 = vmatmul.mubr.f32.gmra.mrb[0].mxu0 %v2753
      %v3513 = vpop.f32.mrb[0].mxu0
      %v3514 = vadd.f32 %v3369, %v3513
      %v3515 = vpop.f32.mrb[0].mxu0
      %3516 = vmatprep.mubr.f32.mxu0 0.0
      %3517 = vmatmul.mubr.f32.gmra.mrb[0].mxu0 %v2756
      %v3518 = vpop.f32.mrb[0].mxu0
      %v3519 = vadd.f32 %v3374, %v3518
      %v3520 = vpop.f32.mrb[0].mxu0
      %3521 = vmatprep.mubr.f32.mxu0 0.0
      %3522 = vmatmul.mubr.f32.gmra.mrb[0].mxu0 %v2759
      %v3523 = vpop.f32.mrb[0].mxu0
      %v3524 = vadd.f32 %v3379, %v3523
      %v3525 = vpop.f32.mrb[0].mxu0
      %3526 = vmatprep.mubr.f32.mxu0 0.0
      %3527 = vmatmul.mubr.f32.gmra.mrb[0].mxu0 %v2762
      %v3528 = vpop.f32.mrb[0].mxu0
      %v3529 = vadd.f32 %v3384, %v3528
      %v3530 = vpop.f32.mrb[0].mxu0
      %3531 = vmatprep.mubr.f32.mxu0 0.0
      %3532 = vmatmul.mubr.f32.gmra.mrb[0].mxu0 %v2765
      %v3533 = vpop.f32.mrb[0].mxu0
      %v3534 = vadd.f32 %v3389, %v3533
      %v3535 = vpop.f32.mrb[0].mxu0
      %3536 = vmatprep.mubr.f32.mxu0 0.0
      %3537 = vmatmul.mubr.f32.gmra.mrb[0].mxu0 %v2768
      %v3538 = vpop.f32.mrb[0].mxu0
      %v3539 = vadd.f32 %v3394, %v3538
      %v3540 = vpop.f32.mrb[0].mxu0
      %3541 = vmatprep.mubr.f32.mxu0 0.0
      %3542 = vmatmul.mubr.f32.gmra.mrb[0].mxu0 %v2771
      %v3543 = vpop.f32.mrb[0].mxu0
      %v3544 = vadd.f32 %v3399, %v3543
      %v3545 = vpop.f32.mrb[0].mxu0
      %3546 = vmatprep.mubr.f32.mxu0 0.0
      %3547 = vmatmul.mubr.f32.gmra.mrb[0].mxu0 %v2774
      %v3548 = vpop.f32.mrb[0].mxu0
      %v3549 = vadd.f32 %v3404, %v3548
      %v3550 = vpop.f32.mrb[0].mxu0
      %3551 = vmatprep.mubr.f32.mxu0 0.0
      %3552 = vmatmul.mubr.f32.gmra.mrb[0].mxu0 %v2777
      %v3553 = vpop.f32.mrb[0].mxu0
      %v3554 = vadd.f32 %v3409, %v3553
      %v3555 = vpop.f32.mrb[0].mxu0
      %3556 = vdwg.mxu0
      %v3557 = vld [vmem:[#allocation2] sm:$0x1]
      %v3559 = vlaneseq
      %v3560 = vshrl.u32 %v3559, 7
      %v3561 = vsub.s32 0, %v3560
      %v3562 = vrot.slane %v3557, %v3561
      %v3564 = vadd.f32 %v3479, %v3562
      %v3565 = vadd.f32 %v3484, %v3562
      %v3566 = vadd.f32 %v3489, %v3562
      %v3567 = vadd.f32 %v3494, %v3562
      %v3568 = vadd.f32 %v3499, %v3562
      %v3569 = vadd.f32 %v3504, %v3562
      %v3570 = vadd.f32 %v3509, %v3562
      %v3571 = vadd.f32 %v3514, %v3562
      %v3572 = vadd.f32 %v3519, %v3562
      %v3573 = vadd.f32 %v3524, %v3562
      %v3574 = vadd.f32 %v3529, %v3562
      %v3575 = vadd.f32 %v3534, %v3562
      %v3576 = vadd.f32 %v3539, %v3562
      %v3577 = vadd.f32 %v3544, %v3562
      %v3578 = vadd.f32 %v3549, %v3562
      %v3579 = vadd.f32 %v3554, %v3562
      %v3580 = vmax.f32 %v3564, -0.1
      %v3581 = vmax.f32 %v3565, -0.1
      %v3582 = vmax.f32 %v3566, -0.1
      %v3583 = vmax.f32 %v3567, -0.1
      %v3584 = vmax.f32 %v3568, -0.1
      %v3585 = vmax.f32 %v3569, -0.1
      %v3586 = vmax.f32 %v3570, -0.1
      %v3587 = vmax.f32 %v3571, -0.1
      %v3588 = vmax.f32 %v3572, -0.1
      %v3589 = vmax.f32 %v3573, -0.1
      %v3590 = vmax.f32 %v3574, -0.1
      %v3591 = vmax.f32 %v3575, -0.1
      %v3592 = vmax.f32 %v3576, -0.1
      %v3593 = vmax.f32 %v3577, -0.1
      %v3594 = vmax.f32 %v3578, -0.1
      %v3595 = vmax.f32 %v3579, -0.1
      %v3596 = vmin.f32 %v3580, 0.1
      %v3597 = vmin.f32 %v3581, 0.1
      %v3598 = vmin.f32 %v3582, 0.1
      %v3599 = vmin.f32 %v3583, 0.1
      %v3600 = vmin.f32 %v3584, 0.1
      %v3601 = vmin.f32 %v3585, 0.1
      %v3602 = vmin.f32 %v3586, 0.1
      %v3603 = vmin.f32 %v3587, 0.1
      %v3604 = vmin.f32 %v3588, 0.1
      %v3605 = vmin.f32 %v3589, 0.1
      %v3606 = vmin.f32 %v3590, 0.1
      %v3607 = vmin.f32 %v3591, 0.1
      %v3608 = vmin.f32 %v3592, 0.1
      %v3609 = vmin.f32 %v3593, 0.1
      %v3610 = vmin.f32 %v3594, 0.1
      %v3611 = vmin.f32 %v3595, 0.1
      %vm3612 = vcmask 7168
      %3613 = vst.msk [vmem:[%s703] sm:$0xff] %vm3612, %v3596
      %3614 = vst.msk [vmem:[%s703 + $0x8] sm:$0xff] %vm3612, %v3597
      %3615 = vst.msk [vmem:[%s703 + $0x10] sm:$0xff] %vm3612, %v3598
      %3616 = vst.msk [vmem:[%s703 + $0x18] sm:$0xff] %vm3612, %v3599
      %3617 = vst.msk [vmem:[%s703 + $0x20] sm:$0xff] %vm3612, %v3600
      %3618 = vst.msk [vmem:[%s703 + $0x28] sm:$0xff] %vm3612, %v3601
      %3619 = vst.msk [vmem:[%s703 + $0x30] sm:$0xff] %vm3612, %v3602
      %3620 = vst.msk [vmem:[%s703 + $0x38] sm:$0xff] %vm3612, %v3603
      %3621 = vst.msk [vmem:[%s703 + $0x40] sm:$0xff] %vm3612, %v3604
      %3622 = vst.msk [vmem:[%s703 + $0x48] sm:$0xff] %vm3612, %v3605
      %3623 = vst.msk [vmem:[%s703 + $0x50] sm:$0xff] %vm3612, %v3606
      %3624 = vst.msk [vmem:[%s703 + $0x58] sm:$0xff] %vm3612, %v3607
      %3625 = vst.msk [vmem:[%s703 + $0x60] sm:$0xff] %vm3612, %v3608
      %3626 = vst.msk [vmem:[%s703 + $0x68] sm:$0xff] %vm3612, %v3609
      %3627 = vst.msk [vmem:[%s703 + $0x70] sm:$0xff] %vm3612, %v3610
      %3628 = vst.msk [vmem:[%s703 + $0x78] sm:$0xff] %vm3612, %v3611
      %v3629 = vld [vmem:[%s12] sm:$0xff]
      %v3630 = vld [vmem:[%s12 + $0x8] sm:$0xf]
      %v3632 = vsel %vm2924, %v741, 0
      %v3635 = vsel %vm2924, %v742, 0
      %v3638 = vsel %vm2924, %v743, 0
      %v3641 = vsel %vm2924, %v744, 0
      %v3644 = vsel %vm2924, %v745, 0
      %v3647 = vsel %vm2924, %v746, 0
      %v3650 = vsel %vm2924, %v747, 0
      %v3653 = vsel %vm2924, %v748, 0
      %v3656 = vsel %vm2924, %v749, 0
      %v3659 = vsel %vm2924, %v750, 0
      %v3662 = vsel %vm2924, %v751, 0
      %v3665 = vsel %vm2924, %v752, 0
      %v3668 = vsel %vm2924, %v753, 0
      %v3671 = vsel %vm2924, %v754, 0
      %v3674 = vsel %vm2924, %v755, 0
      %v3677 = vsel %vm2924, %v756, 0
      %v3680 = vsel %vm3263, %v3630, 0
      %3682 = vmatprep.subr.mxu0 0.0
      %3683 = vmatpush1.msra.mxu0 %v3680
      %3684 = vmatprep.subr.mxu0 0.0
      %3685 = vmatpush1.msra.mxu0 0.0
      %3686 = vmatprep.subr.mxu0 0.0
      %3687 = vmatpush1.msra.mxu0 0.0
      %3688 = vmatprep.subr.mxu0 0.0
      %3689 = vmatpush1.msra.mxu0 0.0
      %3690 = vmatprep.subr.mxu0 0.0
      %3691 = vmatpush1.msra.mxu0 0.0
      %3692 = vmatprep.subr.mxu0 0.0
      %3693 = vmatpush1.msra.mxu0 0.0
      %3694 = vmatprep.subr.mxu0 0.0
      %3695 = vmatpush1.msra.mxu0 0.0
      %3696 = vmatprep.subr.mxu0 0.0
      %3697 = vmatpush1.msra.mxu0 0.0
      %3698 = vmatprep.subr.mxu0 0.0
      %3699 = vmatpush1.msra.mxu0 0.0
      %3700 = vmatprep.subr.mxu0 0.0
      %3701 = vmatpush1.msra.mxu0 0.0
      %3702 = vmatprep.subr.mxu0 0.0
      %3703 = vmatpush1.msra.mxu0 0.0
      %3704 = vmatprep.subr.mxu0 0.0
      %3705 = vmatpush1.msra.mxu0 0.0
      %3706 = vmatprep.subr.mxu0 0.0
      %3707 = vmatpush1.msra.mxu0 0.0
      %3708 = vmatprep.subr.mxu0 0.0
      %3709 = vmatpush1.msra.mxu0 0.0
      %3710 = vmatprep.subr.mxu0 0.0
      %3711 = vmatpush1.msra.mxu0 0.0
      %3712 = vmatprep.subr.mxu0 0.0
      %3713 = vmatpush1.msra.mxu0 0.0
      %3714 = vmatprep.subr.mxu0 0.0
      %3715 = vmatpush1.msra.mxu0 0.0
      %3716 = vmatprep.subr.mxu0 0.0
      %3717 = vmatpush1.msra.mxu0 0.0
      %3718 = vmatprep.subr.mxu0 0.0
      %3719 = vmatpush1.msra.mxu0 0.0
      %3720 = vmatprep.subr.mxu0 0.0
      %3721 = vmatpush1.msra.mxu0 0.0
      %3722 = vmatprep.subr.mxu0 0.0
      %3723 = vmatpush1.msra.mxu0 0.0
      %3724 = vmatprep.subr.mxu0 0.0
      %3725 = vmatpush1.msra.mxu0 0.0
      %3726 = vmatprep.subr.mxu0 0.0
      %3727 = vmatpush1.msra.mxu0 0.0
      %3728 = vmatprep.subr.mxu0 0.0
      %3729 = vmatpush1.msra.mxu0 0.0
      %3730 = vmatprep.subr.mxu0 0.0
      %3731 = vmatpush1.msra.mxu0 0.0
      %3732 = vmatprep.subr.mxu0 0.0
      %3733 = vmatpush1.msra.mxu0 0.0
      %3734 = vmatprep.subr.mxu0 0.0
      %3735 = vmatpush1.msra.mxu0 0.0
      %3736 = vmatprep.subr.mxu0 0.0
      %3737 = vmatpush1.msra.mxu0 0.0
      %3738 = vmatprep.subr.mxu0 0.0
      %3739 = vmatpush1.msra.mxu0 0.0
      %3740 = vmatprep.subr.mxu0 0.0
      %3741 = vmatpush1.msra.mxu0 0.0
      %3742 = vmatprep.subr.mxu0 0.0
      %3743 = vmatpush1.msra.mxu0 0.0
      %3744 = vmatprep.subr.mxu0 0.0
      %3745 = vmatpush1.msra.mxu0 0.0
      %3746 = vmatprep.mubr.f32.mxu0 0.0
      %3747 = vmatmul.mubr.f32.gmra.mrb[0].mxu0 %v3632
      %v3748 = vpop.f32.mrb[0].mxu0
      %v3749 = vadd.f32 0.0, %v3748
      %v3750 = vpop.f32.mrb[0].mxu0
      %3751 = vmatprep.mubr.f32.mxu0 0.0
      %3752 = vmatmul.mubr.f32.gmra.mrb[0].mxu0 %v3635
      %v3753 = vpop.f32.mrb[0].mxu0
      %v3754 = vadd.f32 0.0, %v3753
      %v3755 = vpop.f32.mrb[0].mxu0
      %3756 = vmatprep.mubr.f32.mxu0 0.0
      %3757 = vmatmul.mubr.f32.gmra.mrb[0].mxu0 %v3638
      %v3758 = vpop.f32.mrb[0].mxu0
      %v3759 = vadd.f32 0.0, %v3758
      %v3760 = vpop.f32.mrb[0].mxu0
      %3761 = vmatprep.mubr.f32.mxu0 0.0
      %3762 = vmatmul.mubr.f32.gmra.mrb[0].mxu0 %v3641
      %v3763 = vpop.f32.mrb[0].mxu0
      %v3764 = vadd.f32 0.0, %v3763
      %v3765 = vpop.f32.mrb[0].mxu0
      %3766 = vmatprep.mubr.f32.mxu0 0.0
      %3767 = vmatmul.mubr.f32.gmra.mrb[0].mxu0 %v3644
      %v3768 = vpop.f32.mrb[0].mxu0
      %v3769 = vadd.f32 0.0, %v3768
      %v3770 = vpop.f32.mrb[0].mxu0
      %3771 = vmatprep.mubr.f32.mxu0 0.0
      %3772 = vmatmul.mubr.f32.gmra.mrb[0].mxu0 %v3647
      %v3773 = vpop.f32.mrb[0].mxu0
      %v3774 = vadd.f32 0.0, %v3773
      %v3775 = vpop.f32.mrb[0].mxu0
      %3776 = vmatprep.mubr.f32.mxu0 0.0
      %3777 = vmatmul.mubr.f32.gmra.mrb[0].mxu0 %v3650
      %v3778 = vpop.f32.mrb[0].mxu0
      %v3779 = vadd.f32 0.0, %v3778
      %v3780 = vpop.f32.mrb[0].mxu0
      %3781 = vmatprep.mubr.f32.mxu0 0.0
      %3782 = vmatmul.mubr.f32.gmra.mrb[0].mxu0 %v3653
      %v3783 = vpop.f32.mrb[0].mxu0
      %v3784 = vadd.f32 0.0, %v3783
      %v3785 = vpop.f32.mrb[0].mxu0
      %3786 = vmatprep.mubr.f32.mxu0 0.0
      %3787 = vmatmul.mubr.f32.gmra.mrb[0].mxu0 %v3656
      %v3788 = vpop.f32.mrb[0].mxu0
      %v3789 = vadd.f32 0.0, %v3788
      %v3790 = vpop.f32.mrb[0].mxu0
      %3791 = vmatprep.mubr.f32.mxu0 0.0
      %3792 = vmatmul.mubr.f32.gmra.mrb[0].mxu0 %v3659
      %v3793 = vpop.f32.mrb[0].mxu0
      %v3794 = vadd.f32 0.0, %v3793
      %v3795 = vpop.f32.mrb[0].mxu0
      %3796 = vmatprep.mubr.f32.mxu0 0.0
      %3797 = vmatmul.mubr.f32.gmra.mrb[0].mxu0 %v3662
      %v3798 = vpop.f32.mrb[0].mxu0
      %v3799 = vadd.f32 0.0, %v3798
      %v3800 = vpop.f32.mrb[0].mxu0
      %3801 = vmatprep.mubr.f32.mxu0 0.0
      %3802 = vmatmul.mubr.f32.gmra.mrb[0].mxu0 %v3665
      %v3803 = vpop.f32.mrb[0].mxu0
      %v3804 = vadd.f32 0.0, %v3803
      %v3805 = vpop.f32.mrb[0].mxu0
      %3806 = vmatprep.mubr.f32.mxu0 0.0
      %3807 = vmatmul.mubr.f32.gmra.mrb[0].mxu0 %v3668
      %v3808 = vpop.f32.mrb[0].mxu0
      %v3809 = vadd.f32 0.0, %v3808
      %v3810 = vpop.f32.mrb[0].mxu0
      %3811 = vmatprep.mubr.f32.mxu0 0.0
      %3812 = vmatmul.mubr.f32.gmra.mrb[0].mxu0 %v3671
      %v3813 = vpop.f32.mrb[0].mxu0
      %v3814 = vadd.f32 0.0, %v3813
      %v3815 = vpop.f32.mrb[0].mxu0
      %3816 = vmatprep.mubr.f32.mxu0 0.0
      %3817 = vmatmul.mubr.f32.gmra.mrb[0].mxu0 %v3674
      %v3818 = vpop.f32.mrb[0].mxu0
      %v3819 = vadd.f32 0.0, %v3818
      %v3820 = vpop.f32.mrb[0].mxu0
      %3821 = vmatprep.mubr.f32.mxu0 0.0
      %3822 = vmatmul.mubr.f32.gmra.mrb[0].mxu0 %v3677
      %v3823 = vpop.f32.mrb[0].mxu0
      %v3824 = vadd.f32 0.0, %v3823
      %v3825 = vpop.f32.mrb[0].mxu0
      %3826 = vdwg.mxu0
      %v3828 = vsel %vm2202, %v2595, 0
      %v3831 = vsel %vm2202, %v2596, 0
      %v3834 = vsel %vm2202, %v2597, 0
      %v3837 = vsel %vm2202, %v2598, 0
      %v3840 = vsel %vm2202, %v2599, 0
      %v3843 = vsel %vm2202, %v2600, 0
      %v3846 = vsel %vm2202, %v2601, 0
      %v3849 = vsel %vm2202, %v2602, 0
      %v3852 = vsel %vm2202, %v2603, 0
      %v3855 = vsel %vm2202, %v2604, 0
      %v3858 = vsel %vm2202, %v2605, 0
      %v3861 = vsel %vm2202, %v2606, 0
      %v3864 = vsel %vm2202, %v2607, 0
      %v3867 = vsel %vm2202, %v2608, 0
      %v3870 = vsel %vm2202, %v2609, 0
      %v3873 = vsel %vm2202, %v2610, 0
      %3875 = vmatprep.subr.mxu0 0.0
      %3876 = vmatpush1.msra.mxu0 %v3629
      %3877 = vmatprep.subr.mxu0 0.0
      %3878 = vmatpush1.msra.mxu0 0.0
      %3879 = vmatprep.subr.mxu0 0.0
      %3880 = vmatpush1.msra.mxu0 0.0
      %3881 = vmatprep.subr.mxu0 0.0
      %3882 = vmatpush1.msra.mxu0 0.0
      %3883 = vmatprep.subr.mxu0 0.0
      %3884 = vmatpush1.msra.mxu0 0.0
      %3885 = vmatprep.subr.mxu0 0.0
      %3886 = vmatpush1.msra.mxu0 0.0
      %3887 = vmatprep.subr.mxu0 0.0
      %3888 = vmatpush1.msra.mxu0 0.0
      %3889 = vmatprep.subr.mxu0 0.0
      %3890 = vmatpush1.msra.mxu0 0.0
      %3891 = vmatprep.subr.mxu0 0.0
      %3892 = vmatpush1.msra.mxu0 0.0
      %3893 = vmatprep.subr.mxu0 0.0
      %3894 = vmatpush1.msra.mxu0 0.0
      %3895 = vmatprep.subr.mxu0 0.0
      %3896 = vmatpush1.msra.mxu0 0.0
      %3897 = vmatprep.subr.mxu0 0.0
      %3898 = vmatpush1.msra.mxu0 0.0
      %3899 = vmatprep.subr.mxu0 0.0
      %3900 = vmatpush1.msra.mxu0 0.0
      %3901 = vmatprep.subr.mxu0 0.0
      %3902 = vmatpush1.msra.mxu0 0.0
      %3903 = vmatprep.subr.mxu0 0.0
      %3904 = vmatpush1.msra.mxu0 0.0
      %3905 = vmatprep.subr.mxu0 0.0
      %3906 = vmatpush1.msra.mxu0 0.0
      %3907 = vmatprep.subr.mxu0 0.0
      %3908 = vmatpush1.msra.mxu0 0.0
      %3909 = vmatprep.subr.mxu0 0.0
      %3910 = vmatpush1.msra.mxu0 0.0
      %3911 = vmatprep.subr.mxu0 0.0
      %3912 = vmatpush1.msra.mxu0 0.0
      %3913 = vmatprep.subr.mxu0 0.0
      %3914 = vmatpush1.msra.mxu0 0.0
      %3915 = vmatprep.subr.mxu0 0.0
      %3916 = vmatpush1.msra.mxu0 0.0
      %3917 = vmatprep.subr.mxu0 0.0
      %3918 = vmatpush1.msra.mxu0 0.0
      %3919 = vmatprep.subr.mxu0 0.0
      %3920 = vmatpush1.msra.mxu0 0.0
      %3921 = vmatprep.subr.mxu0 0.0
      %3922 = vmatpush1.msra.mxu0 0.0
      %3923 = vmatprep.subr.mxu0 0.0
      %3924 = vmatpush1.msra.mxu0 0.0
      %3925 = vmatprep.subr.mxu0 0.0
      %3926 = vmatpush1.msra.mxu0 0.0
      %3927 = vmatprep.subr.mxu0 0.0
      %3928 = vmatpush1.msra.mxu0 0.0
      %3929 = vmatprep.subr.mxu0 0.0
      %3930 = vmatpush1.msra.mxu0 0.0
      %3931 = vmatprep.subr.mxu0 0.0
      %3932 = vmatpush1.msra.mxu0 0.0
      %3933 = vmatprep.subr.mxu0 0.0
      %3934 = vmatpush1.msra.mxu0 0.0
      %3935 = vmatprep.subr.mxu0 0.0
      %3936 = vmatpush1.msra.mxu0 0.0
      %3937 = vmatprep.subr.mxu0 0.0
      %3938 = vmatpush1.msra.mxu0 0.0
      %3939 = vmatprep.mubr.f32.mxu0 0.0
      %3940 = vmatmul.mubr.f32.gmra.mrb[0].mxu0 %v3828
      %v3941 = vpop.f32.mrb[0].mxu0
      %v3942 = vadd.f32 %v3749, %v3941
      %v3943 = vpop.f32.mrb[0].mxu0
      %3944 = vmatprep.mubr.f32.mxu0 0.0
      %3945 = vmatmul.mubr.f32.gmra.mrb[0].mxu0 %v3831
      %v3946 = vpop.f32.mrb[0].mxu0
      %v3947 = vadd.f32 %v3754, %v3946
      %v3948 = vpop.f32.mrb[0].mxu0
      %3949 = vmatprep.mubr.f32.mxu0 0.0
      %3950 = vmatmul.mubr.f32.gmra.mrb[0].mxu0 %v3834
      %v3951 = vpop.f32.mrb[0].mxu0
      %v3952 = vadd.f32 %v3759, %v3951
      %v3953 = vpop.f32.mrb[0].mxu0
      %3954 = vmatprep.mubr.f32.mxu0 0.0
      %3955 = vmatmul.mubr.f32.gmra.mrb[0].mxu0 %v3837
      %v3956 = vpop.f32.mrb[0].mxu0
      %v3957 = vadd.f32 %v3764, %v3956
      %v3958 = vpop.f32.mrb[0].mxu0
      %3959 = vmatprep.mubr.f32.mxu0 0.0
      %3960 = vmatmul.mubr.f32.gmra.mrb[0].mxu0 %v3840
      %v3961 = vpop.f32.mrb[0].mxu0
      %v3962 = vadd.f32 %v3769, %v3961
      %v3963 = vpop.f32.mrb[0].mxu0
      %3964 = vmatprep.mubr.f32.mxu0 0.0
      %3965 = vmatmul.mubr.f32.gmra.mrb[0].mxu0 %v3843
      %v3966 = vpop.f32.mrb[0].mxu0
      %v3967 = vadd.f32 %v3774, %v3966
      %v3968 = vpop.f32.mrb[0].mxu0
      %3969 = vmatprep.mubr.f32.mxu0 0.0
      %3970 = vmatmul.mubr.f32.gmra.mrb[0].mxu0 %v3846
      %v3971 = vpop.f32.mrb[0].mxu0
      %v3972 = vadd.f32 %v3779, %v3971
      %v3973 = vpop.f32.mrb[0].mxu0
      %3974 = vmatprep.mubr.f32.mxu0 0.0
      %3975 = vmatmul.mubr.f32.gmra.mrb[0].mxu0 %v3849
      %v3976 = vpop.f32.mrb[0].mxu0
      %v3977 = vadd.f32 %v3784, %v3976
      %v3978 = vpop.f32.mrb[0].mxu0
      %3979 = vmatprep.mubr.f32.mxu0 0.0
      %3980 = vmatmul.mubr.f32.gmra.mrb[0].mxu0 %v3852
      %v3981 = vpop.f32.mrb[0].mxu0
      %v3982 = vadd.f32 %v3789, %v3981
      %v3983 = vpop.f32.mrb[0].mxu0
      %3984 = vmatprep.mubr.f32.mxu0 0.0
      %3985 = vmatmul.mubr.f32.gmra.mrb[0].mxu0 %v3855
      %v3986 = vpop.f32.mrb[0].mxu0
      %v3987 = vadd.f32 %v3794, %v3986
      %v3988 = vpop.f32.mrb[0].mxu0
      %3989 = vmatprep.mubr.f32.mxu0 0.0
      %3990 = vmatmul.mubr.f32.gmra.mrb[0].mxu0 %v3858
      %v3991 = vpop.f32.mrb[0].mxu0
      %v3992 = vadd.f32 %v3799, %v3991
      %v3993 = vpop.f32.mrb[0].mxu0
      %3994 = vmatprep.mubr.f32.mxu0 0.0
      %3995 = vmatmul.mubr.f32.gmra.mrb[0].mxu0 %v3861
      %v3996 = vpop.f32.mrb[0].mxu0
      %v3997 = vadd.f32 %v3804, %v3996
      %v3998 = vpop.f32.mrb[0].mxu0
      %3999 = vmatprep.mubr.f32.mxu0 0.0
      %4000 = vmatmul.mubr.f32.gmra.mrb[0].mxu0 %v3864
      %v4001 = vpop.f32.mrb[0].mxu0
      %v4002 = vadd.f32 %v3809, %v4001
      %v4003 = vpop.f32.mrb[0].mxu0
      %4004 = vmatprep.mubr.f32.mxu0 0.0
      %4005 = vmatmul.mubr.f32.gmra.mrb[0].mxu0 %v3867
      %v4006 = vpop.f32.mrb[0].mxu0
      %v4007 = vadd.f32 %v3814, %v4006
      %v4008 = vpop.f32.mrb[0].mxu0
      %4009 = vmatprep.mubr.f32.mxu0 0.0
      %4010 = vmatmul.mubr.f32.gmra.mrb[0].mxu0 %v3870
      %v4011 = vpop.f32.mrb[0].mxu0
      %v4012 = vadd.f32 %v3819, %v4011
      %v4013 = vpop.f32.mrb[0].mxu0
      %4014 = vmatprep.mubr.f32.mxu0 0.0
      %4015 = vmatmul.mubr.f32.gmra.mrb[0].mxu0 %v3873
      %v4016 = vpop.f32.mrb[0].mxu0
      %v4017 = vadd.f32 %v3824, %v4016
      %v4018 = vpop.f32.mrb[0].mxu0
      %4019 = vdwg.mxu0
      %v4020 = vld [vmem:[%s13] sm:$0x1]
      %v4022 = vlaneseq
      %v4023 = vshrl.u32 %v4022, 7
      %v4024 = vsub.s32 0, %v4023
      %v4025 = vrot.slane %v4020, %v4024
      %v4027 = vadd.f32 %v3942, %v4025
      %v4028 = vadd.f32 %v3947, %v4025
      %v4029 = vadd.f32 %v3952, %v4025
      %v4030 = vadd.f32 %v3957, %v4025
      %v4031 = vadd.f32 %v3962, %v4025
      %v4032 = vadd.f32 %v3967, %v4025
      %v4033 = vadd.f32 %v3972, %v4025
      %v4034 = vadd.f32 %v3977, %v4025
      %v4035 = vadd.f32 %v3982, %v4025
      %v4036 = vadd.f32 %v3987, %v4025
      %v4037 = vadd.f32 %v3992, %v4025
      %v4038 = vadd.f32 %v3997, %v4025
      %v4039 = vadd.f32 %v4002, %v4025
      %v4040 = vadd.f32 %v4007, %v4025
      %v4041 = vadd.f32 %v4012, %v4025
      %v4042 = vadd.f32 %v4017, %v4025
      %v4043 = vld [vmem:[%s14] sm:$0x3]
      %v4044 = vld [vmem:[%s15] sm:$0xff]
      %v4045 = vld [vmem:[%s15 + $0x8] sm:$0xff]
      %v4046 = vld [vmem:[%s16] sm:$0x1]
      %v4048 = vsel %vm966, %v4043, 0
      %v4051 = vsel %vm966, %v4027, 0
      %v4054 = vsel %vm966, %v4028, 0
      %v4057 = vsel %vm966, %v4029, 0
      %v4060 = vsel %vm966, %v4030, 0
      %v4063 = vsel %vm966, %v4031, 0
      %v4066 = vsel %vm966, %v4032, 0
      %v4069 = vsel %vm966, %v4033, 0
      %v4072 = vsel %vm966, %v4034, 0
      %v4075 = vsel %vm966, %v4035, 0
      %v4078 = vsel %vm966, %v4036, 0
      %v4081 = vsel %vm966, %v4037, 0
      %v4084 = vsel %vm966, %v4038, 0
      %v4087 = vsel %vm966, %v4039, 0
      %v4090 = vsel %vm966, %v4040, 0
      %v4093 = vsel %vm966, %v4041, 0
      %v4096 = vsel %vm966, %v4042, 0
      %4098 = vmatprep.subr.mxu0 0.0
      %4099 = vmatpush1.xpose.msra.mxu0 %v4051
      %4100 = vmatprep.subr.mxu0 0.0
      %4101 = vmatpush1.xpose.msra.mxu0 %v4054
      %4102 = vmatprep.subr.mxu0 0.0
      %4103 = vmatpush1.xpose.msra.mxu0 %v4057
      %4104 = vmatprep.subr.mxu0 0.0
      %4105 = vmatpush1.xpose.msra.mxu0 %v4060
      %4106 = vmatprep.subr.mxu0 0.0
      %4107 = vmatpush1.xpose.msra.mxu0 %v4063
      %4108 = vmatprep.subr.mxu0 0.0
      %4109 = vmatpush1.xpose.msra.mxu0 %v4066
      %4110 = vmatprep.subr.mxu0 0.0
      %4111 = vmatpush1.xpose.msra.mxu0 %v4069
      %4112 = vmatprep.subr.mxu0 0.0
      %4113 = vmatpush1.xpose.msra.mxu0 %v4072
      %4114 = vmatprep.subr.mxu0 0.0
      %4115 = vmatpush1.xpose.msra.mxu0 %v4075
      %4116 = vmatprep.subr.mxu0 0.0
      %4117 = vmatpush1.xpose.msra.mxu0 %v4078
      %4118 = vmatprep.subr.mxu0 0.0
      %4119 = vmatpush1.xpose.msra.mxu0 %v4081
      %4120 = vmatprep.subr.mxu0 0.0
      %4121 = vmatpush1.xpose.msra.mxu0 %v4084
      %4122 = vmatprep.subr.mxu0 0.0
      %4123 = vmatpush1.xpose.msra.mxu0 %v4087
      %4124 = vmatprep.subr.mxu0 0.0
      %4125 = vmatpush1.xpose.msra.mxu0 %v4090
      %4126 = vmatprep.subr.mxu0 0.0
      %4127 = vmatpush1.xpose.msra.mxu0 %v4093
      %4128 = vmatprep.subr.mxu0 0.0
      %4129 = vmatpush1.xpose.msra.mxu0 %v4096
      %4130 = vmatprep.subr.mxu0 0.0
      %4131 = vmatpush1.xpose.msra.mxu0 0.0
      %4132 = vmatprep.subr.mxu0 0.0
      %4133 = vmatpush1.xpose.msra.mxu0 0.0
      %4134 = vmatprep.subr.mxu0 0.0
      %4135 = vmatpush1.xpose.msra.mxu0 0.0
      %4136 = vmatprep.subr.mxu0 0.0
      %4137 = vmatpush1.xpose.msra.mxu0 0.0
      %4138 = vmatprep.subr.mxu0 0.0
      %4139 = vmatpush1.xpose.msra.mxu0 0.0
      %4140 = vmatprep.subr.mxu0 0.0
      %4141 = vmatpush1.xpose.msra.mxu0 0.0
      %4142 = vmatprep.subr.mxu0 0.0
      %4143 = vmatpush1.xpose.msra.mxu0 0.0
      %4144 = vmatprep.subr.mxu0 0.0
      %4145 = vmatpush1.xpose.msra.mxu0 0.0
      %4146 = vmatprep.subr.mxu0 0.0
      %4147 = vmatpush1.xpose.msra.mxu0 0.0
      %4148 = vmatprep.subr.mxu0 0.0
      %4149 = vmatpush1.xpose.msra.mxu0 0.0
      %4150 = vmatprep.subr.mxu0 0.0
      %4151 = vmatpush1.xpose.msra.mxu0 0.0
      %4152 = vmatprep.subr.mxu0 0.0
      %4153 = vmatpush1.xpose.msra.mxu0 0.0
      %4154 = vmatprep.subr.mxu0 0.0
      %4155 = vmatpush1.xpose.msra.mxu0 0.0
      %4156 = vmatprep.subr.mxu0 0.0
      %4157 = vmatpush1.xpose.msra.mxu0 0.0
      %4158 = vmatprep.subr.mxu0 0.0
      %4159 = vmatpush1.xpose.msra.mxu0 0.0
      %4160 = vmatprep.subr.mxu0 0.0
      %4161 = vmatpush1.xpose.msra.mxu0 0.0
      %4162 = vmatprep.mubr.f32.mxu0 0.0
      %4163 = vmatmul.mubr.f32.gmra.mrb[0].mxu0 %v4048
      %v4164 = vpop.f32.mrb[0].mxu0
      %v4165 = vadd.f32 0.0, %v4164
      %v4166 = vpop.f32.mrb[0].mxu0
      %4167 = vdwg.mxu0
      %4168 = vset.pattern.permute.xlu0 16
      %4169 = vperm.xlu0 %4168, %v4027
      %v4170 = vpop.permute.xlu0 %4169
      %4172 = vset.pattern.permute.xlu0 16
      %4173 = vperm.xlu0 %4172, %v4028
      %v4174 = vpop.permute.xlu0 %4173
      %4176 = vset.pattern.permute.xlu0 16
      %4177 = vperm.xlu0 %4176, %v4029
      %v4178 = vpop.permute.xlu0 %4177
      %4180 = vset.pattern.permute.xlu0 16
      %4181 = vperm.xlu0 %4180, %v4030
      %v4182 = vpop.permute.xlu0 %4181
      %4184 = vset.pattern.permute.xlu0 16
      %4185 = vperm.xlu0 %4184, %v4031
      %v4186 = vpop.permute.xlu0 %4185
      %4188 = vset.pattern.permute.xlu0 16
      %4189 = vperm.xlu0 %4188, %v4032
      %v4190 = vpop.permute.xlu0 %4189
      %4192 = vset.pattern.permute.xlu0 16
      %4193 = vperm.xlu0 %4192, %v4033
      %v4194 = vpop.permute.xlu0 %4193
      %4196 = vset.pattern.permute.xlu0 16
      %4197 = vperm.xlu0 %4196, %v4034
      %v4198 = vpop.permute.xlu0 %4197
      %4200 = vset.pattern.permute.xlu0 16
      %4201 = vperm.xlu0 %4200, %v4035
      %v4202 = vpop.permute.xlu0 %4201
      %4204 = vset.pattern.permute.xlu0 16
      %4205 = vperm.xlu0 %4204, %v4036
      %v4206 = vpop.permute.xlu0 %4205
      %4208 = vset.pattern.permute.xlu0 16
      %4209 = vperm.xlu0 %4208, %v4037
      %v4210 = vpop.permute.xlu0 %4209
      %4212 = vset.pattern.permute.xlu0 16
      %4213 = vperm.xlu0 %4212, %v4038
      %v4214 = vpop.permute.xlu0 %4213
      %4216 = vset.pattern.permute.xlu0 16
      %4217 = vperm.xlu0 %4216, %v4039
      %v4218 = vpop.permute.xlu0 %4217
      %4220 = vset.pattern.permute.xlu0 16
      %4221 = vperm.xlu0 %4220, %v4040
      %v4222 = vpop.permute.xlu0 %4221
      %4224 = vset.pattern.permute.xlu0 16
      %4225 = vperm.xlu0 %4224, %v4041
      %v4226 = vpop.permute.xlu0 %4225
      %4228 = vset.pattern.permute.xlu0 16
      %4229 = vperm.xlu0 %4228, %v4042
      %v4230 = vpop.permute.xlu0 %4229
      %v4232 = vlaneseq
      %v4233 = vshrl.u32 %v4232, 7
      %v4234 = vsub.s32 0, %v4233
      %v4235 = vrot.slane %v4165, %v4234
      %v4236 = vadd.f32 %v4170, %v4235
      %v4237 = vadd.f32 %v4174, %v4235
      %v4238 = vadd.f32 %v4178, %v4235
      %v4239 = vadd.f32 %v4182, %v4235
      %v4240 = vadd.f32 %v4186, %v4235
      %v4241 = vadd.f32 %v4190, %v4235
      %v4242 = vadd.f32 %v4194, %v4235
      %v4243 = vadd.f32 %v4198, %v4235
      %v4244 = vadd.f32 %v4202, %v4235
      %v4245 = vadd.f32 %v4206, %v4235
      %v4246 = vadd.f32 %v4210, %v4235
      %v4247 = vadd.f32 %v4214, %v4235
      %v4248 = vadd.f32 %v4218, %v4235
      %v4249 = vadd.f32 %v4222, %v4235
      %v4250 = vadd.f32 %v4226, %v4235
      %v4251 = vadd.f32 %v4230, %v4235
      %v4252 = vmul.f32 %v725, %v4236
      %v4253 = vmul.f32 %v726, %v4237
      %v4254 = vmul.f32 %v727, %v4238
      %v4255 = vmul.f32 %v728, %v4239
      %v4256 = vmul.f32 %v729, %v4240
      %v4257 = vmul.f32 %v730, %v4241
      %v4258 = vmul.f32 %v731, %v4242
      %v4259 = vmul.f32 %v732, %v4243
      %v4260 = vmul.f32 %v733, %v4244
      %v4261 = vmul.f32 %v734, %v4245
      %v4262 = vmul.f32 %v735, %v4246
      %v4263 = vmul.f32 %v736, %v4247
      %v4264 = vmul.f32 %v737, %v4248
      %v4265 = vmul.f32 %v738, %v4249
      %v4266 = vmul.f32 %v739, %v4250
      %v4267 = vmul.f32 %v740, %v4251
      %vm4268 = vcmp.ne.f32.partialorder %v4252, 0.0
      %vm4269 = vcmp.ne.f32.partialorder %v4253, 0.0
      %vm4270 = vcmp.ne.f32.partialorder %v4254, 0.0
      %vm4271 = vcmp.ne.f32.partialorder %v4255, 0.0
      %vm4272 = vcmp.ne.f32.partialorder %v4256, 0.0
      %vm4273 = vcmp.ne.f32.partialorder %v4257, 0.0
      %vm4274 = vcmp.ne.f32.partialorder %v4258, 0.0
      %vm4275 = vcmp.ne.f32.partialorder %v4259, 0.0
      %vm4276 = vcmp.ne.f32.partialorder %v4260, 0.0
      %vm4277 = vcmp.ne.f32.partialorder %v4261, 0.0
      %vm4278 = vcmp.ne.f32.partialorder %v4262, 0.0
      %vm4279 = vcmp.ne.f32.partialorder %v4263, 0.0
      %vm4280 = vcmp.ne.f32.partialorder %v4264, 0.0
      %vm4281 = vcmp.ne.f32.partialorder %v4265, 0.0
      %vm4282 = vcmp.ne.f32.partialorder %v4266, 0.0
      %vm4283 = vcmp.ne.f32.partialorder %v4267, 0.0
      %v4284 = vmul.f32 %v4252, 0.5
      %v4285 = vmul.f32 %v4253, 0.5
      %v4286 = vmul.f32 %v4254, 0.5
      %v4287 = vmul.f32 %v4255, 0.5
      %v4288 = vmul.f32 %v4256, 0.5
      %v4289 = vmul.f32 %v4257, 0.5
      %v4290 = vmul.f32 %v4258, 0.5
      %v4291 = vmul.f32 %v4259, 0.5
      %v4292 = vmul.f32 %v4260, 0.5
      %v4293 = vmul.f32 %v4261, 0.5
      %v4294 = vmul.f32 %v4262, 0.5
      %v4295 = vmul.f32 %v4263, 0.5
      %v4296 = vmul.f32 %v4264, 0.5
      %v4297 = vmul.f32 %v4265, 0.5
      %v4298 = vmul.f32 %v4266, 0.5
      %v4299 = vmul.f32 %v4267, 0.5
      %v4300 = vtanh.pop %v4284
      %v4301 = vtanh.pop %v4285
      %v4302 = vtanh.pop %v4286
      %v4303 = vtanh.pop %v4287
      %v4304 = vtanh.pop %v4288
      %v4305 = vtanh.pop %v4289
      %v4306 = vtanh.pop %v4290
      %v4307 = vtanh.pop %v4291
      %v4308 = vtanh.pop %v4292
      %v4309 = vtanh.pop %v4293
      %v4310 = vtanh.pop %v4294
      %v4311 = vtanh.pop %v4295
      %v4312 = vtanh.pop %v4296
      %v4313 = vtanh.pop %v4297
      %v4314 = vtanh.pop %v4298
      %v4315 = vtanh.pop %v4299
      %v4316 = vmul.f32 %v4300, 0.5
      %v4317 = vmul.f32 %v4301, 0.5
      %v4318 = vmul.f32 %v4302, 0.5
      %v4319 = vmul.f32 %v4303, 0.5
      %v4320 = vmul.f32 %v4304, 0.5
      %v4321 = vmul.f32 %v4305, 0.5
      %v4322 = vmul.f32 %v4306, 0.5
      %v4323 = vmul.f32 %v4307, 0.5
      %v4324 = vmul.f32 %v4308, 0.5
      %v4325 = vmul.f32 %v4309, 0.5
      %v4326 = vmul.f32 %v4310, 0.5
      %v4327 = vmul.f32 %v4311, 0.5
      %v4328 = vmul.f32 %v4312, 0.5
      %v4329 = vmul.f32 %v4313, 0.5
      %v4330 = vmul.f32 %v4314, 0.5
      %v4331 = vmul.f32 %v4315, 0.5
      %v4332 = vmul.f32 %v4316, 1.442695
      %v4333 = vpow.pop %v4332
      %v4334 = vmul.f32 %v4317, 1.442695
      %v4335 = vpow.pop %v4334
      %v4336 = vmul.f32 %v4318, 1.442695
      %v4337 = vpow.pop %v4336
      %v4338 = vmul.f32 %v4319, 1.442695
      %v4339 = vpow.pop %v4338
      %v4340 = vmul.f32 %v4320, 1.442695
      %v4341 = vpow.pop %v4340
      %v4342 = vmul.f32 %v4321, 1.442695
      %v4343 = vpow.pop %v4342
      %v4344 = vmul.f32 %v4322, 1.442695
      %v4345 = vpow.pop %v4344
      %v4346 = vmul.f32 %v4323, 1.442695
      %v4347 = vpow.pop %v4346
      %v4348 = vmul.f32 %v4324, 1.442695
      %v4349 = vpow.pop %v4348
      %v4350 = vmul.f32 %v4325, 1.442695
      %v4351 = vpow.pop %v4350
      %v4352 = vmul.f32 %v4326, 1.442695
      %v4353 = vpow.pop %v4352
      %v4354 = vmul.f32 %v4327, 1.442695
      %v4355 = vpow.pop %v4354
      %v4356 = vmul.f32 %v4328, 1.442695
      %v4357 = vpow.pop %v4356
      %v4358 = vmul.f32 %v4329, 1.442695
      %v4359 = vpow.pop %v4358
      %v4360 = vmul.f32 %v4330, 1.442695
      %v4361 = vpow.pop %v4360
      %v4362 = vmul.f32 %v4331, 1.442695
      %v4363 = vpow.pop %v4362
      %v4364 = vsel %vm4268, %v4333, 0.0
      %v4365 = vsel %vm4269, %v4335, 0.0
      %v4366 = vsel %vm4270, %v4337, 0.0
      %v4367 = vsel %vm4271, %v4339, 0.0
      %v4368 = vsel %vm4272, %v4341, 0.0
      %v4369 = vsel %vm4273, %v4343, 0.0
      %v4370 = vsel %vm4274, %v4345, 0.0
      %v4371 = vsel %vm4275, %v4347, 0.0
      %v4372 = vsel %vm4276, %v4349, 0.0
      %v4373 = vsel %vm4277, %v4351, 0.0
      %v4374 = vsel %vm4278, %v4353, 0.0
      %v4375 = vsel %vm4279, %v4355, 0.0
      %v4376 = vsel %vm4280, %v4357, 0.0
      %v4377 = vsel %vm4281, %v4359, 0.0
      %v4378 = vsel %vm4282, %v4361, 0.0
      %v4379 = vsel %vm4283, %v4363, 0.0
      %4380 = vadd.xlane.f32.xlu0 %v4364
      %v4381 = vpop.xlane.xlu0 %4380
      %4382 = vadd.xlane.f32.xlu0 %v4365
      %v4383 = vpop.xlane.xlu0 %4382
      %4384 = vadd.xlane.f32.xlu0 %v4366
      %v4385 = vpop.xlane.xlu0 %4384
      %4386 = vadd.xlane.f32.xlu0 %v4367
      %v4387 = vpop.xlane.xlu0 %4386
      %4388 = vadd.xlane.f32.xlu0 %v4368
      %v4389 = vpop.xlane.xlu0 %4388
      %4390 = vadd.xlane.f32.xlu0 %v4369
      %v4391 = vpop.xlane.xlu0 %4390
      %4392 = vadd.xlane.f32.xlu0 %v4370
      %v4393 = vpop.xlane.xlu0 %4392
      %4394 = vadd.xlane.f32.xlu0 %v4371
      %v4395 = vpop.xlane.xlu0 %4394
      %4396 = vadd.xlane.f32.xlu0 %v4372
      %v4397 = vpop.xlane.xlu0 %4396
      %4398 = vadd.xlane.f32.xlu0 %v4373
      %v4399 = vpop.xlane.xlu0 %4398
      %4400 = vadd.xlane.f32.xlu0 %v4374
      %v4401 = vpop.xlane.xlu0 %4400
      %4402 = vadd.xlane.f32.xlu0 %v4375
      %v4403 = vpop.xlane.xlu0 %4402
      %4404 = vadd.xlane.f32.xlu0 %v4376
      %v4405 = vpop.xlane.xlu0 %4404
      %4406 = vadd.xlane.f32.xlu0 %v4377
      %v4407 = vpop.xlane.xlu0 %4406
      %4408 = vadd.xlane.f32.xlu0 %v4378
      %v4409 = vpop.xlane.xlu0 %4408
      %4410 = vadd.xlane.f32.xlu0 %v4379
      %v4411 = vpop.xlane.xlu0 %4410
      %v4412 = vrcp.pop %v4381
      %v4413 = vrcp.pop %v4383
      %v4414 = vrcp.pop %v4385
      %v4415 = vrcp.pop %v4387
      %v4416 = vrcp.pop %v4389
      %v4417 = vrcp.pop %v4391
      %v4418 = vrcp.pop %v4393
      %v4419 = vrcp.pop %v4395
      %v4420 = vrcp.pop %v4397
      %v4421 = vrcp.pop %v4399
      %v4422 = vrcp.pop %v4401
      %v4423 = vrcp.pop %v4403
      %v4424 = vrcp.pop %v4405
      %v4425 = vrcp.pop %v4407
      %v4426 = vrcp.pop %v4409
      %v4427 = vrcp.pop %v4411
      %v4428 = vmul.f32 %v4364, %v4412
      %v4429 = vmul.f32 %v4365, %v4413
      %v4430 = vmul.f32 %v4366, %v4414
      %v4431 = vmul.f32 %v4367, %v4415
      %v4432 = vmul.f32 %v4368, %v4416
      %v4433 = vmul.f32 %v4369, %v4417
      %v4434 = vmul.f32 %v4370, %v4418
      %v4435 = vmul.f32 %v4371, %v4419
      %v4436 = vmul.f32 %v4372, %v4420
      %v4437 = vmul.f32 %v4373, %v4421
      %v4438 = vmul.f32 %v4374, %v4422
      %v4439 = vmul.f32 %v4375, %v4423
      %v4440 = vmul.f32 %v4376, %v4424
      %v4441 = vmul.f32 %v4377, %v4425
      %v4442 = vmul.f32 %v4378, %v4426
      %v4443 = vmul.f32 %v4379, %v4427
      %v4444 = vsel %vm4268, %v4428, 0.0
      %v4445 = vsel %vm4269, %v4429, 0.0
      %v4446 = vsel %vm4270, %v4430, 0.0
      %v4447 = vsel %vm4271, %v4431, 0.0
      %v4448 = vsel %vm4272, %v4432, 0.0
      %v4449 = vsel %vm4273, %v4433, 0.0
      %v4450 = vsel %vm4274, %v4434, 0.0
      %v4451 = vsel %vm4275, %v4435, 0.0
      %v4452 = vsel %vm4276, %v4436, 0.0
      %v4453 = vsel %vm4277, %v4437, 0.0
      %v4454 = vsel %vm4278, %v4438, 0.0
      %v4455 = vsel %vm4279, %v4439, 0.0
      %v4456 = vsel %vm4280, %v4440, 0.0
      %v4457 = vsel %vm4281, %v4441, 0.0
      %v4458 = vsel %vm4282, %v4442, 0.0
      %v4459 = vsel %vm4283, %v4443, 0.0
      %4460 = vmatprep.subr.mxu0 0.0
      %4461 = vmatpush1.msra.mxu0 %v4027
      %4462 = vmatprep.subr.mxu0 0.0
      %4463 = vmatpush1.msra.mxu0 %v4028
      %4464 = vmatprep.subr.mxu0 0.0
      %4465 = vmatpush1.msra.mxu0 %v4029
      %4466 = vmatprep.subr.mxu0 0.0
      %4467 = vmatpush1.msra.mxu0 %v4030
      %4468 = vmatprep.subr.mxu0 0.0
      %4469 = vmatpush1.msra.mxu0 %v4031
      %4470 = vmatprep.subr.mxu0 0.0
      %4471 = vmatpush1.msra.mxu0 %v4032
      %4472 = vmatprep.subr.mxu0 0.0
      %4473 = vmatpush1.msra.mxu0 %v4033
      %4474 = vmatprep.subr.mxu0 0.0
      %4475 = vmatpush1.msra.mxu0 %v4034
      %4476 = vmatprep.subr.mxu0 0.0
      %4477 = vmatpush1.msra.mxu0 %v4035
      %4478 = vmatprep.subr.mxu0 0.0
      %4479 = vmatpush1.msra.mxu0 %v4036
      %4480 = vmatprep.subr.mxu0 0.0
      %4481 = vmatpush1.msra.mxu0 %v4037
      %4482 = vmatprep.subr.mxu0 0.0
      %4483 = vmatpush1.msra.mxu0 %v4038
      %4484 = vmatprep.subr.mxu0 0.0
      %4485 = vmatpush1.msra.mxu0 %v4039
      %4486 = vmatprep.subr.mxu0 0.0
      %4487 = vmatpush1.msra.mxu0 %v4040
      %4488 = vmatprep.subr.mxu0 0.0
      %4489 = vmatpush1.msra.mxu0 %v4041
      %4490 = vmatprep.subr.mxu0 0.0
      %4491 = vmatpush1.msra.mxu0 %v4042
      %4492 = vmatprep.subr.mxu0 0.0
      %4493 = vmatpush1.msra.mxu0 0.0
      %4494 = vmatprep.subr.mxu0 0.0
      %4495 = vmatpush1.msra.mxu0 0.0
      %4496 = vmatprep.subr.mxu0 0.0
      %4497 = vmatpush1.msra.mxu0 0.0
      %4498 = vmatprep.subr.mxu0 0.0
      %4499 = vmatpush1.msra.mxu0 0.0
      %4500 = vmatprep.subr.mxu0 0.0
      %4501 = vmatpush1.msra.mxu0 0.0
      %4502 = vmatprep.subr.mxu0 0.0
      %4503 = vmatpush1.msra.mxu0 0.0
      %4504 = vmatprep.subr.mxu0 0.0
      %4505 = vmatpush1.msra.mxu0 0.0
      %4506 = vmatprep.subr.mxu0 0.0
      %4507 = vmatpush1.msra.mxu0 0.0
      %4508 = vmatprep.subr.mxu0 0.0
      %4509 = vmatpush1.msra.mxu0 0.0
      %4510 = vmatprep.subr.mxu0 0.0
      %4511 = vmatpush1.msra.mxu0 0.0
      %4512 = vmatprep.subr.mxu0 0.0
      %4513 = vmatpush1.msra.mxu0 0.0
      %4514 = vmatprep.subr.mxu0 0.0
      %4515 = vmatpush1.msra.mxu0 0.0
      %4516 = vmatprep.subr.mxu0 0.0
      %4517 = vmatpush1.msra.mxu0 0.0
      %4518 = vmatprep.subr.mxu0 0.0
      %4519 = vmatpush1.msra.mxu0 0.0
      %4520 = vmatprep.subr.mxu0 0.0
      %4521 = vmatpush1.msra.mxu0 0.0
      %4522 = vmatprep.subr.mxu0 0.0
      %4523 = vmatpush1.msra.mxu0 0.0
      %4524 = vmatprep.mubr.f32.mxu0 0.0
      %4525 = vmatmul.mubr.f32.gmra.mrb[0].mxu0 %v4444
      %v4526 = vpop.f32.mrb[0].mxu0
      %v4527 = vadd.f32 0.0, %v4526
      %v4528 = vpop.f32.mrb[0].mxu0
      %4529 = vmatprep.mubr.f32.mxu0 0.0
      %4530 = vmatmul.mubr.f32.gmra.mrb[0].mxu0 %v4445
      %v4531 = vpop.f32.mrb[0].mxu0
      %v4532 = vadd.f32 0.0, %v4531
      %v4533 = vpop.f32.mrb[0].mxu0
      %4534 = vmatprep.mubr.f32.mxu0 0.0
      %4535 = vmatmul.mubr.f32.gmra.mrb[0].mxu0 %v4446
      %v4536 = vpop.f32.mrb[0].mxu0
      %v4537 = vadd.f32 0.0, %v4536
      %v4538 = vpop.f32.mrb[0].mxu0
      %4539 = vmatprep.mubr.f32.mxu0 0.0
      %4540 = vmatmul.mubr.f32.gmra.mrb[0].mxu0 %v4447
      %v4541 = vpop.f32.mrb[0].mxu0
      %v4542 = vadd.f32 0.0, %v4541
      %v4543 = vpop.f32.mrb[0].mxu0
      %4544 = vmatprep.mubr.f32.mxu0 0.0
      %4545 = vmatmul.mubr.f32.gmra.mrb[0].mxu0 %v4448
      %v4546 = vpop.f32.mrb[0].mxu0
      %v4547 = vadd.f32 0.0, %v4546
      %v4548 = vpop.f32.mrb[0].mxu0
      %4549 = vmatprep.mubr.f32.mxu0 0.0
      %4550 = vmatmul.mubr.f32.gmra.mrb[0].mxu0 %v4449
      %v4551 = vpop.f32.mrb[0].mxu0
      %v4552 = vadd.f32 0.0, %v4551
      %v4553 = vpop.f32.mrb[0].mxu0
      %4554 = vmatprep.mubr.f32.mxu0 0.0
      %4555 = vmatmul.mubr.f32.gmra.mrb[0].mxu0 %v4450
      %v4556 = vpop.f32.mrb[0].mxu0
      %v4557 = vadd.f32 0.0, %v4556
      %v4558 = vpop.f32.mrb[0].mxu0
      %4559 = vmatprep.mubr.f32.mxu0 0.0
      %4560 = vmatmul.mubr.f32.gmra.mrb[0].mxu0 %v4451
      %v4561 = vpop.f32.mrb[0].mxu0
      %v4562 = vadd.f32 0.0, %v4561
      %v4563 = vpop.f32.mrb[0].mxu0
      %4564 = vmatprep.mubr.f32.mxu0 0.0
      %4565 = vmatmul.mubr.f32.gmra.mrb[0].mxu0 %v4452
      %v4566 = vpop.f32.mrb[0].mxu0
      %v4567 = vadd.f32 0.0, %v4566
      %v4568 = vpop.f32.mrb[0].mxu0
      %4569 = vmatprep.mubr.f32.mxu0 0.0
      %4570 = vmatmul.mubr.f32.gmra.mrb[0].mxu0 %v4453
      %v4571 = vpop.f32.mrb[0].mxu0
      %v4572 = vadd.f32 0.0, %v4571
      %v4573 = vpop.f32.mrb[0].mxu0
      %4574 = vmatprep.mubr.f32.mxu0 0.0
      %4575 = vmatmul.mubr.f32.gmra.mrb[0].mxu0 %v4454
      %v4576 = vpop.f32.mrb[0].mxu0
      %v4577 = vadd.f32 0.0, %v4576
      %v4578 = vpop.f32.mrb[0].mxu0
      %4579 = vmatprep.mubr.f32.mxu0 0.0
      %4580 = vmatmul.mubr.f32.gmra.mrb[0].mxu0 %v4455
      %v4581 = vpop.f32.mrb[0].mxu0
      %v4582 = vadd.f32 0.0, %v4581
      %v4583 = vpop.f32.mrb[0].mxu0
      %4584 = vmatprep.mubr.f32.mxu0 0.0
      %4585 = vmatmul.mubr.f32.gmra.mrb[0].mxu0 %v4456
      %v4586 = vpop.f32.mrb[0].mxu0
      %v4587 = vadd.f32 0.0, %v4586
      %v4588 = vpop.f32.mrb[0].mxu0
      %4589 = vmatprep.mubr.f32.mxu0 0.0
      %4590 = vmatmul.mubr.f32.gmra.mrb[0].mxu0 %v4457
      %v4591 = vpop.f32.mrb[0].mxu0
      %v4592 = vadd.f32 0.0, %v4591
      %v4593 = vpop.f32.mrb[0].mxu0
      %4594 = vmatprep.mubr.f32.mxu0 0.0
      %4595 = vmatmul.mubr.f32.gmra.mrb[0].mxu0 %v4458
      %v4596 = vpop.f32.mrb[0].mxu0
      %v4597 = vadd.f32 0.0, %v4596
      %v4598 = vpop.f32.mrb[0].mxu0
      %4599 = vmatprep.mubr.f32.mxu0 0.0
      %4600 = vmatmul.mubr.f32.gmra.mrb[0].mxu0 %v4459
      %v4601 = vpop.f32.mrb[0].mxu0
      %v4602 = vadd.f32 0.0, %v4601
      %v4603 = vpop.f32.mrb[0].mxu0
      %4604 = vdwg.mxu0
      %4605 = vset.pattern.permute.xlu0 17
      %4606 = vperm.xlu0 %4605, %v4027
      %v4607 = vpop.permute.xlu0 %4606
      %4609 = vset.pattern.permute.xlu0 17
      %4610 = vperm.xlu0 %4609, %v4028
      %v4611 = vpop.permute.xlu0 %4610
      %4613 = vset.pattern.permute.xlu0 17
      %4614 = vperm.xlu0 %4613, %v4029
      %v4615 = vpop.permute.xlu0 %4614
      %4617 = vset.pattern.permute.xlu0 17
      %4618 = vperm.xlu0 %4617, %v4030
      %v4619 = vpop.permute.xlu0 %4618
      %4621 = vset.pattern.permute.xlu0 17
      %4622 = vperm.xlu0 %4621, %v4031
      %v4623 = vpop.permute.xlu0 %4622
      %4625 = vset.pattern.permute.xlu0 17
      %4626 = vperm.xlu0 %4625, %v4032
      %v4627 = vpop.permute.xlu0 %4626
      %4629 = vset.pattern.permute.xlu0 17
      %4630 = vperm.xlu0 %4629, %v4033
      %v4631 = vpop.permute.xlu0 %4630
      %4633 = vset.pattern.permute.xlu0 17
      %4634 = vperm.xlu0 %4633, %v4034
      %v4635 = vpop.permute.xlu0 %4634
      %4637 = vset.pattern.permute.xlu0 17
      %4638 = vperm.xlu0 %4637, %v4035
      %v4639 = vpop.permute.xlu0 %4638
      %4641 = vset.pattern.permute.xlu0 17
      %4642 = vperm.xlu0 %4641, %v4036
      %v4643 = vpop.permute.xlu0 %4642
      %4645 = vset.pattern.permute.xlu0 17
      %4646 = vperm.xlu0 %4645, %v4037
      %v4647 = vpop.permute.xlu0 %4646
      %4649 = vset.pattern.permute.xlu0 17
      %4650 = vperm.xlu0 %4649, %v4038
      %v4651 = vpop.permute.xlu0 %4650
      %4653 = vset.pattern.permute.xlu0 17
      %4654 = vperm.xlu0 %4653, %v4039
      %v4655 = vpop.permute.xlu0 %4654
      %4657 = vset.pattern.permute.xlu0 17
      %4658 = vperm.xlu0 %4657, %v4040
      %v4659 = vpop.permute.xlu0 %4658
      %4661 = vset.pattern.permute.xlu0 17
      %4662 = vperm.xlu0 %4661, %v4041
      %v4663 = vpop.permute.xlu0 %4662
      %4665 = vset.pattern.permute.xlu0 17
      %4666 = vperm.xlu0 %4665, %v4042
      %v4667 = vpop.permute.xlu0 %4666
      %v4669 = vlaneseq
      %v4670 = vshrl.u32 %v4669, 7
      %v4671 = vsub.s32 1, %v4670
      %v4672 = vrot.slane %v4165, %v4671
      %v4673 = vadd.f32 %v4607, %v4672
      %v4674 = vadd.f32 %v4611, %v4672
      %v4675 = vadd.f32 %v4615, %v4672
      %v4676 = vadd.f32 %v4619, %v4672
      %v4677 = vadd.f32 %v4623, %v4672
      %v4678 = vadd.f32 %v4627, %v4672
      %v4679 = vadd.f32 %v4631, %v4672
      %v4680 = vadd.f32 %v4635, %v4672
      %v4681 = vadd.f32 %v4639, %v4672
      %v4682 = vadd.f32 %v4643, %v4672
      %v4683 = vadd.f32 %v4647, %v4672
      %v4684 = vadd.f32 %v4651, %v4672
      %v4685 = vadd.f32 %v4655, %v4672
      %v4686 = vadd.f32 %v4659, %v4672
      %v4687 = vadd.f32 %v4663, %v4672
      %v4688 = vadd.f32 %v4667, %v4672
      %v4689 = vmul.f32 %v725, %v4673
      %v4690 = vmul.f32 %v726, %v4674
      %v4691 = vmul.f32 %v727, %v4675
      %v4692 = vmul.f32 %v728, %v4676
      %v4693 = vmul.f32 %v729, %v4677
      %v4694 = vmul.f32 %v730, %v4678
      %v4695 = vmul.f32 %v731, %v4679
      %v4696 = vmul.f32 %v732, %v4680
      %v4697 = vmul.f32 %v733, %v4681
      %v4698 = vmul.f32 %v734, %v4682
      %v4699 = vmul.f32 %v735, %v4683
      %v4700 = vmul.f32 %v736, %v4684
      %v4701 = vmul.f32 %v737, %v4685
      %v4702 = vmul.f32 %v738, %v4686
      %v4703 = vmul.f32 %v739, %v4687
      %v4704 = vmul.f32 %v740, %v4688
      %vm4705 = vcmp.ne.f32.partialorder %v4689, 0.0
      %vm4706 = vcmp.ne.f32.partialorder %v4690, 0.0
      %vm4707 = vcmp.ne.f32.partialorder %v4691, 0.0
      %vm4708 = vcmp.ne.f32.partialorder %v4692, 0.0
      %vm4709 = vcmp.ne.f32.partialorder %v4693, 0.0
      %vm4710 = vcmp.ne.f32.partialorder %v4694, 0.0
      %vm4711 = vcmp.ne.f32.partialorder %v4695, 0.0
      %vm4712 = vcmp.ne.f32.partialorder %v4696, 0.0
      %vm4713 = vcmp.ne.f32.partialorder %v4697, 0.0
      %vm4714 = vcmp.ne.f32.partialorder %v4698, 0.0
      %vm4715 = vcmp.ne.f32.partialorder %v4699, 0.0
      %vm4716 = vcmp.ne.f32.partialorder %v4700, 0.0
      %vm4717 = vcmp.ne.f32.partialorder %v4701, 0.0
      %vm4718 = vcmp.ne.f32.partialorder %v4702, 0.0
      %vm4719 = vcmp.ne.f32.partialorder %v4703, 0.0
      %vm4720 = vcmp.ne.f32.partialorder %v4704, 0.0
      %v4721 = vmul.f32 %v4689, 0.5
      %v4722 = vmul.f32 %v4690, 0.5
      %v4723 = vmul.f32 %v4691, 0.5
      %v4724 = vmul.f32 %v4692, 0.5
      %v4725 = vmul.f32 %v4693, 0.5
      %v4726 = vmul.f32 %v4694, 0.5
      %v4727 = vmul.f32 %v4695, 0.5
      %v4728 = vmul.f32 %v4696, 0.5
      %v4729 = vmul.f32 %v4697, 0.5
      %v4730 = vmul.f32 %v4698, 0.5
      %v4731 = vmul.f32 %v4699, 0.5
      %v4732 = vmul.f32 %v4700, 0.5
      %v4733 = vmul.f32 %v4701, 0.5
      %v4734 = vmul.f32 %v4702, 0.5
      %v4735 = vmul.f32 %v4703, 0.5
      %v4736 = vmul.f32 %v4704, 0.5
      %v4737 = vtanh.pop %v4721
      %v4738 = vtanh.pop %v4722
      %v4739 = vtanh.pop %v4723
      %v4740 = vtanh.pop %v4724
      %v4741 = vtanh.pop %v4725
      %v4742 = vtanh.pop %v4726
      %v4743 = vtanh.pop %v4727
      %v4744 = vtanh.pop %v4728
      %v4745 = vtanh.pop %v4729
      %v4746 = vtanh.pop %v4730
      %v4747 = vtanh.pop %v4731
      %v4748 = vtanh.pop %v4732
      %v4749 = vtanh.pop %v4733
      %v4750 = vtanh.pop %v4734
      %v4751 = vtanh.pop %v4735
      %v4752 = vtanh.pop %v4736
      %v4753 = vmul.f32 %v4737, 0.5
      %v4754 = vmul.f32 %v4738, 0.5
      %v4755 = vmul.f32 %v4739, 0.5
      %v4756 = vmul.f32 %v4740, 0.5
      %v4757 = vmul.f32 %v4741, 0.5
      %v4758 = vmul.f32 %v4742, 0.5
      %v4759 = vmul.f32 %v4743, 0.5
      %v4760 = vmul.f32 %v4744, 0.5
      %v4761 = vmul.f32 %v4745, 0.5
      %v4762 = vmul.f32 %v4746, 0.5
      %v4763 = vmul.f32 %v4747, 0.5
      %v4764 = vmul.f32 %v4748, 0.5
      %v4765 = vmul.f32 %v4749, 0.5
      %v4766 = vmul.f32 %v4750, 0.5
      %v4767 = vmul.f32 %v4751, 0.5
      %v4768 = vmul.f32 %v4752, 0.5
      %v4769 = vmul.f32 %v4753, 1.442695
      %v4770 = vpow.pop %v4769
      %v4771 = vmul.f32 %v4754, 1.442695
      %v4772 = vpow.pop %v4771
      %v4773 = vmul.f32 %v4755, 1.442695
      %v4774 = vpow.pop %v4773
      %v4775 = vmul.f32 %v4756, 1.442695
      %v4776 = vpow.pop %v4775
      %v4777 = vmul.f32 %v4757, 1.442695
      %v4778 = vpow.pop %v4777
      %v4779 = vmul.f32 %v4758, 1.442695
      %v4780 = vpow.pop %v4779
      %v4781 = vmul.f32 %v4759, 1.442695
      %v4782 = vpow.pop %v4781
      %v4783 = vmul.f32 %v4760, 1.442695
      %v4784 = vpow.pop %v4783
      %v4785 = vmul.f32 %v4761, 1.442695
      %v4786 = vpow.pop %v4785
      %v4787 = vmul.f32 %v4762, 1.442695
      %v4788 = vpow.pop %v4787
      %v4789 = vmul.f32 %v4763, 1.442695
      %v4790 = vpow.pop %v4789
      %v4791 = vmul.f32 %v4764, 1.442695
      %v4792 = vpow.pop %v4791
      %v4793 = vmul.f32 %v4765, 1.442695
      %v4794 = vpow.pop %v4793
      %v4795 = vmul.f32 %v4766, 1.442695
      %v4796 = vpow.pop %v4795
      %v4797 = vmul.f32 %v4767, 1.442695
      %v4798 = vpow.pop %v4797
      %v4799 = vmul.f32 %v4768, 1.442695
      %v4800 = vpow.pop %v4799
      %v4801 = vsel %vm4705, %v4770, 0.0
      %v4802 = vsel %vm4706, %v4772, 0.0
      %v4803 = vsel %vm4707, %v4774, 0.0
      %v4804 = vsel %vm4708, %v4776, 0.0
      %v4805 = vsel %vm4709, %v4778, 0.0
      %v4806 = vsel %vm4710, %v4780, 0.0
      %v4807 = vsel %vm4711, %v4782, 0.0
      %v4808 = vsel %vm4712, %v4784, 0.0
      %v4809 = vsel %vm4713, %v4786, 0.0
      %v4810 = vsel %vm4714, %v4788, 0.0
      %v4811 = vsel %vm4715, %v4790, 0.0
      %v4812 = vsel %vm4716, %v4792, 0.0
      %v4813 = vsel %vm4717, %v4794, 0.0
      %v4814 = vsel %vm4718, %v4796, 0.0
      %v4815 = vsel %vm4719, %v4798, 0.0
      %v4816 = vsel %vm4720, %v4800, 0.0
      %4817 = vadd.xlane.f32.xlu0 %v4801
      %v4818 = vpop.xlane.xlu0 %4817
      %4819 = vadd.xlane.f32.xlu0 %v4802
      %v4820 = vpop.xlane.xlu0 %4819
      %4821 = vadd.xlane.f32.xlu0 %v4803
      %v4822 = vpop.xlane.xlu0 %4821
      %4823 = vadd.xlane.f32.xlu0 %v4804
      %v4824 = vpop.xlane.xlu0 %4823
      %4825 = vadd.xlane.f32.xlu0 %v4805
      %v4826 = vpop.xlane.xlu0 %4825
      %4827 = vadd.xlane.f32.xlu0 %v4806
      %v4828 = vpop.xlane.xlu0 %4827
      %4829 = vadd.xlane.f32.xlu0 %v4807
      %v4830 = vpop.xlane.xlu0 %4829
      %4831 = vadd.xlane.f32.xlu0 %v4808
      %v4832 = vpop.xlane.xlu0 %4831
      %4833 = vadd.xlane.f32.xlu0 %v4809
      %v4834 = vpop.xlane.xlu0 %4833
      %4835 = vadd.xlane.f32.xlu0 %v4810
      %v4836 = vpop.xlane.xlu0 %4835
      %4837 = vadd.xlane.f32.xlu0 %v4811
      %v4838 = vpop.xlane.xlu0 %4837
      %4839 = vadd.xlane.f32.xlu0 %v4812
      %v4840 = vpop.xlane.xlu0 %4839
      %4841 = vadd.xlane.f32.xlu0 %v4813
      %v4842 = vpop.xlane.xlu0 %4841
      %4843 = vadd.xlane.f32.xlu0 %v4814
      %v4844 = vpop.xlane.xlu0 %4843
      %4845 = vadd.xlane.f32.xlu0 %v4815
      %v4846 = vpop.xlane.xlu0 %4845
      %4847 = vadd.xlane.f32.xlu0 %v4816
      %v4848 = vpop.xlane.xlu0 %4847
      %v4849 = vrcp.pop %v4818
      %v4850 = vrcp.pop %v4820
      %v4851 = vrcp.pop %v4822
      %v4852 = vrcp.pop %v4824
      %v4853 = vrcp.pop %v4826
      %v4854 = vrcp.pop %v4828
      %v4855 = vrcp.pop %v4830
      %v4856 = vrcp.pop %v4832
      %v4857 = vrcp.pop %v4834
      %v4858 = vrcp.pop %v4836
      %v4859 = vrcp.pop %v4838
      %v4860 = vrcp.pop %v4840
      %v4861 = vrcp.pop %v4842
      %v4862 = vrcp.pop %v4844
      %v4863 = vrcp.pop %v4846
      %v4864 = vrcp.pop %v4848
      %v4865 = vmul.f32 %v4801, %v4849
      %v4866 = vmul.f32 %v4802, %v4850
      %v4867 = vmul.f32 %v4803, %v4851
      %v4868 = vmul.f32 %v4804, %v4852
      %v4869 = vmul.f32 %v4805, %v4853
      %v4870 = vmul.f32 %v4806, %v4854
      %v4871 = vmul.f32 %v4807, %v4855
      %v4872 = vmul.f32 %v4808, %v4856
      %v4873 = vmul.f32 %v4809, %v4857
      %v4874 = vmul.f32 %v4810, %v4858
      %v4875 = vmul.f32 %v4811, %v4859
      %v4876 = vmul.f32 %v4812, %v4860
      %v4877 = vmul.f32 %v4813, %v4861
      %v4878 = vmul.f32 %v4814, %v4862
      %v4879 = vmul.f32 %v4815, %v4863
      %v4880 = vmul.f32 %v4816, %v4864
      %v4881 = vsel %vm4705, %v4865, 0.0
      %v4882 = vsel %vm4706, %v4866, 0.0
      %v4883 = vsel %vm4707, %v4867, 0.0
      %v4884 = vsel %vm4708, %v4868, 0.0
      %v4885 = vsel %vm4709, %v4869, 0.0
      %v4886 = vsel %vm4710, %v4870, 0.0
      %v4887 = vsel %vm4711, %v4871, 0.0
      %v4888 = vsel %vm4712, %v4872, 0.0
      %v4889 = vsel %vm4713, %v4873, 0.0
      %v4890 = vsel %vm4714, %v4874, 0.0
      %v4891 = vsel %vm4715, %v4875, 0.0
      %v4892 = vsel %vm4716, %v4876, 0.0
      %v4893 = vsel %vm4717, %v4877, 0.0
      %v4894 = vsel %vm4718, %v4878, 0.0
      %v4895 = vsel %vm4719, %v4879, 0.0
      %v4896 = vsel %vm4720, %v4880, 0.0
      %4897 = vrot.lane.b32.xlu0 %v4027, 120
      %v4898 = vpop.permute.xlu0 %4897
      %4899 = vrot.lane.b32.xlu0 %v4028, 120
      %v4900 = vpop.permute.xlu0 %4899
      %4901 = vrot.lane.b32.xlu0 %v4029, 120
      %v4902 = vpop.permute.xlu0 %4901
      %4903 = vrot.lane.b32.xlu0 %v4030, 120
      %v4904 = vpop.permute.xlu0 %4903
      %4905 = vrot.lane.b32.xlu0 %v4031, 120
      %v4906 = vpop.permute.xlu0 %4905
      %4907 = vrot.lane.b32.xlu0 %v4032, 120
      %v4908 = vpop.permute.xlu0 %4907
      %4909 = vrot.lane.b32.xlu0 %v4033, 120
      %v4910 = vpop.permute.xlu0 %4909
      %4911 = vrot.lane.b32.xlu0 %v4034, 120
      %v4912 = vpop.permute.xlu0 %4911
      %4913 = vrot.lane.b32.xlu0 %v4035, 120
      %v4914 = vpop.permute.xlu0 %4913
      %4915 = vrot.lane.b32.xlu0 %v4036, 120
      %v4916 = vpop.permute.xlu0 %4915
      %4917 = vrot.lane.b32.xlu0 %v4037, 120
      %v4918 = vpop.permute.xlu0 %4917
      %4919 = vrot.lane.b32.xlu0 %v4038, 120
      %v4920 = vpop.permute.xlu0 %4919
      %4921 = vrot.lane.b32.xlu0 %v4039, 120
      %v4922 = vpop.permute.xlu0 %4921
      %4923 = vrot.lane.b32.xlu0 %v4040, 120
      %v4924 = vpop.permute.xlu0 %4923
      %4925 = vrot.lane.b32.xlu0 %v4041, 120
      %v4926 = vpop.permute.xlu0 %4925
      %4927 = vrot.lane.b32.xlu0 %v4042, 120
      %v4928 = vpop.permute.xlu0 %4927
      %4945 = vmatprep.subr.mxu0 0.0
      %4946 = vmatpush1.msra.mxu0 %v4898
      %4947 = vmatprep.subr.mxu0 0.0
      %4948 = vmatpush1.msra.mxu0 %v4900
      %4949 = vmatprep.subr.mxu0 0.0
      %4950 = vmatpush1.msra.mxu0 %v4902
      %4951 = vmatprep.subr.mxu0 0.0
      %4952 = vmatpush1.msra.mxu0 %v4904
      %4953 = vmatprep.subr.mxu0 0.0
      %4954 = vmatpush1.msra.mxu0 %v4906
      %4955 = vmatprep.subr.mxu0 0.0
      %4956 = vmatpush1.msra.mxu0 %v4908
      %4957 = vmatprep.subr.mxu0 0.0
      %4958 = vmatpush1.msra.mxu0 %v4910
      %4959 = vmatprep.subr.mxu0 0.0
      %4960 = vmatpush1.msra.mxu0 %v4912
      %4961 = vmatprep.subr.mxu0 0.0
      %4962 = vmatpush1.msra.mxu0 %v4914
      %4963 = vmatprep.subr.mxu0 0.0
      %4964 = vmatpush1.msra.mxu0 %v4916
      %4965 = vmatprep.subr.mxu0 0.0
      %4966 = vmatpush1.msra.mxu0 %v4918
      %4967 = vmatprep.subr.mxu0 0.0
      %4968 = vmatpush1.msra.mxu0 %v4920
      %4969 = vmatprep.subr.mxu0 0.0
      %4970 = vmatpush1.msra.mxu0 %v4922
      %4971 = vmatprep.subr.mxu0 0.0
      %4972 = vmatpush1.msra.mxu0 %v4924
      %4973 = vmatprep.subr.mxu0 0.0
      %4974 = vmatpush1.msra.mxu0 %v4926
      %4975 = vmatprep.subr.mxu0 0.0
      %4976 = vmatpush1.msra.mxu0 %v4928
      %4977 = vmatprep.subr.mxu0 0.0
      %4978 = vmatpush1.msra.mxu0 0.0
      %4979 = vmatprep.subr.mxu0 0.0
      %4980 = vmatpush1.msra.mxu0 0.0
      %4981 = vmatprep.subr.mxu0 0.0
      %4982 = vmatpush1.msra.mxu0 0.0
      %4983 = vmatprep.subr.mxu0 0.0
      %4984 = vmatpush1.msra.mxu0 0.0
      %4985 = vmatprep.subr.mxu0 0.0
      %4986 = vmatpush1.msra.mxu0 0.0
      %4987 = vmatprep.subr.mxu0 0.0
      %4988 = vmatpush1.msra.mxu0 0.0
      %4989 = vmatprep.subr.mxu0 0.0
      %4990 = vmatpush1.msra.mxu0 0.0
      %4991 = vmatprep.subr.mxu0 0.0
      %4992 = vmatpush1.msra.mxu0 0.0
      %4993 = vmatprep.subr.mxu0 0.0
      %4994 = vmatpush1.msra.mxu0 0.0
      %4995 = vmatprep.subr.mxu0 0.0
      %4996 = vmatpush1.msra.mxu0 0.0
      %4997 = vmatprep.subr.mxu0 0.0
      %4998 = vmatpush1.msra.mxu0 0.0
      %4999 = vmatprep.subr.mxu0 0.0
      %5000 = vmatpush1.msra.mxu0 0.0
      %5001 = vmatprep.subr.mxu0 0.0
      %5002 = vmatpush1.msra.mxu0 0.0
      %5003 = vmatprep.subr.mxu0 0.0
      %5004 = vmatpush1.msra.mxu0 0.0
      %5005 = vmatprep.subr.mxu0 0.0
      %5006 = vmatpush1.msra.mxu0 0.0
      %5007 = vmatprep.subr.mxu0 0.0
      %5008 = vmatpush1.msra.mxu0 0.0
      %5009 = vmatprep.mubr.f32.mxu0 0.0
      %5010 = vmatmul.mubr.f32.gmra.mrb[0].mxu0 %v4881
      %v5011 = vpop.f32.mrb[0].mxu0
      %v5012 = vadd.f32 0.0, %v5011
      %v5013 = vpop.f32.mrb[0].mxu0
      %5014 = vmatprep.mubr.f32.mxu0 0.0
      %5015 = vmatmul.mubr.f32.gmra.mrb[0].mxu0 %v4882
      %v5016 = vpop.f32.mrb[0].mxu0
      %v5017 = vadd.f32 0.0, %v5016
      %v5018 = vpop.f32.mrb[0].mxu0
      %5019 = vmatprep.mubr.f32.mxu0 0.0
      %5020 = vmatmul.mubr.f32.gmra.mrb[0].mxu0 %v4883
      %v5021 = vpop.f32.mrb[0].mxu0
      %v5022 = vadd.f32 0.0, %v5021
      %v5023 = vpop.f32.mrb[0].mxu0
      %5024 = vmatprep.mubr.f32.mxu0 0.0
      %5025 = vmatmul.mubr.f32.gmra.mrb[0].mxu0 %v4884
      %v5026 = vpop.f32.mrb[0].mxu0
      %v5027 = vadd.f32 0.0, %v5026
      %v5028 = vpop.f32.mrb[0].mxu0
      %5029 = vmatprep.mubr.f32.mxu0 0.0
      %5030 = vmatmul.mubr.f32.gmra.mrb[0].mxu0 %v4885
      %v5031 = vpop.f32.mrb[0].mxu0
      %v5032 = vadd.f32 0.0, %v5031
      %v5033 = vpop.f32.mrb[0].mxu0
      %5034 = vmatprep.mubr.f32.mxu0 0.0
      %5035 = vmatmul.mubr.f32.gmra.mrb[0].mxu0 %v4886
      %v5036 = vpop.f32.mrb[0].mxu0
      %v5037 = vadd.f32 0.0, %v5036
      %v5038 = vpop.f32.mrb[0].mxu0
      %5039 = vmatprep.mubr.f32.mxu0 0.0
      %5040 = vmatmul.mubr.f32.gmra.mrb[0].mxu0 %v4887
      %v5041 = vpop.f32.mrb[0].mxu0
      %v5042 = vadd.f32 0.0, %v5041
      %v5043 = vpop.f32.mrb[0].mxu0
      %5044 = vmatprep.mubr.f32.mxu0 0.0
      %5045 = vmatmul.mubr.f32.gmra.mrb[0].mxu0 %v4888
      %v5046 = vpop.f32.mrb[0].mxu0
      %v5047 = vadd.f32 0.0, %v5046
      %v5048 = vpop.f32.mrb[0].mxu0
      %5049 = vmatprep.mubr.f32.mxu0 0.0
      %5050 = vmatmul.mubr.f32.gmra.mrb[0].mxu0 %v4889
      %v5051 = vpop.f32.mrb[0].mxu0
      %v5052 = vadd.f32 0.0, %v5051
      %v5053 = vpop.f32.mrb[0].mxu0
      %5054 = vmatprep.mubr.f32.mxu0 0.0
      %5055 = vmatmul.mubr.f32.gmra.mrb[0].mxu0 %v4890
      %v5056 = vpop.f32.mrb[0].mxu0
      %v5057 = vadd.f32 0.0, %v5056
      %v5058 = vpop.f32.mrb[0].mxu0
      %5059 = vmatprep.mubr.f32.mxu0 0.0
      %5060 = vmatmul.mubr.f32.gmra.mrb[0].mxu0 %v4891
      %v5061 = vpop.f32.mrb[0].mxu0
      %v5062 = vadd.f32 0.0, %v5061
      %v5063 = vpop.f32.mrb[0].mxu0
      %5064 = vmatprep.mubr.f32.mxu0 0.0
      %5065 = vmatmul.mubr.f32.gmra.mrb[0].mxu0 %v4892
      %v5066 = vpop.f32.mrb[0].mxu0
      %v5067 = vadd.f32 0.0, %v5066
      %v5068 = vpop.f32.mrb[0].mxu0
      %5069 = vmatprep.mubr.f32.mxu0 0.0
      %5070 = vmatmul.mubr.f32.gmra.mrb[0].mxu0 %v4893
      %v5071 = vpop.f32.mrb[0].mxu0
      %v5072 = vadd.f32 0.0, %v5071
      %v5073 = vpop.f32.mrb[0].mxu0
      %5074 = vmatprep.mubr.f32.mxu0 0.0
      %5075 = vmatmul.mubr.f32.gmra.mrb[0].mxu0 %v4894
      %v5076 = vpop.f32.mrb[0].mxu0
      %v5077 = vadd.f32 0.0, %v5076
      %v5078 = vpop.f32.mrb[0].mxu0
      %5079 = vmatprep.mubr.f32.mxu0 0.0
      %5080 = vmatmul.mubr.f32.gmra.mrb[0].mxu0 %v4895
      %v5081 = vpop.f32.mrb[0].mxu0
      %v5082 = vadd.f32 0.0, %v5081
      %v5083 = vpop.f32.mrb[0].mxu0
      %5084 = vmatprep.mubr.f32.mxu0 0.0
      %5085 = vmatmul.mubr.f32.gmra.mrb[0].mxu0 %v4896
      %v5086 = vpop.f32.mrb[0].mxu0
      %v5087 = vadd.f32 0.0, %v5086
      %v5088 = vpop.f32.mrb[0].mxu0
      %5089 = vdwg.mxu0
      %vm5090 = vcmp.gt.f32.partialorder %v4527, 0.0
      %vm5091 = vcmp.gt.f32.partialorder %v4532, 0.0
      %vm5092 = vcmp.gt.f32.partialorder %v4537, 0.0
      %vm5093 = vcmp.gt.f32.partialorder %v4542, 0.0
      %vm5094 = vcmp.gt.f32.partialorder %v4547, 0.0
      %vm5095 = vcmp.gt.f32.partialorder %v4552, 0.0
      %vm5096 = vcmp.gt.f32.partialorder %v4557, 0.0
      %vm5097 = vcmp.gt.f32.partialorder %v4562, 0.0
      %vm5098 = vcmp.gt.f32.partialorder %v4567, 0.0
      %vm5099 = vcmp.gt.f32.partialorder %v4572, 0.0
      %vm5100 = vcmp.gt.f32.partialorder %v4577, 0.0
      %vm5101 = vcmp.gt.f32.partialorder %v4582, 0.0
      %vm5102 = vcmp.gt.f32.partialorder %v4587, 0.0
      %vm5103 = vcmp.gt.f32.partialorder %v4592, 0.0
      %vm5104 = vcmp.gt.f32.partialorder %v4597, 0.0
      %vm5105 = vcmp.gt.f32.partialorder %v4602, 0.0
      %v5106 = vmin.f32 %v4527, 0.0
      %v5107 = vmin.f32 %v4532, 0.0
      %v5108 = vmin.f32 %v4537, 0.0
      %v5109 = vmin.f32 %v4542, 0.0
      %v5110 = vmin.f32 %v4547, 0.0
      %v5111 = vmin.f32 %v4552, 0.0
      %v5112 = vmin.f32 %v4557, 0.0
      %v5113 = vmin.f32 %v4562, 0.0
      %v5114 = vmin.f32 %v4567, 0.0
      %v5115 = vmin.f32 %v4572, 0.0
      %v5116 = vmin.f32 %v4577, 0.0
      %v5117 = vmin.f32 %v4582, 0.0
      %v5118 = vmin.f32 %v4587, 0.0
      %v5119 = vmin.f32 %v4592, 0.0
      %v5120 = vmin.f32 %v4597, 0.0
      %v5121 = vmin.f32 %v4602, 0.0
      %v5122 = vmul.f32 %v5106, 1.442695
      %v5123 = vpow.pop %v5122
      %v5124 = vmul.f32 %v5107, 1.442695
      %v5125 = vpow.pop %v5124
      %v5126 = vmul.f32 %v5108, 1.442695
      %v5127 = vpow.pop %v5126
      %v5128 = vmul.f32 %v5109, 1.442695
      %v5129 = vpow.pop %v5128
      %v5130 = vmul.f32 %v5110, 1.442695
      %v5131 = vpow.pop %v5130
      %v5132 = vmul.f32 %v5111, 1.442695
      %v5133 = vpow.pop %v5132
      %v5134 = vmul.f32 %v5112, 1.442695
      %v5135 = vpow.pop %v5134
      %v5136 = vmul.f32 %v5113, 1.442695
      %v5137 = vpow.pop %v5136
      %v5138 = vmul.f32 %v5114, 1.442695
      %v5139 = vpow.pop %v5138
      %v5140 = vmul.f32 %v5115, 1.442695
      %v5141 = vpow.pop %v5140
      %v5142 = vmul.f32 %v5116, 1.442695
      %v5143 = vpow.pop %v5142
      %v5144 = vmul.f32 %v5117, 1.442695
      %v5145 = vpow.pop %v5144
      %v5146 = vmul.f32 %v5118, 1.442695
      %v5147 = vpow.pop %v5146
      %v5148 = vmul.f32 %v5119, 1.442695
      %v5149 = vpow.pop %v5148
      %v5150 = vmul.f32 %v5120, 1.442695
      %v5151 = vpow.pop %v5150
      %v5152 = vmul.f32 %v5121, 1.442695
      %v5153 = vpow.pop %v5152
      %v5154 = vsub.f32 %v5123, 1.0
      %v5155 = vsub.f32 %v5125, 1.0
      %v5156 = vsub.f32 %v5127, 1.0
      %v5157 = vsub.f32 %v5129, 1.0
      %v5158 = vsub.f32 %v5131, 1.0
      %v5159 = vsub.f32 %v5133, 1.0
      %v5160 = vsub.f32 %v5135, 1.0
      %v5161 = vsub.f32 %v5137, 1.0
      %v5162 = vsub.f32 %v5139, 1.0
      %v5163 = vsub.f32 %v5141, 1.0
      %v5164 = vsub.f32 %v5143, 1.0
      %v5165 = vsub.f32 %v5145, 1.0
      %v5166 = vsub.f32 %v5147, 1.0
      %v5167 = vsub.f32 %v5149, 1.0
      %v5168 = vsub.f32 %v5151, 1.0
      %v5169 = vsub.f32 %v5153, 1.0
      %v5170 = vsel %vm5090, %v4527, %v5154
      %v5171 = vsel %vm5091, %v4532, %v5155
      %v5172 = vsel %vm5092, %v4537, %v5156
      %v5173 = vsel %vm5093, %v4542, %v5157
      %v5174 = vsel %vm5094, %v4547, %v5158
      %v5175 = vsel %vm5095, %v4552, %v5159
      %v5176 = vsel %vm5096, %v4557, %v5160
      %v5177 = vsel %vm5097, %v4562, %v5161
      %v5178 = vsel %vm5098, %v4567, %v5162
      %v5179 = vsel %vm5099, %v4572, %v5163
      %v5180 = vsel %vm5100, %v4577, %v5164
      %v5181 = vsel %vm5101, %v4582, %v5165
      %v5182 = vsel %vm5102, %v4587, %v5166
      %v5183 = vsel %vm5103, %v4592, %v5167
      %v5184 = vsel %vm5104, %v4597, %v5168
      %v5185 = vsel %vm5105, %v4602, %v5169
      %vm5186 = vcmp.gt.f32.partialorder %v5012, 0.0
      %vm5187 = vcmp.gt.f32.partialorder %v5017, 0.0
      %vm5188 = vcmp.gt.f32.partialorder %v5022, 0.0
      %vm5189 = vcmp.gt.f32.partialorder %v5027, 0.0
      %vm5190 = vcmp.gt.f32.partialorder %v5032, 0.0
      %vm5191 = vcmp.gt.f32.partialorder %v5037, 0.0
      %vm5192 = vcmp.gt.f32.partialorder %v5042, 0.0
      %vm5193 = vcmp.gt.f32.partialorder %v5047, 0.0
      %vm5194 = vcmp.gt.f32.partialorder %v5052, 0.0
      %vm5195 = vcmp.gt.f32.partialorder %v5057, 0.0
      %vm5196 = vcmp.gt.f32.partialorder %v5062, 0.0
      %vm5197 = vcmp.gt.f32.partialorder %v5067, 0.0
      %vm5198 = vcmp.gt.f32.partialorder %v5072, 0.0
      %vm5199 = vcmp.gt.f32.partialorder %v5077, 0.0
      %vm5200 = vcmp.gt.f32.partialorder %v5082, 0.0
      %vm5201 = vcmp.gt.f32.partialorder %v5087, 0.0
      %v5202 = vmin.f32 %v5012, 0.0
      %v5203 = vmin.f32 %v5017, 0.0
      %v5204 = vmin.f32 %v5022, 0.0
      %v5205 = vmin.f32 %v5027, 0.0
      %v5206 = vmin.f32 %v5032, 0.0
      %v5207 = vmin.f32 %v5037, 0.0
      %v5208 = vmin.f32 %v5042, 0.0
      %v5209 = vmin.f32 %v5047, 0.0
      %v5210 = vmin.f32 %v5052, 0.0
      %v5211 = vmin.f32 %v5057, 0.0
      %v5212 = vmin.f32 %v5062, 0.0
      %v5213 = vmin.f32 %v5067, 0.0
      %v5214 = vmin.f32 %v5072, 0.0
      %v5215 = vmin.f32 %v5077, 0.0
      %v5216 = vmin.f32 %v5082, 0.0
      %v5217 = vmin.f32 %v5087, 0.0
      %v5218 = vmul.f32 %v5202, 1.442695
      %v5219 = vpow.pop %v5218
      %v5220 = vmul.f32 %v5203, 1.442695
      %v5221 = vpow.pop %v5220
      %v5222 = vmul.f32 %v5204, 1.442695
      %v5223 = vpow.pop %v5222
      %v5224 = vmul.f32 %v5205, 1.442695
      %v5225 = vpow.pop %v5224
      %v5226 = vmul.f32 %v5206, 1.442695
      %v5227 = vpow.pop %v5226
      %v5228 = vmul.f32 %v5207, 1.442695
      %v5229 = vpow.pop %v5228
      %v5230 = vmul.f32 %v5208, 1.442695
      %v5231 = vpow.pop %v5230
      %v5232 = vmul.f32 %v5209, 1.442695
      %v5233 = vpow.pop %v5232
      %v5234 = vmul.f32 %v5210, 1.442695
      %v5235 = vpow.pop %v5234
      %v5236 = vmul.f32 %v5211, 1.442695
      %v5237 = vpow.pop %v5236
      %v5238 = vmul.f32 %v5212, 1.442695
      %v5239 = vpow.pop %v5238
      %v5240 = vmul.f32 %v5213, 1.442695
      %v5241 = vpow.pop %v5240
      %v5242 = vmul.f32 %v5214, 1.442695
      %v5243 = vpow.pop %v5242
      %v5244 = vmul.f32 %v5215, 1.442695
      %v5245 = vpow.pop %v5244
      %v5246 = vmul.f32 %v5216, 1.442695
      %v5247 = vpow.pop %v5246
      %v5248 = vmul.f32 %v5217, 1.442695
      %v5249 = vpow.pop %v5248
      %v5250 = vsub.f32 %v5219, 1.0
      %v5251 = vsub.f32 %v5221, 1.0
      %v5252 = vsub.f32 %v5223, 1.0
      %v5253 = vsub.f32 %v5225, 1.0
      %v5254 = vsub.f32 %v5227, 1.0
      %v5255 = vsub.f32 %v5229, 1.0
      %v5256 = vsub.f32 %v5231, 1.0
      %v5257 = vsub.f32 %v5233, 1.0
      %v5258 = vsub.f32 %v5235, 1.0
      %v5259 = vsub.f32 %v5237, 1.0
      %v5260 = vsub.f32 %v5239, 1.0
      %v5261 = vsub.f32 %v5241, 1.0
      %v5262 = vsub.f32 %v5243, 1.0
      %v5263 = vsub.f32 %v5245, 1.0
      %v5264 = vsub.f32 %v5247, 1.0
      %v5265 = vsub.f32 %v5249, 1.0
      %v5266 = vsel %vm5186, %v5012, %v5250
      %v5267 = vsel %vm5187, %v5017, %v5251
      %v5268 = vsel %vm5188, %v5022, %v5252
      %v5269 = vsel %vm5189, %v5027, %v5253
      %v5270 = vsel %vm5190, %v5032, %v5254
      %v5271 = vsel %vm5191, %v5037, %v5255
      %v5272 = vsel %vm5192, %v5042, %v5256
      %v5273 = vsel %vm5193, %v5047, %v5257
      %v5274 = vsel %vm5194, %v5052, %v5258
      %v5275 = vsel %vm5195, %v5057, %v5259
      %v5276 = vsel %vm5196, %v5062, %v5260
      %v5277 = vsel %vm5197, %v5067, %v5261
      %v5278 = vsel %vm5198, %v5072, %v5262
      %v5279 = vsel %vm5199, %v5077, %v5263
      %v5280 = vsel %vm5200, %v5082, %v5264
      %v5281 = vsel %vm5201, %v5087, %v5265
      %v5283 = vsel %vm2202, %v5266, 0
      %v5286 = vsel %vm2202, %v5267, 0
      %v5289 = vsel %vm2202, %v5268, 0
      %v5292 = vsel %vm2202, %v5269, 0
      %v5295 = vsel %vm2202, %v5270, 0
      %v5298 = vsel %vm2202, %v5271, 0
      %v5301 = vsel %vm2202, %v5272, 0
      %v5304 = vsel %vm2202, %v5273, 0
      %v5307 = vsel %vm2202, %v5274, 0
      %v5310 = vsel %vm2202, %v5275, 0
      %v5313 = vsel %vm2202, %v5276, 0
      %v5316 = vsel %vm2202, %v5277, 0
      %v5319 = vsel %vm2202, %v5278, 0
      %v5322 = vsel %vm2202, %v5279, 0
      %v5325 = vsel %vm2202, %v5280, 0
      %v5328 = vsel %vm2202, %v5281, 0
      %5330 = vmatprep.subr.mxu0 0.0
      %5331 = vmatpush1.msra.mxu0 %v4045
      %5332 = vmatprep.subr.mxu0 0.0
      %5333 = vmatpush1.msra.mxu0 0.0
      %5334 = vmatprep.subr.mxu0 0.0
      %5335 = vmatpush1.msra.mxu0 0.0
      %5336 = vmatprep.subr.mxu0 0.0
      %5337 = vmatpush1.msra.mxu0 0.0
      %5338 = vmatprep.subr.mxu0 0.0
      %5339 = vmatpush1.msra.mxu0 0.0
      %5340 = vmatprep.subr.mxu0 0.0
      %5341 = vmatpush1.msra.mxu0 0.0
      %5342 = vmatprep.subr.mxu0 0.0
      %5343 = vmatpush1.msra.mxu0 0.0
      %5344 = vmatprep.subr.mxu0 0.0
      %5345 = vmatpush1.msra.mxu0 0.0
      %5346 = vmatprep.subr.mxu0 0.0
      %5347 = vmatpush1.msra.mxu0 0.0
      %5348 = vmatprep.subr.mxu0 0.0
      %5349 = vmatpush1.msra.mxu0 0.0
      %5350 = vmatprep.subr.mxu0 0.0
      %5351 = vmatpush1.msra.mxu0 0.0
      %5352 = vmatprep.subr.mxu0 0.0
      %5353 = vmatpush1.msra.mxu0 0.0
      %5354 = vmatprep.subr.mxu0 0.0
      %5355 = vmatpush1.msra.mxu0 0.0
      %5356 = vmatprep.subr.mxu0 0.0
      %5357 = vmatpush1.msra.mxu0 0.0
      %5358 = vmatprep.subr.mxu0 0.0
      %5359 = vmatpush1.msra.mxu0 0.0
      %5360 = vmatprep.subr.mxu0 0.0
      %5361 = vmatpush1.msra.mxu0 0.0
      %5362 = vmatprep.subr.mxu0 0.0
      %5363 = vmatpush1.msra.mxu0 0.0
      %5364 = vmatprep.subr.mxu0 0.0
      %5365 = vmatpush1.msra.mxu0 0.0
      %5366 = vmatprep.subr.mxu0 0.0
      %5367 = vmatpush1.msra.mxu0 0.0
      %5368 = vmatprep.subr.mxu0 0.0
      %5369 = vmatpush1.msra.mxu0 0.0
      %5370 = vmatprep.subr.mxu0 0.0
      %5371 = vmatpush1.msra.mxu0 0.0
      %5372 = vmatprep.subr.mxu0 0.0
      %5373 = vmatpush1.msra.mxu0 0.0
      %5374 = vmatprep.subr.mxu0 0.0
      %5375 = vmatpush1.msra.mxu0 0.0
      %5376 = vmatprep.subr.mxu0 0.0
      %5377 = vmatpush1.msra.mxu0 0.0
      %5378 = vmatprep.subr.mxu0 0.0
      %5379 = vmatpush1.msra.mxu0 0.0
      %5380 = vmatprep.subr.mxu0 0.0
      %5381 = vmatpush1.msra.mxu0 0.0
      %5382 = vmatprep.subr.mxu0 0.0
      %5383 = vmatpush1.msra.mxu0 0.0
      %5384 = vmatprep.subr.mxu0 0.0
      %5385 = vmatpush1.msra.mxu0 0.0
      %5386 = vmatprep.subr.mxu0 0.0
      %5387 = vmatpush1.msra.mxu0 0.0
      %5388 = vmatprep.subr.mxu0 0.0
      %5389 = vmatpush1.msra.mxu0 0.0
      %5390 = vmatprep.subr.mxu0 0.0
      %5391 = vmatpush1.msra.mxu0 0.0
      %5392 = vmatprep.subr.mxu0 0.0
      %5393 = vmatpush1.msra.mxu0 0.0
      %5394 = vmatprep.mubr.f32.mxu0 0.0
      %5395 = vmatmul.mubr.f32.gmra.mrb[0].mxu0 %v5283
      %v5396 = vpop.f32.mrb[0].mxu0
      %v5397 = vadd.f32 0.0, %v5396
      %v5398 = vpop.f32.mrb[0].mxu0
      %5399 = vmatprep.mubr.f32.mxu0 0.0
      %5400 = vmatmul.mubr.f32.gmra.mrb[0].mxu0 %v5286
      %v5401 = vpop.f32.mrb[0].mxu0
      %v5402 = vadd.f32 0.0, %v5401
      %v5403 = vpop.f32.mrb[0].mxu0
      %5404 = vmatprep.mubr.f32.mxu0 0.0
      %5405 = vmatmul.mubr.f32.gmra.mrb[0].mxu0 %v5289
      %v5406 = vpop.f32.mrb[0].mxu0
      %v5407 = vadd.f32 0.0, %v5406
      %v5408 = vpop.f32.mrb[0].mxu0
      %5409 = vmatprep.mubr.f32.mxu0 0.0
      %5410 = vmatmul.mubr.f32.gmra.mrb[0].mxu0 %v5292
      %v5411 = vpop.f32.mrb[0].mxu0
      %v5412 = vadd.f32 0.0, %v5411
      %v5413 = vpop.f32.mrb[0].mxu0
      %5414 = vmatprep.mubr.f32.mxu0 0.0
      %5415 = vmatmul.mubr.f32.gmra.mrb[0].mxu0 %v5295
      %v5416 = vpop.f32.mrb[0].mxu0
      %v5417 = vadd.f32 0.0, %v5416
      %v5418 = vpop.f32.mrb[0].mxu0
      %5419 = vmatprep.mubr.f32.mxu0 0.0
      %5420 = vmatmul.mubr.f32.gmra.mrb[0].mxu0 %v5298
      %v5421 = vpop.f32.mrb[0].mxu0
      %v5422 = vadd.f32 0.0, %v5421
      %v5423 = vpop.f32.mrb[0].mxu0
      %5424 = vmatprep.mubr.f32.mxu0 0.0
      %5425 = vmatmul.mubr.f32.gmra.mrb[0].mxu0 %v5301
      %v5426 = vpop.f32.mrb[0].mxu0
      %v5427 = vadd.f32 0.0, %v5426
      %v5428 = vpop.f32.mrb[0].mxu0
      %5429 = vmatprep.mubr.f32.mxu0 0.0
      %5430 = vmatmul.mubr.f32.gmra.mrb[0].mxu0 %v5304
      %v5431 = vpop.f32.mrb[0].mxu0
      %v5432 = vadd.f32 0.0, %v5431
      %v5433 = vpop.f32.mrb[0].mxu0
      %5434 = vmatprep.mubr.f32.mxu0 0.0
      %5435 = vmatmul.mubr.f32.gmra.mrb[0].mxu0 %v5307
      %v5436 = vpop.f32.mrb[0].mxu0
      %v5437 = vadd.f32 0.0, %v5436
      %v5438 = vpop.f32.mrb[0].mxu0
      %5439 = vmatprep.mubr.f32.mxu0 0.0
      %5440 = vmatmul.mubr.f32.gmra.mrb[0].mxu0 %v5310
      %v5441 = vpop.f32.mrb[0].mxu0
      %v5442 = vadd.f32 0.0, %v5441
      %v5443 = vpop.f32.mrb[0].mxu0
      %5444 = vmatprep.mubr.f32.mxu0 0.0
      %5445 = vmatmul.mubr.f32.gmra.mrb[0].mxu0 %v5313
      %v5446 = vpop.f32.mrb[0].mxu0
      %v5447 = vadd.f32 0.0, %v5446
      %v5448 = vpop.f32.mrb[0].mxu0
      %5449 = vmatprep.mubr.f32.mxu0 0.0
      %5450 = vmatmul.mubr.f32.gmra.mrb[0].mxu0 %v5316
      %v5451 = vpop.f32.mrb[0].mxu0
      %v5452 = vadd.f32 0.0, %v5451
      %v5453 = vpop.f32.mrb[0].mxu0
      %5454 = vmatprep.mubr.f32.mxu0 0.0
      %5455 = vmatmul.mubr.f32.gmra.mrb[0].mxu0 %v5319
      %v5456 = vpop.f32.mrb[0].mxu0
      %v5457 = vadd.f32 0.0, %v5456
      %v5458 = vpop.f32.mrb[0].mxu0
      %5459 = vmatprep.mubr.f32.mxu0 0.0
      %5460 = vmatmul.mubr.f32.gmra.mrb[0].mxu0 %v5322
      %v5461 = vpop.f32.mrb[0].mxu0
      %v5462 = vadd.f32 0.0, %v5461
      %v5463 = vpop.f32.mrb[0].mxu0
      %5464 = vmatprep.mubr.f32.mxu0 0.0
      %5465 = vmatmul.mubr.f32.gmra.mrb[0].mxu0 %v5325
      %v5466 = vpop.f32.mrb[0].mxu0
      %v5467 = vadd.f32 0.0, %v5466
      %v5468 = vpop.f32.mrb[0].mxu0
      %5469 = vmatprep.mubr.f32.mxu0 0.0
      %5470 = vmatmul.mubr.f32.gmra.mrb[0].mxu0 %v5328
      %v5471 = vpop.f32.mrb[0].mxu0
      %v5472 = vadd.f32 0.0, %v5471
      %v5473 = vpop.f32.mrb[0].mxu0
      %5474 = vdwg.mxu0
      %v5476 = vsel %vm2202, %v5170, 0
      %v5479 = vsel %vm2202, %v5171, 0
      %v5482 = vsel %vm2202, %v5172, 0
      %v5485 = vsel %vm2202, %v5173, 0
      %v5488 = vsel %vm2202, %v5174, 0
      %v5491 = vsel %vm2202, %v5175, 0
      %v5494 = vsel %vm2202, %v5176, 0
      %v5497 = vsel %vm2202, %v5177, 0
      %v5500 = vsel %vm2202, %v5178, 0
      %v5503 = vsel %vm2202, %v5179, 0
      %v5506 = vsel %vm2202, %v5180, 0
      %v5509 = vsel %vm2202, %v5181, 0
      %v5512 = vsel %vm2202, %v5182, 0
      %v5515 = vsel %vm2202, %v5183, 0
      %v5518 = vsel %vm2202, %v5184, 0
      %v5521 = vsel %vm2202, %v5185, 0
      %5523 = vmatprep.subr.mxu0 0.0
      %5524 = vmatpush1.msra.mxu0 %v4044
      %5525 = vmatprep.subr.mxu0 0.0
      %5526 = vmatpush1.msra.mxu0 0.0
      %5527 = vmatprep.subr.mxu0 0.0
      %5528 = vmatpush1.msra.mxu0 0.0
      %5529 = vmatprep.subr.mxu0 0.0
      %5530 = vmatpush1.msra.mxu0 0.0
      %5531 = vmatprep.subr.mxu0 0.0
      %5532 = vmatpush1.msra.mxu0 0.0
      %5533 = vmatprep.subr.mxu0 0.0
      %5534 = vmatpush1.msra.mxu0 0.0
      %5535 = vmatprep.subr.mxu0 0.0
      %5536 = vmatpush1.msra.mxu0 0.0
      %5537 = vmatprep.subr.mxu0 0.0
      %5538 = vmatpush1.msra.mxu0 0.0
      %5539 = vmatprep.subr.mxu0 0.0
      %5540 = vmatpush1.msra.mxu0 0.0
      %5541 = vmatprep.subr.mxu0 0.0
      %5542 = vmatpush1.msra.mxu0 0.0
      %5543 = vmatprep.subr.mxu0 0.0
      %5544 = vmatpush1.msra.mxu0 0.0
      %5545 = vmatprep.subr.mxu0 0.0
      %5546 = vmatpush1.msra.mxu0 0.0
      %5547 = vmatprep.subr.mxu0 0.0
      %5548 = vmatpush1.msra.mxu0 0.0
      %5549 = vmatprep.subr.mxu0 0.0
      %5550 = vmatpush1.msra.mxu0 0.0
      %5551 = vmatprep.subr.mxu0 0.0
      %5552 = vmatpush1.msra.mxu0 0.0
      %5553 = vmatprep.subr.mxu0 0.0
      %5554 = vmatpush1.msra.mxu0 0.0
      %5555 = vmatprep.subr.mxu0 0.0
      %5556 = vmatpush1.msra.mxu0 0.0
      %5557 = vmatprep.subr.mxu0 0.0
      %5558 = vmatpush1.msra.mxu0 0.0
      %5559 = vmatprep.subr.mxu0 0.0
      %5560 = vmatpush1.msra.mxu0 0.0
      %5561 = vmatprep.subr.mxu0 0.0
      %5562 = vmatpush1.msra.mxu0 0.0
      %5563 = vmatprep.subr.mxu0 0.0
      %5564 = vmatpush1.msra.mxu0 0.0
      %5565 = vmatprep.subr.mxu0 0.0
      %5566 = vmatpush1.msra.mxu0 0.0
      %5567 = vmatprep.subr.mxu0 0.0
      %5568 = vmatpush1.msra.mxu0 0.0
      %5569 = vmatprep.subr.mxu0 0.0
      %5570 = vmatpush1.msra.mxu0 0.0
      %5571 = vmatprep.subr.mxu0 0.0
      %5572 = vmatpush1.msra.mxu0 0.0
      %5573 = vmatprep.subr.mxu0 0.0
      %5574 = vmatpush1.msra.mxu0 0.0
      %5575 = vmatprep.subr.mxu0 0.0
      %5576 = vmatpush1.msra.mxu0 0.0
      %5577 = vmatprep.subr.mxu0 0.0
      %5578 = vmatpush1.msra.mxu0 0.0
      %5579 = vmatprep.subr.mxu0 0.0
      %5580 = vmatpush1.msra.mxu0 0.0
      %5581 = vmatprep.subr.mxu0 0.0
      %5582 = vmatpush1.msra.mxu0 0.0
      %5583 = vmatprep.subr.mxu0 0.0
      %5584 = vmatpush1.msra.mxu0 0.0
      %5585 = vmatprep.subr.mxu0 0.0
      %5586 = vmatpush1.msra.mxu0 0.0
      %5587 = vmatprep.mubr.f32.mxu0 0.0
      %5588 = vmatmul.mubr.f32.gmra.mrb[0].mxu0 %v5476
      %v5589 = vpop.f32.mrb[0].mxu0
      %v5590 = vadd.f32 %v5397, %v5589
      %v5591 = vpop.f32.mrb[0].mxu0
      %5592 = vmatprep.mubr.f32.mxu0 0.0
      %5593 = vmatmul.mubr.f32.gmra.mrb[0].mxu0 %v5479
      %v5594 = vpop.f32.mrb[0].mxu0
      %v5595 = vadd.f32 %v5402, %v5594
      %v5596 = vpop.f32.mrb[0].mxu0
      %5597 = vmatprep.mubr.f32.mxu0 0.0
      %5598 = vmatmul.mubr.f32.gmra.mrb[0].mxu0 %v5482
      %v5599 = vpop.f32.mrb[0].mxu0
      %v5600 = vadd.f32 %v5407, %v5599
      %v5601 = vpop.f32.mrb[0].mxu0
      %5602 = vmatprep.mubr.f32.mxu0 0.0
      %5603 = vmatmul.mubr.f32.gmra.mrb[0].mxu0 %v5485
      %v5604 = vpop.f32.mrb[0].mxu0
      %v5605 = vadd.f32 %v5412, %v5604
      %v5606 = vpop.f32.mrb[0].mxu0
      %5607 = vmatprep.mubr.f32.mxu0 0.0
      %5608 = vmatmul.mubr.f32.gmra.mrb[0].mxu0 %v5488
      %v5609 = vpop.f32.mrb[0].mxu0
      %v5610 = vadd.f32 %v5417, %v5609
      %v5611 = vpop.f32.mrb[0].mxu0
      %5612 = vmatprep.mubr.f32.mxu0 0.0
      %5613 = vmatmul.mubr.f32.gmra.mrb[0].mxu0 %v5491
      %v5614 = vpop.f32.mrb[0].mxu0
      %v5615 = vadd.f32 %v5422, %v5614
      %v5616 = vpop.f32.mrb[0].mxu0
      %5617 = vmatprep.mubr.f32.mxu0 0.0
      %5618 = vmatmul.mubr.f32.gmra.mrb[0].mxu0 %v5494
      %v5619 = vpop.f32.mrb[0].mxu0
      %v5620 = vadd.f32 %v5427, %v5619
      %v5621 = vpop.f32.mrb[0].mxu0
      %5622 = vmatprep.mubr.f32.mxu0 0.0
      %5623 = vmatmul.mubr.f32.gmra.mrb[0].mxu0 %v5497
      %v5624 = vpop.f32.mrb[0].mxu0
      %v5625 = vadd.f32 %v5432, %v5624
      %v5626 = vpop.f32.mrb[0].mxu0
      %5627 = vmatprep.mubr.f32.mxu0 0.0
      %5628 = vmatmul.mubr.f32.gmra.mrb[0].mxu0 %v5500
      %v5629 = vpop.f32.mrb[0].mxu0
      %v5630 = vadd.f32 %v5437, %v5629
      %v5631 = vpop.f32.mrb[0].mxu0
      %5632 = vmatprep.mubr.f32.mxu0 0.0
      %5633 = vmatmul.mubr.f32.gmra.mrb[0].mxu0 %v5503
      %v5634 = vpop.f32.mrb[0].mxu0
      %v5635 = vadd.f32 %v5442, %v5634
      %v5636 = vpop.f32.mrb[0].mxu0
      %5637 = vmatprep.mubr.f32.mxu0 0.0
      %5638 = vmatmul.mubr.f32.gmra.mrb[0].mxu0 %v5506
      %v5639 = vpop.f32.mrb[0].mxu0
      %v5640 = vadd.f32 %v5447, %v5639
      %v5641 = vpop.f32.mrb[0].mxu0
      %5642 = vmatprep.mubr.f32.mxu0 0.0
      %5643 = vmatmul.mubr.f32.gmra.mrb[0].mxu0 %v5509
      %v5644 = vpop.f32.mrb[0].mxu0
      %v5645 = vadd.f32 %v5452, %v5644
      %v5646 = vpop.f32.mrb[0].mxu0
      %5647 = vmatprep.mubr.f32.mxu0 0.0
      %5648 = vmatmul.mubr.f32.gmra.mrb[0].mxu0 %v5512
      %v5649 = vpop.f32.mrb[0].mxu0
      %v5650 = vadd.f32 %v5457, %v5649
      %v5651 = vpop.f32.mrb[0].mxu0
      %5652 = vmatprep.mubr.f32.mxu0 0.0
      %5653 = vmatmul.mubr.f32.gmra.mrb[0].mxu0 %v5515
      %v5654 = vpop.f32.mrb[0].mxu0
      %v5655 = vadd.f32 %v5462, %v5654
      %v5656 = vpop.f32.mrb[0].mxu0
      %5657 = vmatprep.mubr.f32.mxu0 0.0
      %5658 = vmatmul.mubr.f32.gmra.mrb[0].mxu0 %v5518
      %v5659 = vpop.f32.mrb[0].mxu0
      %v5660 = vadd.f32 %v5467, %v5659
      %v5661 = vpop.f32.mrb[0].mxu0
      %5662 = vmatprep.mubr.f32.mxu0 0.0
      %5663 = vmatmul.mubr.f32.gmra.mrb[0].mxu0 %v5521
      %v5664 = vpop.f32.mrb[0].mxu0
      %v5665 = vadd.f32 %v5472, %v5664
      %v5666 = vpop.f32.mrb[0].mxu0
      %5667 = vdwg.mxu0
      %v5669 = vlaneseq
      %v5670 = vshrl.u32 %v5669, 7
      %v5671 = vsub.s32 0, %v5670
      %v5672 = vrot.slane %v4046, %v5671
      %v5674 = vadd.f32 %v5590, %v5672
      %v5675 = vadd.f32 %v5595, %v5672
      %v5676 = vadd.f32 %v5600, %v5672
      %v5677 = vadd.f32 %v5605, %v5672
      %v5678 = vadd.f32 %v5610, %v5672
      %v5679 = vadd.f32 %v5615, %v5672
      %v5680 = vadd.f32 %v5620, %v5672
      %v5681 = vadd.f32 %v5625, %v5672
      %v5682 = vadd.f32 %v5630, %v5672
      %v5683 = vadd.f32 %v5635, %v5672
      %v5684 = vadd.f32 %v5640, %v5672
      %v5685 = vadd.f32 %v5645, %v5672
      %v5686 = vadd.f32 %v5650, %v5672
      %v5687 = vadd.f32 %v5655, %v5672
      %v5688 = vadd.f32 %v5660, %v5672
      %v5689 = vadd.f32 %v5665, %v5672
      %5690 = vst.msk [vmem:[%s708] sm:$0xff] %vm768, %v5674
      %5691 = vst.msk [vmem:[%s708 + $0x8] sm:$0xff] %vm768, %v5675
      %5692 = vst.msk [vmem:[%s708 + $0x10] sm:$0xff] %vm768, %v5676
      %5693 = vst.msk [vmem:[%s708 + $0x18] sm:$0xff] %vm768, %v5677
      %5694 = vst.msk [vmem:[%s708 + $0x20] sm:$0xff] %vm768, %v5678
      %5695 = vst.msk [vmem:[%s708 + $0x28] sm:$0xff] %vm768, %v5679
      %5696 = vst.msk [vmem:[%s708 + $0x30] sm:$0xff] %vm768, %v5680
      %5697 = vst.msk [vmem:[%s708 + $0x38] sm:$0xff] %vm768, %v5681
      %5698 = vst.msk [vmem:[%s708 + $0x40] sm:$0xff] %vm768, %v5682
      %5699 = vst.msk [vmem:[%s708 + $0x48] sm:$0xff] %vm768, %v5683
      %5700 = vst.msk [vmem:[%s708 + $0x50] sm:$0xff] %vm768, %v5684
      %5701 = vst.msk [vmem:[%s708 + $0x58] sm:$0xff] %vm768, %v5685
      %5702 = vst.msk [vmem:[%s708 + $0x60] sm:$0xff] %vm768, %v5686
      %5703 = vst.msk [vmem:[%s708 + $0x68] sm:$0xff] %vm768, %v5687
      %5704 = vst.msk [vmem:[%s708 + $0x70] sm:$0xff] %vm768, %v5688
      %5705 = vst.msk [vmem:[%s708 + $0x78] sm:$0xff] %vm768, %v5689
      %p5706 = scmp.lt.s32.totalorder %s34, 1
      %s5707 = scalar_select %p5706, %s34, 1
      %s5708 = smul.addr %s5707, 16
      %s5709 = smul.addr %s5708, 8
      %s5710 = scalar_lea.vmem %s17, %s5709
      %p5711 = scmp.lt.s32.totalorder %s34, 1
      %s5712 = scalar_select %p5711, %s34, 1
      %s5713 = smul.addr %s5712, 16
      %s5714 = smul.addr %s5713, 8
      %s5715 = scalar_lea.vmem %s18, %s5714
      %p5716 = scmp.lt.s32.totalorder %s34, 1
      %s5717 = scalar_select %p5716, %s34, 1
      %s5718 = smul.addr %s5717, 16
      %s5719 = smul.addr %s5718, 8
      %s5720 = scalar_lea.vmem %s19, %s5719
      %p5721 = scmp.lt.s32.totalorder %s34, 1
      %s5722 = scalar_select %p5721, %s34, 1
      %s5723 = smul.addr %s5722, 16
      %s5724 = smul.addr %s5723, 8
      %s5725 = scalar_lea.vmem %s20, %s5724
      // Predicated region
      $region89: #{tpu_custom_call.1} parent=87 // pred_check
        %p5726 = pneg %p424
      $region90: #{tpu_custom_call.1} parent=87 // pred_check_branch
        %5728 = sbr.rel (%p5726) target = $region92
      $region91: #{tpu_custom_call.1} parent=87 // pred_region
        _
      $region92: #{tpu_custom_call.1} parent=87 // pred_fallthru
        _
      // Predicated region
      $region93: #{tpu_custom_call.1} parent=87 // pred_check
        %p5729 = pneg %p450
      $region94: #{tpu_custom_call.1} parent=87 // pred_check_branch
        %5731 = sbr.rel (%p5729) target = $region96
      $region95: #{tpu_custom_call.1} parent=87 // pred_region
        _
      $region96: #{tpu_custom_call.1} parent=87 // pred_fallthru
        _
      // Predicated region
      $region97: #{tpu_custom_call.1} parent=87 // pred_check
        %p5732 = pneg %p476
      $region98: #{tpu_custom_call.1} parent=87 // pred_check_branch
        %5734 = sbr.rel (%p5732) target = $region100
      $region99: #{tpu_custom_call.1} parent=87 // pred_region
        _
      $region100: #{tpu_custom_call.1} parent=87 // pred_fallthru
        _
      // Predicated region
      $region101: #{tpu_custom_call.1} parent=87 // pred_check
        %p5735 = pneg %p502
      $region102: #{tpu_custom_call.1} parent=87 // pred_check_branch
        %5737 = sbr.rel (%p5735) target = $region104
      $region103: #{tpu_custom_call.1} parent=87 // pred_region
        _
      $region104: #{tpu_custom_call.1} parent=87 // pred_fallthru
        _
    $region88: #{tpu_custom_call.1} parent=5 // pred_fallthru
      _
    %p5738 = scmp.le.s32.totalorder 2, %s29
    // Predicated region
    $region105: #{tpu_custom_call.1} parent=5 // pred_check
      %p5739 = pneg %p5738
    $region106: #{tpu_custom_call.1} parent=5 // pred_check_branch
      %5741 = sbr.rel (%p5739) target = $region108
    $region107: #{tpu_custom_call.1} parent=5 // pred_region
      %s5742 = ssub.s32 %s29, 2
      // Predicated region
      $region109: #{tpu_custom_call.1} parent=107 // pred_check
        %p5743 = pneg %p430
      $region110: #{tpu_custom_call.1} parent=107 // pred_check_branch
        %5745 = sbr.rel (%p5743) target = $region112
      $region111: #{tpu_custom_call.1} parent=107 // pred_region
        %p5746 = scmp.lt.s32.totalorder %s35, 1
        %s5747 = scalar_select %p5746, %s35, 1
        %s5748 = smul.addr %s5747, 16
        %s5749 = smul.addr %s5748, 8
        %s5750 = scalar_lea.vmem %s17, %s5749
      $region112: #{tpu_custom_call.1} parent=107 // pred_fallthru
        _
      // Predicated region
      $region113: #{tpu_custom_call.1} parent=107 // pred_check
        %p5751 = pneg %p456
      $region114: #{tpu_custom_call.1} parent=107 // pred_check_branch
        %5753 = sbr.rel (%p5751) target = $region116
      $region115: #{tpu_custom_call.1} parent=107 // pred_region
        %p5754 = scmp.lt.s32.totalorder %s35, 1
        %s5755 = scalar_select %p5754, %s35, 1
        %s5756 = smul.addr %s5755, 16
        %s5757 = smul.addr %s5756, 8
        %s5758 = scalar_lea.vmem %s18, %s5757
      $region116: #{tpu_custom_call.1} parent=107 // pred_fallthru
        _
      // Predicated region
      $region117: #{tpu_custom_call.1} parent=107 // pred_check
        %p5759 = pneg %p482
      $region118: #{tpu_custom_call.1} parent=107 // pred_check_branch
        %5761 = sbr.rel (%p5759) target = $region120
      $region119: #{tpu_custom_call.1} parent=107 // pred_region
        %p5762 = scmp.lt.s32.totalorder %s35, 1
        %s5763 = scalar_select %p5762, %s35, 1
        %s5764 = smul.addr %s5763, 16
        %s5765 = smul.addr %s5764, 8
        %s5766 = scalar_lea.vmem %s19, %s5765
      $region120: #{tpu_custom_call.1} parent=107 // pred_fallthru
        _
      // Predicated region
      $region121: #{tpu_custom_call.1} parent=107 // pred_check
        %p5767 = pneg %p508
      $region122: #{tpu_custom_call.1} parent=107 // pred_check_branch
        %5769 = sbr.rel (%p5767) target = $region124
      $region123: #{tpu_custom_call.1} parent=107 // pred_region
        %p5770 = scmp.lt.s32.totalorder %s35, 1
        %s5771 = scalar_select %p5770, %s35, 1
        %s5772 = smul.addr %s5771, 16
        %s5773 = smul.addr %s5772, 8
        %s5774 = scalar_lea.vmem %s20, %s5773
      $region124: #{tpu_custom_call.1} parent=107 // pred_fallthru
        _
    $region108: #{tpu_custom_call.1} parent=5 // pred_fallthru
      _
  $region6: #{tpu_custom_call.1} parent=0 // loop_footer
    %s33 = sadd.s32 1, %s29
  $region7: #{tpu_custom_call.1} parent=0 // loop_footer_branch
    %28 = sbr.rel target = $region3
  $region8: #{tpu_custom_call.1} parent=0 // loop_exit
    _

</llo_original>
